<compile_context>
chip_gen: v6e
topology: v6e:2x2x1
jax: 0.10.0
libtpu: 0.0.40
codegen_flags: <defaults>
</compile_context>

<pallas_src>
import jax
import jax.numpy as jnp
from jax.experimental import pallas as pl
from jax.experimental.pallas import tpu as pltpu

HIDDEN = 128        # Expert fc1 output size (fixed by the module)
GATE_HIDDEN = 64    # GatingNetwork fc1 output size (fixed by the module)
GATE_PAD = 128      # gating hidden padded to one full lane tile
LANE = 128


def _round_up(x, m):
    return ((x + m - 1) // m) * m


def _min_sublane(dt):
    # (8,128) minimum tile is for 32-bit; sub-32-bit dtypes pack along sublanes.
    return max(8, 32 // jnp.dtype(dt).itemsize)


def moe_forward(x, params, *, tile_b=None, compute_dtype=None):
    """MixtureOfExperts forward pass.

    x: [B, D_in]
    params:
      wg1 [D_in, 64], bg1 [64], wg2 [64, E], bg2 [E]
      w1  [E, D_in, 128], b1 [E, 128], w2 [E, 128, D_out], b2 [E, D_out]
    compute_dtype: dtype for the MXU matmul operands (e.g. jnp.bfloat16 on v6e/v7x);
      accumulation and the VPU-side math stay f32.  Defaults to x.dtype.
    Returns (output [B, D_out], gating_weights [B, E]).
    """
    wg1, bg1, wg2, bg2 = params["wg1"], params["bg1"], params["wg2"], params["bg2"]
    w1, b1, w2, b2 = params["w1"], params["b1"], params["w2"], params["b2"]

    B, D_in = x.shape
    E = w1.shape[0]
    D_out = w2.shape[-1]
    out_dtype = x.dtype
    compute_dtype = jnp.dtype(compute_dtype if compute_dtype is not None else out_dtype)

    # Lane-dense padded sizes (multiples of 128 avoid masked partial stores).
    E_pad = _round_up(E, LANE)
    D_out_pad = _round_up(D_out, LANE)
    EH = E * HIDDEN

    c_item = jnp.dtype(compute_dtype).itemsize
    o_item = jnp.dtype(out_dtype).itemsize
    sub = max(_min_sublane(compute_dtype), _min_sublane(out_dtype))

    # Resident (single-buffered) weight bytes.
    weight_bytes = (c_item * (D_in * (EH + GATE_PAD)          # fused fc1 (experts + gating)
                              + GATE_PAD * E_pad              # gating fc2
                              + E_pad * EH                    # gate-broadcast 0/1 matrix
                              + (EH + E_pad) * D_out_pad)     # fused fc2 (+ gated-bias rows)
                    + 4 * (EH + GATE_PAD + E_pad))            # f32 biases

    # ---- batch tiling (dtype-aware sublane rounding, VMEM-budget-derived default) ----
    per_row = (2 * D_in * c_item + 2 * (D_out_pad + E_pad) * o_item
               + 4 * (4 * EH + 4 * E_pad + GATE_PAD + D_out_pad))   # f32 intermediates
    if tile_b is None:
        budget = 48 * 1024 * 1024 - 2 * weight_bytes   # fits a single v7x TensorCore
        tile_b = max(sub, (max(budget, 0) // per_row // sub) * sub)
        tile_b = min(tile_b, 512, _round_up(B, sub))
        if B > sub:   # ensure >=2 grid steps so the "parallel" axis splits on v7x megacore
            tile_b = min(tile_b, _round_up((B + 1) // 2, sub))
    tile_b = max(sub, _round_up(int(tile_b), sub))
    B_pad = _round_up(B, tile_b)
    n_tiles = B_pad // tile_b

    # ---- pack / pad weights on the host (once) ----
    cd = lambda a: a.astype(compute_dtype)
    f32 = lambda a: a.astype(jnp.float32)

    # fused fc1: experts' weights concatenated on the lane axis, gating fc1 appended
    w1_f = jnp.transpose(cd(w1), (1, 0, 2)).reshape(D_in, EH)
    wg1_p = jnp.zeros((D_in, GATE_PAD), compute_dtype).at[:, :GATE_HIDDEN].set(cd(wg1))
    w1_all = jnp.concatenate([w1_f, wg1_p], axis=1)                   # [D_in, EH+128]
    b1_all = jnp.zeros((1, EH + GATE_PAD), jnp.float32)
    b1_all = b1_all.at[0, :EH].set(f32(b1).reshape(EH))
    b1_all = b1_all.at[0, EH:EH + GATE_HIDDEN].set(f32(bg1))

    wg2_p = jnp.zeros((GATE_PAD, E_pad), compute_dtype).at[:GATE_HIDDEN, :E].set(cd(wg2))
    bg2_p = jnp.zeros((1, E_pad), jnp.float32).at[0, :E].set(f32(bg2))

    # 0/1 repeat matrix: row e has ones on lanes [e*128, (e+1)*128); exact in any dtype
    rmat = jnp.zeros((E_pad, EH), compute_dtype).at[:E, :].set(
        jnp.repeat(jnp.eye(E, dtype=compute_dtype), HIDDEN, axis=1))

    # fused fc2: experts' W2 stacked on the K axis, gated bias b2 appended as extra K rows
    w2b = jnp.zeros((EH + E_pad, D_out_pad), compute_dtype)
    w2b = w2b.at[:EH, :D_out].set(cd(w2).reshape(EH, D_out))
    w2b = w2b.at[EH:EH + E, :D_out].set(cd(b2))

    x_c = cd(x)
    if B_pad != B:
        x_c = jnp.pad(x_c, ((0, B_pad - B), (0, 0)))

    # ---- kernel (one batch tile of the full MoE forward) ----
    def moe_kernel(x_ref, w1_ref, b1_ref, wg2_ref, bg2_ref, rmat_ref, w2_ref,
                   out_ref, gate_ref):
        x_t = x_ref[...]                                               # [TB, D_in]

        # fused fc1 for all experts + gating network (shared LHS, shared K=D_in)
        h_all = jnp.dot(x_t, w1_ref[...], preferred_element_type=jnp.float32)
        h_all = jnp.maximum(h_all + b1_ref[...], 0.0)                  # [TB, EH+128] f32
        h = h_all[:, :EH]                                              # expert hidden
        hg = h_all[:, EH:]                                             # gating hidden (64 real + 64 zero)

        # gating fc2 + masked softmax (padded expert columns forced to exactly 0)
        logits = jnp.dot(hg.astype(compute_dtype), wg2_ref[...],
                         preferred_element_type=jnp.float32) + bg2_ref[...]
        col = jax.lax.broadcasted_iota(jnp.int32, logits.shape, 1)
        valid = col < E
        m = jnp.max(jnp.where(valid, logits, -jnp.inf), axis=-1, keepdims=True)
        p = jnp.where(valid, jnp.exp(logits - m), 0.0)
        denom = jnp.sum(p, axis=-1, keepdims=True)
        inv = pl.reciprocal(denom, approx=True)                        # EUP slot (free under MXU)
        inv = inv * (2.0 - denom * inv)                                # one NR step -> ~f32 accuracy
        gates = p * inv                                                # [TB, E_pad] f32
        gates_c = gates.astype(compute_dtype)

        # broadcast each gate over its expert's 128 hidden lanes (layout-safe MXU matmul)
        grep = jnp.dot(gates_c, rmat_ref[...], preferred_element_type=jnp.float32)

        # fused experts fc2 + gated bias:  [g.h | g] @ [[W2]; [b2]]
        fc2_in = jnp.concatenate([(h * grep).astype(compute_dtype), gates_c], axis=-1)
        out = jnp.dot(fc2_in, w2_ref[...], preferred_element_type=jnp.float32)

        out_ref[...] = out.astype(out_ref.dtype)
        gate_ref[...] = gates.astype(gate_ref.dtype)

    # ---- cost estimate (advisory, for XLA scheduling around the custom call) ----
    flops = 2 * B_pad * (D_in * (EH + GATE_PAD) + GATE_PAD * E_pad
                         + E_pad * EH + (EH + E_pad) * D_out_pad)
    bytes_accessed = (c_item * B_pad * D_in + weight_bytes
                      + o_item * B_pad * (D_out_pad + E_pad))
    cost = pl.CostEstimate(flops=int(flops),
                           transcendentals=int(B_pad * (E_pad + 1)),
                           bytes_accessed=int(bytes_accessed))

    try:
        vmem_cap = int(pltpu.get_tpu_info().vmem_capacity_bytes)
    except Exception:
        vmem_cap = 64 * 1024 * 1024     # conservative: one v7x TensorCore

    const = lambda i: (0, 0)

    def run(single_buffer_weights):
        if single_buffer_weights:
            wspec = lambda shape: pl.BlockSpec(shape, const, pipeline_mode=pl.Buffered(1))
        else:
            wspec = lambda shape: pl.BlockSpec(shape, const)

        grid_spec = pltpu.PrefetchScalarGridSpec(
            num_scalar_prefetch=0,
            grid=(n_tiles,),
            in_specs=[
                pl.BlockSpec((tile_b, D_in), lambda i: (i, 0)),   # x (moves with grid)
                wspec((D_in, EH + GATE_PAD)),                     # fused fc1 weights (VMEM-resident)
                wspec((1, EH + GATE_PAD)),                        # fused fc1 biases (f32)
                wspec((GATE_PAD, E_pad)),                         # gating fc2 weights
                wspec((1, E_pad)),                                # gating fc2 bias (f32)
                wspec((E_pad, EH)),                               # gate-broadcast 0/1 matrix
                wspec((EH + E_pad, D_out_pad)),                   # fused fc2 weights + b2 rows
            ],
            out_specs=[
                pl.BlockSpec((tile_b, D_out_pad), lambda i: (i, 0)),  # output (lane-dense)
                pl.BlockSpec((tile_b, E_pad), lambda i: (i, 0)),      # gating weights
            ],
        )

        wmul = 1 if single_buffer_weights else 2
        act_bytes = tile_b * (2 * D_in * c_item + 2 * (D_out_pad + E_pad) * o_item)
        inter_bytes = tile_b * 4 * (4 * EH + 4 * E_pad + GATE_PAD + D_out_pad)
        vmem_needed = wmul * weight_bytes + act_bytes + inter_bytes
        vmem_limit = int(min(0.8 * vmem_cap,
                             max(vmem_needed + vmem_needed // 4, 32 * 1024 * 1024)))

        return pl.pallas_call(
            moe_kernel,
            out_shape=(jax.ShapeDtypeStruct((B_pad, D_out_pad), out_dtype),
                       jax.ShapeDtypeStruct((B_pad, E_pad), out_dtype)),
            grid_spec=grid_spec,
            compiler_params=pltpu.CompilerParams(
                dimension_semantics=("parallel",),
                vmem_limit_bytes=vmem_limit),
            cost_estimate=cost,
        )(x_c, w1_all, b1_all, wg2_p, bg2_p, rmat, w2b)

    try:
        out_p, gate_p = run(True)
        jax.block_until_ready((out_p, gate_p))
    except Exception:
        # TODO(synk): some jax versions reject pl.Buffered(1); fall back to default double-buffering.
        out_p, gate_p = run(False)

    return out_p[:B, :D_out], gate_p[:B, :E]


def init_moe_params(key, input_dim, output_dim, num_experts, dtype=jnp.float32):
    """PyTorch-like uniform(-1/sqrt(fan_in), 1/sqrt(fan_in)) init; weights stored [in, out]."""
    keys = jax.random.split(key, 8)

    def lin(kw, kb, fan_in, fan_out):
        lim = 1.0 / (fan_in ** 0.5)
        w = jax.random.uniform(kw, (fan_in, fan_out), dtype, -lim, lim)
        b = jax.random.uniform(kb, (fan_out,), dtype, -lim, lim)
        return w, b

    wg1, bg1 = lin(keys[0], keys[1], input_dim, GATE_HIDDEN)
    wg2, bg2 = lin(keys[2], keys[3], GATE_HIDDEN, num_experts)

    lim1 = 1.0 / (input_dim ** 0.5)
    lim2 = 1.0 / (HIDDEN ** 0.5)
    kw1 = jax.random.split(keys[4], num_experts)
    kb1 = jax.random.split(keys[5], num_experts)
    kw2 = jax.random.split(keys[6], num_experts)
    kb2 = jax.random.split(keys[7], num_experts)
    w1 = jnp.stack([jax.random.uniform(k, (input_dim, HIDDEN), dtype, -lim1, lim1) for k in kw1])
    b1 = jnp.stack([jax.random.uniform(k, (HIDDEN,), dtype, -lim1, lim1) for k in kb1])
    w2 = jnp.stack([jax.random.uniform(k, (HIDDEN, output_dim), dtype, -lim2, lim2) for k in kw2])
    b2 = jnp.stack([jax.random.uniform(k, (output_dim,), dtype, -lim2, lim2) for k in kb2])
    return dict(wg1=wg1, bg1=bg1, wg2=wg2, bg2=bg2, w1=w1, b1=b1, w2=w2, b2=b2)


def moe_reference(x, params):
    """Plain-JAX reference matching the PyTorch forward."""
    wg1, bg1, wg2, bg2 = params["wg1"], params["bg1"], params["wg2"], params["bg2"]
    w1, b1, w2, b2 = params["w1"], params["b1"], params["w2"], params["b2"]
    hg = jnp.maximum(x @ wg1 + bg1, 0.0)
    gates = jax.nn.softmax(hg @ wg2 + bg2, axis=1)
    outs = []
    for e in range(w1.shape[0]):
        h = jnp.maximum(x @ w1[e] + b1[e], 0.0)
        outs.append(h @ w2[e] + b2[e])
    expert_outputs = jnp.stack(outs, axis=2)                    # [B, D_out, E]
    out = jnp.sum(gates[:, None, :] * expert_outputs, axis=2)   # [B, D_out]
    return out, gates


if __name__ == "__main__":
    key = jax.random.PRNGKey(0)
    kx, kp = jax.random.split(key)

    batch, input_dim, output_dim, num_experts = 16, 32, 16, 4
    x = jax.random.normal(kx, (batch, input_dim), jnp.float32)
    params = init_moe_params(kp, input_dim, output_dim, num_experts)

    with jax.default_matmul_precision("highest"):
        ref_out, ref_gates = moe_reference(x, params)

    # --- f32 compute path; tile_b=8 -> grid=(2,) so the batch-tiled pipeline is exercised ---
    out, gates = moe_forward(x, params, tile_b=8)
    out = jax.block_until_ready(out)
    gates = jax.block_until_ready(gates)

    assert out.shape == (batch, output_dim)
    assert gates.shape == (batch, num_experts)
    assert jnp.allclose(gates, ref_gates, atol=1e-3, rtol=1e-3), \
        float(jnp.max(jnp.abs(gates - ref_gates)))
    assert jnp.allclose(out, ref_out, atol=1e-3, rtol=1e-3), \
        float(jnp.max(jnp.abs(out - ref_out)))

    # --- bf16 MXU path (v6e/v7x friendly): f32 accumulation, looser tolerance ---
    out_bf, gates_bf = moe_forward(x, params, compute_dtype=jnp.bfloat16)
    out_bf = jax.block_until_ready(out_bf)
    gates_bf = jax.block_until_ready(gates_bf)

    assert out_bf.shape == (batch, output_dim)
    assert gates_bf.shape == (batch, num_experts)
    assert jnp.allclose(gates_bf, ref_gates, atol=5e-2, rtol=5e-2), \
        float(jnp.max(jnp.abs(gates_bf - ref_gates)))
    assert jnp.allclose(out_bf, ref_out, atol=5e-2, rtol=5e-2), \
        float(jnp.max(jnp.abs(out_bf - ref_out)))

    print("KERNEL_OK")
</pallas_src>

<mosaic_0001>
module attributes {stable_mosaic.version = 11 : i64} {
  func.func @moe_kernel(%arg0: i32, %arg1: memref<8x32xf32, #tpu.memory_space<vmem>>, %arg2: memref<32x640xf32, #tpu.memory_space<vmem>>, %arg3: memref<1x640xf32, #tpu.memory_space<vmem>>, %arg4: memref<128x128xf32, #tpu.memory_space<vmem>>, %arg5: memref<1x128xf32, #tpu.memory_space<vmem>>, %arg6: memref<128x512xf32, #tpu.memory_space<vmem>>, %arg7: memref<640x128xf32, #tpu.memory_space<vmem>>, %arg8: memref<8x128xf32, #tpu.memory_space<vmem>>, %arg9: memref<8x128xf32, #tpu.memory_space<vmem>>) attributes {dimension_semantics = [#tpu.dimension_semantics<parallel>], iteration_bounds = array<i64: 2>, scalar_prefetch = 0 : i64, scratch_operands = 0 : i64, tpu.core_type = #tpu.core_type<tc>, window_params = [{transform_indices = @transform_0, window_bounds = array<i64: 8, 32>}, {pipeline_mode = #tpu.pipeline_mode<synchronous>, transform_indices = @transform_1, window_bounds = array<i64: 32, 640>}, {pipeline_mode = #tpu.pipeline_mode<synchronous>, transform_indices = @transform_2, window_bounds = array<i64: 1, 640>}, {pipeline_mode = #tpu.pipeline_mode<synchronous>, transform_indices = @transform_3, window_bounds = array<i64: 128, 128>}, {pipeline_mode = #tpu.pipeline_mode<synchronous>, transform_indices = @transform_4, window_bounds = array<i64: 1, 128>}, {pipeline_mode = #tpu.pipeline_mode<synchronous>, transform_indices = @transform_5, window_bounds = array<i64: 128, 512>}, {pipeline_mode = #tpu.pipeline_mode<synchronous>, transform_indices = @transform_6, window_bounds = array<i64: 640, 128>}, {transform_indices = @transform_7, window_bounds = array<i64: 8, 128>}, {transform_indices = @transform_8, window_bounds = array<i64: 8, 128>}]} {
    %c0 = arith.constant 0 : index
    %c0_0 = arith.constant 0 : index
    %0 = vector.load %arg1[%c0, %c0_0] : memref<8x32xf32, #tpu.memory_space<vmem>>, vector<8x32xf32>
    %c0_1 = arith.constant 0 : index
    %c0_2 = arith.constant 0 : index
    %1 = vector.load %arg2[%c0_1, %c0_2] : memref<32x640xf32, #tpu.memory_space<vmem>>, vector<32x640xf32>
    %cst = arith.constant dense<0.000000e+00> : vector<8x640xf32>
    %2 = tpu.matmul %0, %1, %cst {dimension_numbers = #tpu.dot_dimension_numbers<[1], [0], [0], [1], [0, 0, 1, 1], [], []>} : vector<8x32xf32>, vector<32x640xf32>, vector<8x640xf32> -> vector<8x640xf32>
    %c0_3 = arith.constant 0 : index
    %c0_4 = arith.constant 0 : index
    %3 = vector.load %arg3[%c0_3, %c0_4] : memref<1x640xf32, #tpu.memory_space<vmem>>, vector<1x640xf32>
    %4 = vector.broadcast %3 : vector<1x640xf32> to vector<8x640xf32>
    %5 = arith.addf %2, %4 : vector<8x640xf32>
    %cst_5 = arith.constant 0.000000e+00 : f32
    %6 = vector.broadcast %cst_5 : f32 to vector<8x640xf32>
    %7 = arith.maximumf %5, %6 : vector<8x640xf32>
    %8 = vector.extract_strided_slice %7 {offsets = [0, 0], sizes = [8, 512], strides = [1, 1]} : vector<8x640xf32> to vector<8x512xf32>
    %9 = vector.extract_strided_slice %7 {offsets = [0, 512], sizes = [8, 128], strides = [1, 1]} : vector<8x640xf32> to vector<8x128xf32>
    %c0_6 = arith.constant 0 : index
    %c0_7 = arith.constant 0 : index
    %10 = vector.load %arg4[%c0_6, %c0_7] : memref<128x128xf32, #tpu.memory_space<vmem>>, vector<128x128xf32>
    %cst_8 = arith.constant dense<0.000000e+00> : vector<8x128xf32>
    %11 = tpu.matmul %9, %10, %cst_8 {dimension_numbers = #tpu.dot_dimension_numbers<[1], [0], [0], [1], [0, 0, 1, 1], [], []>} : vector<8x128xf32>, vector<128x128xf32>, vector<8x128xf32> -> vector<8x128xf32>
    %c0_9 = arith.constant 0 : index
    %c0_10 = arith.constant 0 : index
    %12 = vector.load %arg5[%c0_9, %c0_10] : memref<1x128xf32, #tpu.memory_space<vmem>>, vector<1x128xf32>
    %13 = vector.broadcast %12 : vector<1x128xf32> to vector<8x128xf32>
    %14 = arith.addf %11, %13 : vector<8x128xf32>
    %15 = tpu.iota {dimensions = array<i32: 1>} : vector<8x128xi32>
    %c4_i32 = arith.constant 4 : i32
    %16 = vector.broadcast %c4_i32 : i32 to vector<8x128xi32>
    %17 = arith.cmpi slt, %15, %16 : vector<8x128xi32>
    %cst_11 = arith.constant 0xFF800000 : f32
    %18 = vector.broadcast %cst_11 : f32 to vector<8x128xf32>
    %19 = arith.select %17, %14, %18 : vector<8x128xi1>, vector<8x128xf32>
    %cst_12 = arith.constant dense<0xFF800000> : vector<8xf32>
    %20 = vector.multi_reduction <maximumf>, %19, %cst_12 [1] : vector<8x128xf32> to vector<8xf32>
    %21 = vector.shape_cast %20 : vector<8xf32> to vector<8x1xf32>
    %22 = vector.broadcast %21 : vector<8x1xf32> to vector<8x128xf32>
    %23 = arith.subf %14, %22 : vector<8x128xf32>
    %24 = math.exp %23 : vector<8x128xf32>
    %cst_13 = arith.constant 0.000000e+00 : f32
    %25 = vector.broadcast %cst_13 : f32 to vector<8x128xf32>
    %26 = arith.select %17, %24, %25 : vector<8x128xi1>, vector<8x128xf32>
    %cst_14 = arith.constant dense<0.000000e+00> : vector<8xf32>
    %27 = vector.multi_reduction <add>, %26, %cst_14 [1] : vector<8x128xf32> to vector<8xf32>
    %28 = vector.shape_cast %27 : vector<8xf32> to vector<8x1xf32>
    %29 = tpu.reciprocal %28 {approx = true} : vector<8x1xf32> -> vector<8x1xf32>
    %30 = arith.mulf %28, %29 : vector<8x1xf32>
    %cst_15 = arith.constant 2.000000e+00 : f32
    %31 = vector.broadcast %cst_15 : f32 to vector<8x1xf32>
    %32 = arith.subf %31, %30 : vector<8x1xf32>
    %33 = arith.mulf %29, %32 : vector<8x1xf32>
    %34 = vector.broadcast %33 : vector<8x1xf32> to vector<8x128xf32>
    %35 = arith.mulf %26, %34 : vector<8x128xf32>
    %c0_16 = arith.constant 0 : index
    %c0_17 = arith.constant 0 : index
    %36 = vector.load %arg6[%c0_16, %c0_17] : memref<128x512xf32, #tpu.memory_space<vmem>>, vector<128x512xf32>
    %cst_18 = arith.constant dense<0.000000e+00> : vector<8x512xf32>
    %37 = tpu.matmul %35, %36, %cst_18 {dimension_numbers = #tpu.dot_dimension_numbers<[1], [0], [0], [1], [0, 0, 1, 1], [], []>} : vector<8x128xf32>, vector<128x512xf32>, vector<8x512xf32> -> vector<8x512xf32>
    %38 = arith.mulf %8, %37 : vector<8x512xf32>
    %39 = tpu.concatenate %38, %35 in 1 : vector<8x512xf32>, vector<8x128xf32> -> vector<8x640xf32>
    %c0_19 = arith.constant 0 : index
    %c0_20 = arith.constant 0 : index
    %40 = vector.load %arg7[%c0_19, %c0_20] : memref<640x128xf32, #tpu.memory_space<vmem>>, vector<640x128xf32>
    %cst_21 = arith.constant dense<0.000000e+00> : vector<8x128xf32>
    %41 = tpu.matmul %39, %40, %cst_21 {dimension_numbers = #tpu.dot_dimension_numbers<[1], [0], [0], [1], [0, 0, 1, 1], [], []>} : vector<8x640xf32>, vector<640x128xf32>, vector<8x128xf32> -> vector<8x128xf32>
    %c0_22 = arith.constant 0 : index
    %c0_23 = arith.constant 0 : index
    %42 = vector.load %arg8[%c0_22, %c0_23] : memref<8x128xf32, #tpu.memory_space<vmem>>, vector<8x128xf32>
    tpu.vector_store %arg8[%c0_22, %c0_23], %41 {strides = array<i32>} : memref<8x128xf32, #tpu.memory_space<vmem>>, vector<8x128xf32>,
    %c0_24 = arith.constant 0 : index
    %c0_25 = arith.constant 0 : index
    %43 = vector.load %arg9[%c0_24, %c0_25] : memref<8x128xf32, #tpu.memory_space<vmem>>, vector<8x128xf32>
    tpu.vector_store %arg9[%c0_24, %c0_25], %35 {strides = array<i32>} : memref<8x128xf32, #tpu.memory_space<vmem>>, vector<8x128xf32>,
    return
  }
  func.func @transform_0(%arg0: i32) -> (i32, i32) {
    %c0_i32 = arith.constant 0 : i32
    %c0_i32_0 = arith.constant 0 : i32
    return %arg0, %c0_i32 : i32, i32
  }
  func.func @transform_1(%arg0: i32) -> (i32, i32) {
    %c0_i32 = arith.constant 0 : i32
    %c0_i32_0 = arith.constant 0 : i32
    %c0_i32_1 = arith.constant 0 : i32
    return %c0_i32, %c0_i32_0 : i32, i32
  }
  func.func @transform_2(%arg0: i32) -> (i32, i32) {
    %c0_i32 = arith.constant 0 : i32
    %c0_i32_0 = arith.constant 0 : i32
    %c0_i32_1 = arith.constant 0 : i32
    return %c0_i32, %c0_i32_0 : i32, i32
  }
  func.func @transform_3(%arg0: i32) -> (i32, i32) {
    %c0_i32 = arith.constant 0 : i32
    %c0_i32_0 = arith.constant 0 : i32
    %c0_i32_1 = arith.constant 0 : i32
    return %c0_i32, %c0_i32_0 : i32, i32
  }
  func.func @transform_4(%arg0: i32) -> (i32, i32) {
    %c0_i32 = arith.constant 0 : i32
    %c0_i32_0 = arith.constant 0 : i32
    %c0_i32_1 = arith.constant 0 : i32
    return %c0_i32, %c0_i32_0 : i32, i32
  }
  func.func @transform_5(%arg0: i32) -> (i32, i32) {
    %c0_i32 = arith.constant 0 : i32
    %c0_i32_0 = arith.constant 0 : i32
    %c0_i32_1 = arith.constant 0 : i32
    return %c0_i32, %c0_i32_0 : i32, i32
  }
  func.func @transform_6(%arg0: i32) -> (i32, i32) {
    %c0_i32 = arith.constant 0 : i32
    %c0_i32_0 = arith.constant 0 : i32
    %c0_i32_1 = arith.constant 0 : i32
    return %c0_i32, %c0_i32_0 : i32, i32
  }
  func.func @transform_7(%arg0: i32) -> (i32, i32) {
    %c0_i32 = arith.constant 0 : i32
    %c0_i32_0 = arith.constant 0 : i32
    return %arg0, %c0_i32 : i32, i32
  }
  func.func @transform_8(%arg0: i32) -> (i32, i32) {
    %c0_i32 = arith.constant 0 : i32
    %c0_i32_0 = arith.constant 0 : i32
    return %arg0, %c0_i32 : i32, i32
  }
}

module attributes {stable_mosaic.version = 11 : i64} {
  func.func @moe_kernel(%arg0: i32, %arg1: memref<8x32xf32, #tpu.memory_space<vmem>>, %arg2: memref<32x640xf32, #tpu.memory_space<vmem>>, %arg3: memref<1x640xf32, #tpu.memory_space<vmem>>, %arg4: memref<128x128xf32, #tpu.memory_space<vmem>>, %arg5: memref<1x128xf32, #tpu.memory_space<vmem>>, %arg6: memref<128x512xf32, #tpu.memory_space<vmem>>, %arg7: memref<640x128xf32, #tpu.memory_space<vmem>>, %arg8: memref<8x128xf32, #tpu.memory_space<vmem>>, %arg9: memref<8x128xf32, #tpu.memory_space<vmem>>) attributes {dimension_semantics = [#tpu.dimension_semantics<parallel>], iteration_bounds = array<i64: 2>, scalar_prefetch = 0 : i64, scratch_operands = 0 : i64, tpu.core_type = #tpu.core_type<tc>, window_params = [{transform_indices = @transform_0, window_bounds = array<i64: 8, 32>}, {pipeline_mode = #tpu.pipeline_mode<synchronous>, transform_indices = @transform_1, window_bounds = array<i64: 32, 640>}, {pipeline_mode = #tpu.pipeline_mode<synchronous>, transform_indices = @transform_2, window_bounds = array<i64: 1, 640>}, {pipeline_mode = #tpu.pipeline_mode<synchronous>, transform_indices = @transform_3, window_bounds = array<i64: 128, 128>}, {pipeline_mode = #tpu.pipeline_mode<synchronous>, transform_indices = @transform_4, window_bounds = array<i64: 1, 128>}, {pipeline_mode = #tpu.pipeline_mode<synchronous>, transform_indices = @transform_5, window_bounds = array<i64: 128, 512>}, {pipeline_mode = #tpu.pipeline_mode<synchronous>, transform_indices = @transform_6, window_bounds = array<i64: 640, 128>}, {transform_indices = @transform_7, window_bounds = array<i64: 8, 128>}, {transform_indices = @transform_8, window_bounds = array<i64: 8, 128>}]} {
    %c0 = arith.constant 0 : index
    %c0_0 = arith.constant 0 : index
    %0 = vector.load %arg1[%c0, %c0_0] : memref<8x32xf32, #tpu.memory_space<vmem>>, vector<8x32xf32>
    %c0_1 = arith.constant 0 : index
    %c0_2 = arith.constant 0 : index
    %1 = vector.load %arg2[%c0_1, %c0_2] : memref<32x640xf32, #tpu.memory_space<vmem>>, vector<32x640xf32>
    %cst = arith.constant dense<0.000000e+00> : vector<8x640xf32>
    %2 = tpu.matmul %0, %1, %cst {dimension_numbers = #tpu.dot_dimension_numbers<[1], [0], [0], [1], [0, 0, 1, 1], [], []>} : vector<8x32xf32>, vector<32x640xf32>, vector<8x640xf32> -> vector<8x640xf32>
    %c0_3 = arith.constant 0 : index
    %c0_4 = arith.constant 0 : index
    %3 = vector.load %arg3[%c0_3, %c0_4] : memref<1x640xf32, #tpu.memory_space<vmem>>, vector<1x640xf32>
    %4 = vector.broadcast %3 : vector<1x640xf32> to vector<8x640xf32>
    %5 = arith.addf %2, %4 : vector<8x640xf32>
    %cst_5 = arith.constant 0.000000e+00 : f32
    %6 = vector.broadcast %cst_5 : f32 to vector<8x640xf32>
    %7 = arith.maximumf %5, %6 : vector<8x640xf32>
    %8 = vector.extract_strided_slice %7 {offsets = [0, 0], sizes = [8, 512], strides = [1, 1]} : vector<8x640xf32> to vector<8x512xf32>
    %9 = vector.extract_strided_slice %7 {offsets = [0, 512], sizes = [8, 128], strides = [1, 1]} : vector<8x640xf32> to vector<8x128xf32>
    %c0_6 = arith.constant 0 : index
    %c0_7 = arith.constant 0 : index
    %10 = vector.load %arg4[%c0_6, %c0_7] : memref<128x128xf32, #tpu.memory_space<vmem>>, vector<128x128xf32>
    %cst_8 = arith.constant dense<0.000000e+00> : vector<8x128xf32>
    %11 = tpu.matmul %9, %10, %cst_8 {dimension_numbers = #tpu.dot_dimension_numbers<[1], [0], [0], [1], [0, 0, 1, 1], [], []>} : vector<8x128xf32>, vector<128x128xf32>, vector<8x128xf32> -> vector<8x128xf32>
    %c0_9 = arith.constant 0 : index
    %c0_10 = arith.constant 0 : index
    %12 = vector.load %arg5[%c0_9, %c0_10] : memref<1x128xf32, #tpu.memory_space<vmem>>, vector<1x128xf32>
    %13 = vector.broadcast %12 : vector<1x128xf32> to vector<8x128xf32>
    %14 = arith.addf %11, %13 : vector<8x128xf32>
    %15 = tpu.iota {dimensions = array<i32: 1>} : vector<8x128xi32>
    %c4_i32 = arith.constant 4 : i32
    %16 = vector.broadcast %c4_i32 : i32 to vector<8x128xi32>
    %17 = arith.cmpi slt, %15, %16 : vector<8x128xi32>
    %cst_11 = arith.constant 0xFF800000 : f32
    %18 = vector.broadcast %cst_11 : f32 to vector<8x128xf32>
    %19 = arith.select %17, %14, %18 : vector<8x128xi1>, vector<8x128xf32>
    %cst_12 = arith.constant dense<0xFF800000> : vector<8xf32>
    %20 = vector.multi_reduction <maximumf>, %19, %cst_12 [1] : vector<8x128xf32> to vector<8xf32>
    %21 = vector.shape_cast %20 : vector<8xf32> to vector<8x1xf32>
    %22 = vector.broadcast %21 : vector<8x1xf32> to vector<8x128xf32>
    %23 = arith.subf %14, %22 : vector<8x128xf32>
    %24 = math.exp %23 : vector<8x128xf32>
    %cst_13 = arith.constant 0.000000e+00 : f32
    %25 = vector.broadcast %cst_13 : f32 to vector<8x128xf32>
    %26 = arith.select %17, %24, %25 : vector<8x128xi1>, vector<8x128xf32>
    %cst_14 = arith.constant dense<0.000000e+00> : vector<8xf32>
    %27 = vector.multi_reduction <add>, %26, %cst_14 [1] : vector<8x128xf32> to vector<8xf32>
    %28 = vector.shape_cast %27 : vector<8xf32> to vector<8x1xf32>
    %29 = tpu.reciprocal %28 {approx = true} : vector<8x1xf32> -> vector<8x1xf32>
    %30 = arith.mulf %28, %29 : vector<8x1xf32>
    %cst_15 = arith.constant 2.000000e+00 : f32
    %31 = vector.broadcast %cst_15 : f32 to vector<8x1xf32>
    %32 = arith.subf %31, %30 : vector<8x1xf32>
    %33 = arith.mulf %29, %32 : vector<8x1xf32>
    %34 = vector.broadcast %33 : vector<8x1xf32> to vector<8x128xf32>
    %35 = arith.mulf %26, %34 : vector<8x128xf32>
    %c0_16 = arith.constant 0 : index
    %c0_17 = arith.constant 0 : index
    %36 = vector.load %arg6[%c0_16, %c0_17] : memref<128x512xf32, #tpu.memory_space<vmem>>, vector<128x512xf32>
    %cst_18 = arith.constant dense<0.000000e+00> : vector<8x512xf32>
    %37 = tpu.matmul %35, %36, %cst_18 {dimension_numbers = #tpu.dot_dimension_numbers<[1], [0], [0], [1], [0, 0, 1, 1], [], []>} : vector<8x128xf32>, vector<128x512xf32>, vector<8x512xf32> -> vector<8x512xf32>
    %38 = arith.mulf %8, %37 : vector<8x512xf32>
    %39 = tpu.concatenate %38, %35 in 1 : vector<8x512xf32>, vector<8x128xf32> -> vector<8x640xf32>
    %c0_19 = arith.constant 0 : index
    %c0_20 = arith.constant 0 : index
    %40 = vector.load %arg7[%c0_19, %c0_20] : memref<640x128xf32, #tpu.memory_space<vmem>>, vector<640x128xf32>
    %cst_21 = arith.constant dense<0.000000e+00> : vector<8x128xf32>
    %41 = tpu.matmul %39, %40, %cst_21 {dimension_numbers = #tpu.dot_dimension_numbers<[1], [0], [0], [1], [0, 0, 1, 1], [], []>} : vector<8x640xf32>, vector<640x128xf32>, vector<8x128xf32> -> vector<8x128xf32>
    %c0_22 = arith.constant 0 : index
    %c0_23 = arith.constant 0 : index
    %42 = vector.load %arg8[%c0_22, %c0_23] : memref<8x128xf32, #tpu.memory_space<vmem>>, vector<8x128xf32>
    tpu.vector_store %arg8[%c0_22, %c0_23], %41 {strides = array<i32>} : memref<8x128xf32, #tpu.memory_space<vmem>>, vector<8x128xf32>,
    %c0_24 = arith.constant 0 : index
    %c0_25 = arith.constant 0 : index
    %43 = vector.load %arg9[%c0_24, %c0_25] : memref<8x128xf32, #tpu.memory_space<vmem>>, vector<8x128xf32>
    tpu.vector_store %arg9[%c0_24, %c0_25], %35 {strides = array<i32>} : memref<8x128xf32, #tpu.memory_space<vmem>>, vector<8x128xf32>,
    return
  }
  func.func @transform_0(%arg0: i32) -> (i32, i32) {
    %c0_i32 = arith.constant 0 : i32
    %c0_i32_0 = arith.constant 0 : i32
    return %arg0, %c0_i32 : i32, i32
  }
  func.func @transform_1(%arg0: i32) -> (i32, i32) {
    %c0_i32 = arith.constant 0 : i32
    %c0_i32_0 = arith.constant 0 : i32
    %c0_i32_1 = arith.constant 0 : i32
    return %c0_i32, %c0_i32_0 : i32, i32
  }
  func.func @transform_2(%arg0: i32) -> (i32, i32) {
    %c0_i32 = arith.constant 0 : i32
    %c0_i32_0 = arith.constant 0 : i32
    %c0_i32_1 = arith.constant 0 : i32
    return %c0_i32, %c0_i32_0 : i32, i32
  }
  func.func @transform_3(%arg0: i32) -> (i32, i32) {
    %c0_i32 = arith.constant 0 : i32
    %c0_i32_0 = arith.constant 0 : i32
    %c0_i32_1 = arith.constant 0 : i32
    return %c0_i32, %c0_i32_0 : i32, i32
  }
  func.func @transform_4(%arg0: i32) -> (i32, i32) {
    %c0_i32 = arith.constant 0 : i32
    %c0_i32_0 = arith.constant 0 : i32
    %c0_i32_1 = arith.constant 0 : i32
    return %c0_i32, %c0_i32_0 : i32, i32
  }
  func.func @transform_5(%arg0: i32) -> (i32, i32) {
    %c0_i32 = arith.constant 0 : i32
    %c0_i32_0 = arith.constant 0 : i32
    %c0_i32_1 = arith.constant 0 : i32
    return %c0_i32, %c0_i32_0 : i32, i32
  }
  func.func @transform_6(%arg0: i32) -> (i32, i32) {
    %c0_i32 = arith.constant 0 : i32
    %c0_i32_0 = arith.constant 0 : i32
    %c0_i32_1 = arith.constant 0 : i32
    return %c0_i32, %c0_i32_0 : i32, i32
  }
  func.func @transform_7(%arg0: i32) -> (i32, i32) {
    %c0_i32 = arith.constant 0 : i32
    %c0_i32_0 = arith.constant 0 : i32
    return %arg0, %c0_i32 : i32, i32
  }
  func.func @transform_8(%arg0: i32) -> (i32, i32) {
    %c0_i32 = arith.constant 0 : i32
    %c0_i32_0 = arith.constant 0 : i32
    return %arg0, %c0_i32 : i32, i32
  }
}

</mosaic_0001>

<llo_original>
// kernel: tpu_custom_call.1
$region0: #{tpu_custom_call.1}
  #allocation0 [shape = 'u32[]', space=smem, size = 0x4, offset = 0x4, fixed_abs, tag = 'smem constant byte address 0x4 - core index']
  #allocation1 [shape = 'u32[144,128]{1,0:T(1,128)}', space=vmem, size = 0x12000, scoped, tag = 'internal scratch']
  %s0 = inlined_call_operand.hbm [shape: f32[16,32], index: 0, kind: input, shape index: {}]
  %s1 = inlined_call_operand.hbm [shape: f32[32,640], index: 1, kind: input, shape index: {}]
  %s2 = inlined_call_operand.hbm [shape: f32[1,640], index: 2, kind: input, shape index: {}]
  %s3 = inlined_call_operand.hbm [shape: f32[128,128], index: 3, kind: input, shape index: {}]
  %s4 = inlined_call_operand.vmem [shape: f32[1,128], index: 4, kind: input, shape index: {}]
  %s5 = inlined_call_operand.hbm [shape: f32[128,512], index: 5, kind: input, shape index: {}]
  %s6 = inlined_call_operand.hbm [shape: f32[640,128], index: 6, kind: input, shape index: {}]
  %s7 = inlined_call_operand.hbm [shape: f32[16,128], index: 7, kind: output, shape index: {0}]
  %s8 = inlined_call_operand.hbm [shape: f32[16,128], index: 8, kind: output, shape index: {1}]
  %9 = xla_tuple %s7, %s8
  %s10 = sld [smem:[#allocation0]]
  $region93: #{tpu_custom_call.1} parent=0
    _
  %s12 = ssub.s32 1, %s10
  %s13 = scalar_select 0, %s12, %s10
  $region1: #{tpu_custom_call.1} parent=0
    #allocation2 [shape = 'u8[8192]{0}', space=vmem, size = 0x2000, scoped, tag = 'input window, operand 0']
    #allocation3 [shape = 's32[2]{0}', space=sflag, size = 0x8, scoped, tag = 'scoped memory for tpu_custom_call.1']
    #allocation4 [shape = 's32[2]{0}', space=sflag, size = 0x8, scoped, tag = 'scoped memory for tpu_custom_call.1']
    #allocation5 [shape = 'u8[81920]{0}', space=vmem, size = 0x14000, scoped, tag = 'input window, operand 1, single buffered']
    #allocation6 [shape = 's32[1]{0}', space=sflag, size = 0x4, scoped, tag = 'scoped memory for tpu_custom_call.1']
    #allocation7 [shape = 'u8[2560]{0}', space=vmem, size = 0xc00, scoped, tag = 'input window, operand 2, single buffered']
    #allocation8 [shape = 'u8[65536]{0}', space=vmem, size = 0x10000, scoped, tag = 'input window, operand 3, single buffered']
    #allocation9 [shape = 's32[1]{0}', space=sflag, size = 0x4, scoped, tag = 'scoped memory for tpu_custom_call.1']
    #allocation10 [shape = 'u8[262144]{0}', space=vmem, size = 0x40000, scoped, tag = 'input window, operand 5, single buffered']
    #allocation11 [shape = 'u8[327680]{0}', space=vmem, size = 0x50000, scoped, tag = 'input window, operand 6, single buffered']
    #allocation12 [shape = 's32[1]{0}', space=sflag, size = 0x4, scoped, tag = 'scoped memory for tpu_custom_call.1']
    #allocation13 [shape = 'u8[8192]{0}', space=vmem, size = 0x2000, scoped, tag = 'output window, operand 0']
    #allocation14 [shape = 'u8[8192]{0}', space=vmem, size = 0x2000, scoped, tag = 'output window, operand 1']
    #allocation15 [shape = 's32[2]{0}', space=sflag, size = 0x8, scoped, tag = 'scoped memory for tpu_custom_call.1']
    %14 = vsyncpa [#allocation3], 0
    %s15 = scalar_lea.sflag [#allocation3], 1
    %16 = vsyncpa %s15, 0
    %17 = vsyncpa [#allocation6], 0
    %18 = vsyncpa [#allocation9], 0
    %19 = vsyncpa [#allocation12], 0
    %20 = vsyncpa [#allocation4], 0
    %s21 = scalar_lea.sflag [#allocation4], 1
    %22 = vsyncpa %s21, 0
    %23 = vsyncpa [#allocation15], 0
    %s24 = scalar_lea.sflag [#allocation15], 1
    %25 = vsyncpa %s24, 0
    loop: start=0, step=1, limit=4
    $region2: #{tpu_custom_call.1} parent=1 // loop_pre_header
      _
    $region3: #{tpu_custom_call.1} parent=1 // loop_header
      %s27 = sphi 0, %s31
      %p28 = scmp.ge.s32.totalorder %s27, 4
      %s37 = sphi 0, %s39
      %s40 = sphi 0, %s37
      %s41 = sphi 0, %s40
      %s57 = sphi 0, %s41
      %s61 = sphi 0, %s61
      %s63 = sphi 0, %s61
      %s64 = sphi 0, %s63
      %s78 = sphi 0, %s64
      %s82 = sphi 0, %s82
      %s84 = sphi 0, %s82
      %s85 = sphi 0, %s84
      %s99 = sphi 0, %s85
      %s103 = sphi 0, %s103
      %s105 = sphi 0, %s103
      %s106 = sphi 0, %s105
      %s120 = sphi 0, %s106
      %s124 = sphi 0, %s124
      %s126 = sphi 0, %s124
      %s127 = sphi 0, %s126
      %s141 = sphi 0, %s127
      %s145 = sphi 0, %s145
      %s147 = sphi 0, %s145
      %s148 = sphi 0, %s147
      %s162 = sphi 0, %s148
      %s166 = sphi 0, %s166
      %s168 = sphi 0, %s166
      %s169 = sphi 0, %s168
      %s183 = sphi 0, %s169
      %s189 = sphi 0, %s191
      %s192 = sphi 0, %s189
      %s193 = sphi 0, %s192
      %s209 = sphi 0, %s193
      %s215 = sphi 0, %s217
      %s218 = sphi 0, %s215
      %s219 = sphi 0, %s218
      %s235 = sphi 0, %s219
    $region4: #{tpu_custom_call.1} parent=1 // loop_header_branch
      %30 = sbr.rel (%p28) target = $region8
    $region5: #{tpu_custom_call.1} parent=1 // loop_body
      %s32 = ssub.s32 %s27, 1
      %s33 = ssub.s32 %s27, 2
      %s34 = sadd.s32 %s27, 1
      %s35 = ssub.s32 %s27, %s34
      %p36 = scmp.eq.s32.totalorder %s35, 0
      %s38 = sadd.s32 %s37, 1
      %s39 = scalar_select %p36, %s37, %s38
      %p42 = pneg %p36
      %p43 = scmp.eq.s32.totalorder %s27, 1
      %p44 = por %p42, %p43
      %p45 = scmp.ne.s32.totalorder %s37, %s40
      %p46 = scmp.eq.s32.totalorder %s27, 0
      %p47 = por %p45, %p46
      %p48 = scmp.ne.s32.totalorder %s37, %s40
      %p49 = scmp.eq.s32.totalorder %s32, 1
      %p50 = por %p48, %p49
      %p51 = scmp.ne.s32.totalorder %s40, %s41
      %p52 = scmp.eq.s32.totalorder %s32, 0
      %p53 = por %p51, %p52
      %p54 = scmp.ne.s32.totalorder %s40, %s41
      %p55 = scmp.eq.s32.totalorder %s33, 1
      %p56 = por %p54, %p55
      %p58 = scmp.ne.s32.totalorder %s41, %s57
      %p59 = scmp.eq.s32.totalorder %s33, 0
      %p60 = por %p58, %p59
      %s62 = sadd.s32 %s61, 1
      %p65 = scmp.eq.s32.totalorder %s27, 1
      %p66 = scmp.ne.s32.totalorder %s61, %s63
      %p67 = scmp.eq.s32.totalorder %s27, 0
      %p68 = por %p66, %p67
      %p69 = scmp.ne.s32.totalorder %s61, %s63
      %p70 = scmp.eq.s32.totalorder %s32, 1
      %p71 = por %p69, %p70
      %p72 = scmp.ne.s32.totalorder %s63, %s64
      %p73 = scmp.eq.s32.totalorder %s32, 0
      %p74 = por %p72, %p73
      %p75 = scmp.ne.s32.totalorder %s63, %s64
      %p76 = scmp.eq.s32.totalorder %s33, 1
      %p77 = por %p75, %p76
      %p79 = scmp.ne.s32.totalorder %s64, %s78
      %p80 = scmp.eq.s32.totalorder %s33, 0
      %p81 = por %p79, %p80
      %s83 = sadd.s32 %s82, 1
      %p86 = scmp.eq.s32.totalorder %s27, 1
      %p87 = scmp.ne.s32.totalorder %s82, %s84
      %p88 = scmp.eq.s32.totalorder %s27, 0
      %p89 = por %p87, %p88
      %p90 = scmp.ne.s32.totalorder %s82, %s84
      %p91 = scmp.eq.s32.totalorder %s32, 1
      %p92 = por %p90, %p91
      %p93 = scmp.ne.s32.totalorder %s84, %s85
      %p94 = scmp.eq.s32.totalorder %s32, 0
      %p95 = por %p93, %p94
      %p96 = scmp.ne.s32.totalorder %s84, %s85
      %p97 = scmp.eq.s32.totalorder %s33, 1
      %p98 = por %p96, %p97
      %p100 = scmp.ne.s32.totalorder %s85, %s99
      %p101 = scmp.eq.s32.totalorder %s33, 0
      %p102 = por %p100, %p101
      %s104 = sadd.s32 %s103, 1
      %p107 = scmp.eq.s32.totalorder %s27, 1
      %p108 = scmp.ne.s32.totalorder %s103, %s105
      %p109 = scmp.eq.s32.totalorder %s27, 0
      %p110 = por %p108, %p109
      %p111 = scmp.ne.s32.totalorder %s103, %s105
      %p112 = scmp.eq.s32.totalorder %s32, 1
      %p113 = por %p111, %p112
      %p114 = scmp.ne.s32.totalorder %s105, %s106
      %p115 = scmp.eq.s32.totalorder %s32, 0
      %p116 = por %p114, %p115
      %p117 = scmp.ne.s32.totalorder %s105, %s106
      %p118 = scmp.eq.s32.totalorder %s33, 1
      %p119 = por %p117, %p118
      %p121 = scmp.ne.s32.totalorder %s106, %s120
      %p122 = scmp.eq.s32.totalorder %s33, 0
      %p123 = por %p121, %p122
      %s125 = sadd.s32 %s124, 1
      %p128 = scmp.eq.s32.totalorder %s27, 1
      %p129 = scmp.ne.s32.totalorder %s124, %s126
      %p130 = scmp.eq.s32.totalorder %s27, 0
      %p131 = por %p129, %p130
      %p132 = scmp.ne.s32.totalorder %s124, %s126
      %p133 = scmp.eq.s32.totalorder %s32, 1
      %p134 = por %p132, %p133
      %p135 = scmp.ne.s32.totalorder %s126, %s127
      %p136 = scmp.eq.s32.totalorder %s32, 0
      %p137 = por %p135, %p136
      %p138 = scmp.ne.s32.totalorder %s126, %s127
      %p139 = scmp.eq.s32.totalorder %s33, 1
      %p140 = por %p138, %p139
      %p142 = scmp.ne.s32.totalorder %s127, %s141
      %p143 = scmp.eq.s32.totalorder %s33, 0
      %p144 = por %p142, %p143
      %s146 = sadd.s32 %s145, 1
      %p149 = scmp.eq.s32.totalorder %s27, 1
      %p150 = scmp.ne.s32.totalorder %s145, %s147
      %p151 = scmp.eq.s32.totalorder %s27, 0
      %p152 = por %p150, %p151
      %p153 = scmp.ne.s32.totalorder %s145, %s147
      %p154 = scmp.eq.s32.totalorder %s32, 1
      %p155 = por %p153, %p154
      %p156 = scmp.ne.s32.totalorder %s147, %s148
      %p157 = scmp.eq.s32.totalorder %s32, 0
      %p158 = por %p156, %p157
      %p159 = scmp.ne.s32.totalorder %s147, %s148
      %p160 = scmp.eq.s32.totalorder %s33, 1
      %p161 = por %p159, %p160
      %p163 = scmp.ne.s32.totalorder %s148, %s162
      %p164 = scmp.eq.s32.totalorder %s33, 0
      %p165 = por %p163, %p164
      %s167 = sadd.s32 %s166, 1
      %p170 = scmp.eq.s32.totalorder %s27, 1
      %p171 = scmp.ne.s32.totalorder %s166, %s168
      %p172 = scmp.eq.s32.totalorder %s27, 0
      %p173 = por %p171, %p172
      %p174 = scmp.ne.s32.totalorder %s166, %s168
      %p175 = scmp.eq.s32.totalorder %s32, 1
      %p176 = por %p174, %p175
      %p177 = scmp.ne.s32.totalorder %s168, %s169
      %p178 = scmp.eq.s32.totalorder %s32, 0
      %p179 = por %p177, %p178
      %p180 = scmp.ne.s32.totalorder %s168, %s169
      %p181 = scmp.eq.s32.totalorder %s33, 1
      %p182 = por %p180, %p181
      %p184 = scmp.ne.s32.totalorder %s169, %s183
      %p185 = scmp.eq.s32.totalorder %s33, 0
      %p186 = por %p184, %p185
      %s187 = ssub.s32 %s27, %s34
      %p188 = scmp.eq.s32.totalorder %s187, 0
      %s190 = sadd.s32 %s189, 1
      %s191 = scalar_select %p188, %s189, %s190
      %p194 = pneg %p188
      %p195 = scmp.eq.s32.totalorder %s27, 1
      %p196 = por %p194, %p195
      %p197 = scmp.ne.s32.totalorder %s189, %s192
      %p198 = scmp.eq.s32.totalorder %s27, 0
      %p199 = por %p197, %p198
      %p200 = scmp.ne.s32.totalorder %s189, %s192
      %p201 = scmp.eq.s32.totalorder %s32, 1
      %p202 = por %p200, %p201
      %p203 = scmp.ne.s32.totalorder %s192, %s193
      %p204 = scmp.eq.s32.totalorder %s32, 0
      %p205 = por %p203, %p204
      %p206 = scmp.ne.s32.totalorder %s192, %s193
      %p207 = scmp.eq.s32.totalorder %s33, 1
      %p208 = por %p206, %p207
      %p210 = scmp.ne.s32.totalorder %s193, %s209
      %p211 = scmp.eq.s32.totalorder %s33, 0
      %p212 = por %p210, %p211
      %s213 = ssub.s32 %s27, %s34
      %p214 = scmp.eq.s32.totalorder %s213, 0
      %s216 = sadd.s32 %s215, 1
      %s217 = scalar_select %p214, %s215, %s216
      %p220 = pneg %p214
      %p221 = scmp.eq.s32.totalorder %s27, 1
      %p222 = por %p220, %p221
      %p223 = scmp.ne.s32.totalorder %s215, %s218
      %p224 = scmp.eq.s32.totalorder %s27, 0
      %p225 = por %p223, %p224
      %p226 = scmp.ne.s32.totalorder %s215, %s218
      %p227 = scmp.eq.s32.totalorder %s32, 1
      %p228 = por %p226, %p227
      %p229 = scmp.ne.s32.totalorder %s218, %s219
      %p230 = scmp.eq.s32.totalorder %s32, 0
      %p231 = por %p229, %p230
      %p232 = scmp.ne.s32.totalorder %s218, %s219
      %p233 = scmp.eq.s32.totalorder %s33, 1
      %p234 = por %p232, %p233
      %p236 = scmp.ne.s32.totalorder %s219, %s235
      %p237 = scmp.eq.s32.totalorder %s33, 0
      %p238 = por %p236, %p237
      %p239 = scmp.le.s32.totalorder 1, %s27
      %p240 = scmp.lt.s32.totalorder %s27, 3
      %p241 = pnand %p239, %p240
      %p242 = pneg %p241
      // Predicated region
      $region9: #{tpu_custom_call.1} parent=5 // pred_check
        _
      $region10: #{tpu_custom_call.1} parent=5 // pred_check_branch
        %244 = sbr.rel (%p241) target = $region12
      $region11: #{tpu_custom_call.1} parent=5 // pred_region
        %s245 = ssub.s32 %s27, 1
        // Predicated region
        $region13: #{tpu_custom_call.1} parent=11 // pred_check
          %p246 = pneg %p74
        $region14: #{tpu_custom_call.1} parent=11 // pred_check_branch
          %248 = sbr.rel (%p246) target = $region16
        $region15: #{tpu_custom_call.1} parent=11 // pred_region
          %s250 = ssub.s32 2560, 2560
          %251 = vsyncadd [#allocation6], %s250
          %s252 = sshll.u32 [#allocation5], 4
          %s253 = int_to_ptr.vmem [resolvable:$true] %s252
          %258 = dma.hbm_to_vmem [thread:$0]  %s1, 2560, %s253, [#allocation6], 640, 640, 40
        $region16: #{tpu_custom_call.1} parent=11 // pred_fallthru
          _
        // Predicated region
        $region17: #{tpu_custom_call.1} parent=11 // pred_check
          %p259 = pneg %p95
        $region18: #{tpu_custom_call.1} parent=11 // pred_check_branch
          %261 = sbr.rel (%p259) target = $region20
        $region19: #{tpu_custom_call.1} parent=11 // pred_region
          %s263 = ssub.s32 80, 80
          %264 = vsyncadd [#allocation6], %s263
          %s266 = sshll.u32 [#allocation7], 4
          %s267 = int_to_ptr.vmem [resolvable:$true] %s266
          %269 = dma.hbm_to_vmem [thread:$0]  %s2, 80, %s267, [#allocation6]
        $region20: #{tpu_custom_call.1} parent=11 // pred_fallthru
          _
        // Predicated region
        $region21: #{tpu_custom_call.1} parent=11 // pred_check
          %p270 = pneg %p116
        $region22: #{tpu_custom_call.1} parent=11 // pred_check_branch
          %272 = sbr.rel (%p270) target = $region24
        $region23: #{tpu_custom_call.1} parent=11 // pred_region
          %s274 = ssub.s32 2048, 2048
          %275 = vsyncadd [#allocation9], %s274
          %s276 = sshll.u32 [#allocation8], 4
          %s277 = int_to_ptr.vmem [resolvable:$true] %s276
          %282 = dma.hbm_to_vmem [thread:$0]  %s3, 2048, %s277, [#allocation9], 128, 128, 8
        $region24: #{tpu_custom_call.1} parent=11 // pred_fallthru
          _
        // Predicated region
        $region25: #{tpu_custom_call.1} parent=11 // pred_check
          %p283 = pneg %p137
        $region26: #{tpu_custom_call.1} parent=11 // pred_check_branch
          %285 = sbr.rel (%p283) target = $region28
        $region27: #{tpu_custom_call.1} parent=11 // pred_region
          _
        $region28: #{tpu_custom_call.1} parent=11 // pred_fallthru
          _
        // Predicated region
        $region29: #{tpu_custom_call.1} parent=11 // pred_check
          %p286 = pneg %p158
        $region30: #{tpu_custom_call.1} parent=11 // pred_check_branch
          %288 = sbr.rel (%p286) target = $region32
        $region31: #{tpu_custom_call.1} parent=11 // pred_region
          %s290 = ssub.s32 8192, 8192
          %291 = vsyncadd [#allocation9], %s290
          %s292 = sshll.u32 [#allocation10], 4
          %s293 = int_to_ptr.vmem [resolvable:$true] %s292
          %298 = dma.hbm_to_vmem [thread:$0]  %s5, 8192, %s293, [#allocation9], 512, 512, 32
        $region32: #{tpu_custom_call.1} parent=11 // pred_fallthru
          _
        // Predicated region
        $region33: #{tpu_custom_call.1} parent=11 // pred_check
          %p299 = pneg %p179
        $region34: #{tpu_custom_call.1} parent=11 // pred_check_branch
          %301 = sbr.rel (%p299) target = $region36
        $region35: #{tpu_custom_call.1} parent=11 // pred_region
          %s303 = ssub.s32 10240, 10240
          %304 = vsyncadd [#allocation12], %s303
          %s305 = sshll.u32 [#allocation11], 4
          %s306 = int_to_ptr.vmem [resolvable:$true] %s305
          %311 = dma.hbm_to_vmem [thread:$0]  %s6, 10240, %s306, [#allocation12], 128, 128, 8
        $region36: #{tpu_custom_call.1} parent=11 // pred_fallthru
          _
      $region12: #{tpu_custom_call.1} parent=5 // pred_fallthru
        _
      %p312 = scmp.lt.s32.totalorder %s27, 2
      // Predicated region
      $region37: #{tpu_custom_call.1} parent=5 // pred_check
        %p313 = pneg %p312
      $region38: #{tpu_custom_call.1} parent=5 // pred_check_branch
        %315 = sbr.rel (%p313) target = $region40
      $region39: #{tpu_custom_call.1} parent=5 // pred_region
        // Predicated region
        $region41: #{tpu_custom_call.1} parent=39 // pred_check
          %p316 = pneg %p47
        $region42: #{tpu_custom_call.1} parent=39 // pred_check_branch
          %318 = sbr.rel (%p316) target = $region44
        $region43: #{tpu_custom_call.1} parent=39 // pred_region
          %s319 = sand.u32 %s37, 1
          %s320 = scalar_lea.sflag [#allocation3], %s319
          %s321 = sand.u32 %s37, 1
          %s322 = smul.addr %s321, 8
          %s323 = scalar_lea.vmem [#allocation2], %s322
          %s325 = ssub.s32 128, 128
          %326 = vsyncadd %s320, %s325
          %s327 = smul.addr %s27, 128
          %s328 = scalar_lea.hbm %s0, %s327
          %s330 = sshll.u32 %s323, 4
          %s331 = int_to_ptr.vmem [resolvable:$true] %s330
          %333 = dma.hbm_to_vmem [thread:$0]  %s328, 128, %s331, %s320
        $region44: #{tpu_custom_call.1} parent=39 // pred_fallthru
          _
      $region40: #{tpu_custom_call.1} parent=5 // pred_fallthru
        _
      %p334 = scmp.le.s32.totalorder 1, %s27
      %p335 = scmp.lt.s32.totalorder %s27, 3
      %p336 = pnand %p334, %p335
      %p337 = pneg %p336
      // Predicated region
      $region45: #{tpu_custom_call.1} parent=5 // pred_check
        _
      $region46: #{tpu_custom_call.1} parent=5 // pred_check_branch
        %339 = sbr.rel (%p336) target = $region48
      $region47: #{tpu_custom_call.1} parent=5 // pred_region
        %s340 = ssub.s32 %s27, 1
        %s341 = sand.u32 %s40, 1
        %s342 = scalar_lea.sflag [#allocation3], %s341
        %s343 = sand.u32 %s40, 1
        %s344 = smul.addr %s343, 8
        %s345 = scalar_lea.vmem [#allocation2], %s344
        // Predicated region
        $region49: #{tpu_custom_call.1} parent=47 // pred_check
          %p346 = pneg %p53
        $region50: #{tpu_custom_call.1} parent=47 // pred_check_branch
          %348 = sbr.rel (%p346) target = $region52
        $region51: #{tpu_custom_call.1} parent=47 // pred_region
          %349 = dma.done %s342, 128
        $region52: #{tpu_custom_call.1} parent=47 // pred_fallthru
          _
        // Predicated region
        $region53: #{tpu_custom_call.1} parent=47 // pred_check
          %p350 = pneg %p74
        $region54: #{tpu_custom_call.1} parent=47 // pred_check_branch
          %352 = sbr.rel (%p350) target = $region56
        $region55: #{tpu_custom_call.1} parent=47 // pred_region
          %353 = dma.done [#allocation6], 2560
        $region56: #{tpu_custom_call.1} parent=47 // pred_fallthru
          _
        // Predicated region
        $region57: #{tpu_custom_call.1} parent=47 // pred_check
          %p354 = pneg %p95
        $region58: #{tpu_custom_call.1} parent=47 // pred_check_branch
          %356 = sbr.rel (%p354) target = $region60
        $region59: #{tpu_custom_call.1} parent=47 // pred_region
          %357 = dma.done [#allocation6], 80
        $region60: #{tpu_custom_call.1} parent=47 // pred_fallthru
          _
        // Predicated region
        $region61: #{tpu_custom_call.1} parent=47 // pred_check
          %p358 = pneg %p116
        $region62: #{tpu_custom_call.1} parent=47 // pred_check_branch
          %360 = sbr.rel (%p358) target = $region64
        $region63: #{tpu_custom_call.1} parent=47 // pred_region
          %361 = dma.done [#allocation9], 2048
        $region64: #{tpu_custom_call.1} parent=47 // pred_fallthru
          _
        // Predicated region
        $region65: #{tpu_custom_call.1} parent=47 // pred_check
          %p362 = pneg %p158
        $region66: #{tpu_custom_call.1} parent=47 // pred_check_branch
          %364 = sbr.rel (%p362) target = $region68
        $region67: #{tpu_custom_call.1} parent=47 // pred_region
          %365 = dma.done [#allocation9], 8192
        $region68: #{tpu_custom_call.1} parent=47 // pred_fallthru
          _
        // Predicated region
        $region69: #{tpu_custom_call.1} parent=47 // pred_check
          %p366 = pneg %p179
        $region70: #{tpu_custom_call.1} parent=47 // pred_check_branch
          %368 = sbr.rel (%p366) target = $region72
        $region71: #{tpu_custom_call.1} parent=47 // pred_region
          %369 = dma.done [#allocation12], 10240
        $region72: #{tpu_custom_call.1} parent=47 // pred_fallthru
          _
        %s370 = sand.u32 %s40, 1
        %s371 = scalar_lea.sflag [#allocation3], %s370
        %s372 = sand.u32 %s40, 1
        %s373 = smul.addr %s372, 8
        %s374 = scalar_lea.vmem [#allocation2], %s373
        %p375 = pneg %p53
        %p376 = pneg %p50
        %p377 = pneg %p74
        %p378 = pneg %p71
        %p379 = pneg %p95
        %p380 = pneg %p92
        %p381 = pneg %p116
        %p382 = pneg %p113
        %p383 = pneg %p137
        %p384 = pneg %p134
        %p385 = pneg %p158
        %p386 = pneg %p155
        %p387 = pneg %p179
        %p388 = pneg %p176
        %p389 = pneg %p205
        %p390 = pneg %p202
        %s391 = sand.u32 %s192, 1
        %s392 = scalar_lea.sflag [#allocation4], %s391
        %s393 = sand.u32 %s192, 1
        %s394 = smul.addr %s393, 8
        %s395 = scalar_lea.vmem [#allocation13], %s394
        %p396 = pneg %p231
        %p397 = pneg %p228
        %s398 = sand.u32 %s218, 1
        %s399 = scalar_lea.sflag [#allocation15], %s398
        %s400 = sand.u32 %s218, 1
        %s401 = smul.addr %s400, 8
        %s402 = scalar_lea.vmem [#allocation14], %s401
        %v403 = vld [vmem:[%s345] sm:$0xff]
        %v404 = vld [vmem:[#allocation5] sm:$0xff]
        %v405 = vld [vmem:[#allocation5 + $0x8] sm:$0xff]
        %v406 = vld [vmem:[#allocation5 + $0x10] sm:$0xff]
        %v407 = vld [vmem:[#allocation5 + $0x18] sm:$0xff]
        %v408 = vld [vmem:[#allocation5 + $0x20] sm:$0xff]
        %v409 = vld [vmem:[#allocation5 + $0x28] sm:$0xff]
        %v410 = vld [vmem:[#allocation5 + $0x30] sm:$0xff]
        %v411 = vld [vmem:[#allocation5 + $0x38] sm:$0xff]
        %v412 = vld [vmem:[#allocation5 + $0x40] sm:$0xff]
        %v413 = vld [vmem:[#allocation5 + $0x48] sm:$0xff]
        %v414 = vld [vmem:[#allocation5 + $0x50] sm:$0xff]
        %v415 = vld [vmem:[#allocation5 + $0x58] sm:$0xff]
        %v416 = vld [vmem:[#allocation5 + $0x60] sm:$0xff]
        %v417 = vld [vmem:[#allocation5 + $0x68] sm:$0xff]
        %v418 = vld [vmem:[#allocation5 + $0x70] sm:$0xff]
        %v419 = vld [vmem:[#allocation5 + $0x78] sm:$0xff]
        %v420 = vld [vmem:[#allocation5 + $0x80] sm:$0xff]
        %v421 = vld [vmem:[#allocation5 + $0x88] sm:$0xff]
        %v422 = vld [vmem:[#allocation5 + $0x90] sm:$0xff]
        %v423 = vld [vmem:[#allocation5 + $0x98] sm:$0xff]
        %v424 = vld [vmem:[#allocation7] sm:$0x1f]
        %v426 = vlaneseq
        %v427 = vshrl.u32 %v426, 7
        %v428 = vsub.s32 0, %v427
        %v429 = vrot.slane %v424, %v428
        %v430 = vlaneseq
        %v431 = vshrl.u32 %v430, 7
        %v432 = vsub.s32 1, %v431
        %v433 = vrot.slane %v424, %v432
        %v434 = vlaneseq
        %v435 = vshrl.u32 %v434, 7
        %v436 = vsub.s32 2, %v435
        %v437 = vrot.slane %v424, %v436
        %v438 = vlaneseq
        %v439 = vshrl.u32 %v438, 7
        %v440 = vsub.s32 3, %v439
        %v441 = vrot.slane %v424, %v440
        %v442 = vlaneseq
        %v443 = vshrl.u32 %v442, 7
        %v444 = vsub.s32 4, %v443
        %v445 = vrot.slane %v424, %v444
        %vm451 = vcmask 261120
        %v453 = vsel %vm451, %v403, 0
        %455 = vmatprep.subr.mxu0 0.0
        %456 = vmatpush1.msra.mxu0 0.0
        %457 = vmatprep.subr.mxu0 0.0
        %458 = vmatpush1.msra.mxu0 0.0
        %459 = vmatprep.subr.mxu0 0.0
        %460 = vmatpush1.msra.mxu0 0.0
        %461 = vmatprep.subr.mxu0 0.0
        %462 = vmatpush1.msra.mxu0 0.0
        %463 = vmatprep.subr.mxu0 0.0
        %464 = vmatpush1.msra.mxu0 0.0
        %465 = vmatprep.subr.mxu0 0.0
        %466 = vmatpush1.msra.mxu0 0.0
        %467 = vmatprep.subr.mxu0 0.0
        %468 = vmatpush1.msra.mxu0 0.0
        %469 = vmatprep.subr.mxu0 0.0
        %470 = vmatpush1.msra.mxu0 0.0
        %471 = vmatprep.subr.mxu0 0.0
        %472 = vmatpush1.msra.mxu0 0.0
        %473 = vmatprep.subr.mxu0 0.0
        %474 = vmatpush1.msra.mxu0 0.0
        %475 = vmatprep.subr.mxu0 0.0
        %476 = vmatpush1.msra.mxu0 0.0
        %477 = vmatprep.subr.mxu0 0.0
        %478 = vmatpush1.msra.mxu0 0.0
        %479 = vmatprep.subr.mxu0 %v420
        %480 = vmatpush1.msra.mxu0 %v419
        %481 = vmatprep.subr.mxu0 %v415
        %482 = vmatpush1.msra.mxu0 %v414
        %483 = vmatprep.subr.mxu0 %v410
        %484 = vmatpush1.msra.mxu0 %v409
        %485 = vmatprep.subr.mxu0 %v405
        %486 = vmatpush1.msra.mxu0 %v404
        %487 = vmatprep.subr.mxu0 0.0
        %488 = vmatpush2.msra.mxu0 0.0
        %489 = vmatprep.subr.mxu0 0.0
        %490 = vmatpush2.msra.mxu0 0.0
        %491 = vmatprep.subr.mxu0 0.0
        %492 = vmatpush2.msra.mxu0 0.0
        %493 = vmatprep.subr.mxu0 0.0
        %494 = vmatpush2.msra.mxu0 0.0
        %495 = vmatprep.subr.mxu0 0.0
        %496 = vmatpush2.msra.mxu0 0.0
        %497 = vmatprep.subr.mxu0 0.0
        %498 = vmatpush2.msra.mxu0 0.0
        %499 = vmatprep.subr.mxu0 0.0
        %500 = vmatpush2.msra.mxu0 0.0
        %501 = vmatprep.subr.mxu0 0.0
        %502 = vmatpush2.msra.mxu0 0.0
        %503 = vmatprep.subr.mxu0 0.0
        %504 = vmatpush2.msra.mxu0 0.0
        %505 = vmatprep.subr.mxu0 0.0
        %506 = vmatpush2.msra.mxu0 0.0
        %507 = vmatprep.subr.mxu0 0.0
        %508 = vmatpush2.msra.mxu0 0.0
        %509 = vmatprep.subr.mxu0 0.0
        %510 = vmatpush2.msra.mxu0 0.0
        %511 = vmatprep.subr.mxu0 0.0
        %512 = vmatpush2.msra.mxu0 0.0
        %513 = vmatprep.subr.mxu0 0.0
        %514 = vmatpush2.msra.mxu0 0.0
        %515 = vmatprep.subr.mxu0 0.0
        %516 = vmatpush2.msra.mxu0 0.0
        %517 = vmatprep.subr.mxu0 0.0
        %518 = vmatpush2.msra.mxu0 0.0
        %519 = vmatprep.mubr.f32.mxu0 0.0
        %520 = vmatmul.mubr.f32.gmra.mxu0 %v453
        %v521 = vpop.f32.mrf.mxu0
        %v522 = vadd.f32 %v429, %v521
        %v523 = vpop.f32.mrf.mxu0
        %v524 = vadd.f32 %v433, %v523
        %525 = vdwg.mxu0
        %526 = vmatprep.subr.mxu0 0.0
        %527 = vmatpush1.msra.mxu0 0.0
        %528 = vmatprep.subr.mxu0 0.0
        %529 = vmatpush1.msra.mxu0 0.0
        %530 = vmatprep.subr.mxu0 0.0
        %531 = vmatpush1.msra.mxu0 0.0
        %532 = vmatprep.subr.mxu0 0.0
        %533 = vmatpush1.msra.mxu0 0.0
        %534 = vmatprep.subr.mxu0 0.0
        %535 = vmatpush1.msra.mxu0 0.0
        %536 = vmatprep.subr.mxu0 0.0
        %537 = vmatpush1.msra.mxu0 0.0
        %538 = vmatprep.subr.mxu0 0.0
        %539 = vmatpush1.msra.mxu0 0.0
        %540 = vmatprep.subr.mxu0 0.0
        %541 = vmatpush1.msra.mxu0 0.0
        %542 = vmatprep.subr.mxu0 0.0
        %543 = vmatpush1.msra.mxu0 0.0
        %544 = vmatprep.subr.mxu0 0.0
        %545 = vmatpush1.msra.mxu0 0.0
        %546 = vmatprep.subr.mxu0 0.0
        %547 = vmatpush1.msra.mxu0 0.0
        %548 = vmatprep.subr.mxu0 0.0
        %549 = vmatpush1.msra.mxu0 0.0
        %550 = vmatprep.subr.mxu0 %v422
        %551 = vmatpush1.msra.mxu0 %v421
        %552 = vmatprep.subr.mxu0 %v417
        %553 = vmatpush1.msra.mxu0 %v416
        %554 = vmatprep.subr.mxu0 %v412
        %555 = vmatpush1.msra.mxu0 %v411
        %556 = vmatprep.subr.mxu0 %v407
        %557 = vmatpush1.msra.mxu0 %v406
        %558 = vmatprep.subr.mxu0 0.0
        %559 = vmatpush2.msra.mxu0 0.0
        %560 = vmatprep.subr.mxu0 0.0
        %561 = vmatpush2.msra.mxu0 0.0
        %562 = vmatprep.subr.mxu0 0.0
        %563 = vmatpush2.msra.mxu0 0.0
        %564 = vmatprep.subr.mxu0 0.0
        %565 = vmatpush2.msra.mxu0 0.0
        %566 = vmatprep.subr.mxu0 0.0
        %567 = vmatpush2.msra.mxu0 0.0
        %568 = vmatprep.subr.mxu0 0.0
        %569 = vmatpush2.msra.mxu0 0.0
        %570 = vmatprep.subr.mxu0 0.0
        %571 = vmatpush2.msra.mxu0 0.0
        %572 = vmatprep.subr.mxu0 0.0
        %573 = vmatpush2.msra.mxu0 0.0
        %574 = vmatprep.subr.mxu0 0.0
        %575 = vmatpush2.msra.mxu0 0.0
        %576 = vmatprep.subr.mxu0 0.0
        %577 = vmatpush2.msra.mxu0 0.0
        %578 = vmatprep.subr.mxu0 0.0
        %579 = vmatpush2.msra.mxu0 0.0
        %580 = vmatprep.subr.mxu0 0.0
        %581 = vmatpush2.msra.mxu0 0.0
        %582 = vmatprep.subr.mxu0 0.0
        %583 = vmatpush2.msra.mxu0 0.0
        %584 = vmatprep.subr.mxu0 0.0
        %585 = vmatpush2.msra.mxu0 0.0
        %586 = vmatprep.subr.mxu0 0.0
        %587 = vmatpush2.msra.mxu0 0.0
        %588 = vmatprep.subr.mxu0 0.0
        %589 = vmatpush2.msra.mxu0 0.0
        %590 = vmatprep.mubr.f32.mxu0 0.0
        %591 = vmatmul.mubr.f32.gmra.mxu0 %v453
        %v592 = vpop.f32.mrf.mxu0
        %v593 = vadd.f32 %v437, %v592
        %v594 = vpop.f32.mrf.mxu0
        %v595 = vadd.f32 %v441, %v594
        %596 = vdwg.mxu0
        %597 = vmatprep.subr.mxu0 0.0
        %598 = vmatpush1.msra.mxu0 0.0
        %599 = vmatprep.subr.mxu0 0.0
        %600 = vmatpush1.msra.mxu0 0.0
        %601 = vmatprep.subr.mxu0 0.0
        %602 = vmatpush1.msra.mxu0 0.0
        %603 = vmatprep.subr.mxu0 0.0
        %604 = vmatpush1.msra.mxu0 0.0
        %605 = vmatprep.subr.mxu0 0.0
        %606 = vmatpush1.msra.mxu0 0.0
        %607 = vmatprep.subr.mxu0 0.0
        %608 = vmatpush1.msra.mxu0 0.0
        %609 = vmatprep.subr.mxu0 0.0
        %610 = vmatpush1.msra.mxu0 0.0
        %611 = vmatprep.subr.mxu0 0.0
        %612 = vmatpush1.msra.mxu0 0.0
        %613 = vmatprep.subr.mxu0 0.0
        %614 = vmatpush1.msra.mxu0 0.0
        %615 = vmatprep.subr.mxu0 0.0
        %616 = vmatpush1.msra.mxu0 0.0
        %617 = vmatprep.subr.mxu0 0.0
        %618 = vmatpush1.msra.mxu0 0.0
        %619 = vmatprep.subr.mxu0 0.0
        %620 = vmatpush1.msra.mxu0 0.0
        %621 = vmatprep.subr.mxu0 0.0
        %622 = vmatpush1.msra.mxu0 %v423
        %623 = vmatprep.subr.mxu0 0.0
        %624 = vmatpush1.msra.mxu0 %v418
        %625 = vmatprep.subr.mxu0 0.0
        %626 = vmatpush1.msra.mxu0 %v413
        %627 = vmatprep.subr.mxu0 0.0
        %628 = vmatpush1.msra.mxu0 %v408
        %629 = vmatprep.subr.mxu0 0.0
        %630 = vmatpush2.msra.mxu0 0.0
        %631 = vmatprep.subr.mxu0 0.0
        %632 = vmatpush2.msra.mxu0 0.0
        %633 = vmatprep.subr.mxu0 0.0
        %634 = vmatpush2.msra.mxu0 0.0
        %635 = vmatprep.subr.mxu0 0.0
        %636 = vmatpush2.msra.mxu0 0.0
        %637 = vmatprep.subr.mxu0 0.0
        %638 = vmatpush2.msra.mxu0 0.0
        %639 = vmatprep.subr.mxu0 0.0
        %640 = vmatpush2.msra.mxu0 0.0
        %641 = vmatprep.subr.mxu0 0.0
        %642 = vmatpush2.msra.mxu0 0.0
        %643 = vmatprep.subr.mxu0 0.0
        %644 = vmatpush2.msra.mxu0 0.0
        %645 = vmatprep.subr.mxu0 0.0
        %646 = vmatpush2.msra.mxu0 0.0
        %647 = vmatprep.subr.mxu0 0.0
        %648 = vmatpush2.msra.mxu0 0.0
        %649 = vmatprep.subr.mxu0 0.0
        %650 = vmatpush2.msra.mxu0 0.0
        %651 = vmatprep.subr.mxu0 0.0
        %652 = vmatpush2.msra.mxu0 0.0
        %653 = vmatprep.subr.mxu0 0.0
        %654 = vmatpush2.msra.mxu0 0.0
        %655 = vmatprep.subr.mxu0 0.0
        %656 = vmatpush2.msra.mxu0 0.0
        %657 = vmatprep.subr.mxu0 0.0
        %658 = vmatpush2.msra.mxu0 0.0
        %659 = vmatprep.subr.mxu0 0.0
        %660 = vmatpush2.msra.mxu0 0.0
        %661 = vmatprep.mubr.f32.mxu0 0.0
        %662 = vmatmul.mubr.f32.gmra.mxu0 %v453
        %v663 = vpop.f32.mrf.mxu0
        %v664 = vadd.f32 %v445, %v663
        %v665 = vpop.f32.mrf.mxu0
        %666 = vdwg.mxu0
        %v667 = vmax.f32 %v522, 0.0
        %v668 = vmax.f32 %v524, 0.0
        %v669 = vmax.f32 %v593, 0.0
        %v670 = vmax.f32 %v595, 0.0
        %v671 = vmax.f32 %v664, 0.0
        %v672 = vld [vmem:[#allocation8] sm:$0xff]
        %v673 = vld [vmem:[#allocation8 + $0x8] sm:$0xff]
        %v674 = vld [vmem:[#allocation8 + $0x10] sm:$0xff]
        %v675 = vld [vmem:[#allocation8 + $0x18] sm:$0xff]
        %v676 = vld [vmem:[#allocation8 + $0x20] sm:$0xff]
        %v677 = vld [vmem:[#allocation8 + $0x28] sm:$0xff]
        %v678 = vld [vmem:[#allocation8 + $0x30] sm:$0xff]
        %v679 = vld [vmem:[#allocation8 + $0x38] sm:$0xff]
        %v680 = vld [vmem:[#allocation8 + $0x40] sm:$0xff]
        %v681 = vld [vmem:[#allocation8 + $0x48] sm:$0xff]
        %v682 = vld [vmem:[#allocation8 + $0x50] sm:$0xff]
        %v683 = vld [vmem:[#allocation8 + $0x58] sm:$0xff]
        %v684 = vld [vmem:[#allocation8 + $0x60] sm:$0xff]
        %v685 = vld [vmem:[#allocation8 + $0x68] sm:$0xff]
        %v686 = vld [vmem:[#allocation8 + $0x70] sm:$0xff]
        %v687 = vld [vmem:[#allocation8 + $0x78] sm:$0xff]
        %v688 = vld [vmem:[%s4] sm:$0x1]
        %v690 = vlaneseq
        %v691 = vshrl.u32 %v690, 7
        %v692 = vsub.s32 0, %v691
        %v693 = vrot.slane %v688, %v692
        %695 = vmatprep.subr.mxu0 0.0
        %696 = vmatpush1.msra.mxu0 %v687
        %697 = vmatprep.subr.mxu0 0.0
        %698 = vmatpush1.msra.mxu0 %v686
        %699 = vmatprep.subr.mxu0 0.0
        %700 = vmatpush1.msra.mxu0 %v685
        %701 = vmatprep.subr.mxu0 0.0
        %702 = vmatpush1.msra.mxu0 %v684
        %703 = vmatprep.subr.mxu0 0.0
        %704 = vmatpush1.msra.mxu0 %v683
        %705 = vmatprep.subr.mxu0 0.0
        %706 = vmatpush1.msra.mxu0 %v682
        %707 = vmatprep.subr.mxu0 0.0
        %708 = vmatpush1.msra.mxu0 %v681
        %709 = vmatprep.subr.mxu0 0.0
        %710 = vmatpush1.msra.mxu0 %v680
        %711 = vmatprep.subr.mxu0 0.0
        %712 = vmatpush1.msra.mxu0 %v679
        %713 = vmatprep.subr.mxu0 0.0
        %714 = vmatpush1.msra.mxu0 %v678
        %715 = vmatprep.subr.mxu0 0.0
        %716 = vmatpush1.msra.mxu0 %v677
        %717 = vmatprep.subr.mxu0 0.0
        %718 = vmatpush1.msra.mxu0 %v676
        %719 = vmatprep.subr.mxu0 0.0
        %720 = vmatpush1.msra.mxu0 %v675
        %721 = vmatprep.subr.mxu0 0.0
        %722 = vmatpush1.msra.mxu0 %v674
        %723 = vmatprep.subr.mxu0 0.0
        %724 = vmatpush1.msra.mxu0 %v673
        %725 = vmatprep.subr.mxu0 0.0
        %726 = vmatpush1.msra.mxu0 %v672
        %727 = vmatprep.subr.mxu0 0.0
        %728 = vmatpush2.msra.mxu0 0.0
        %729 = vmatprep.subr.mxu0 0.0
        %730 = vmatpush2.msra.mxu0 0.0
        %731 = vmatprep.subr.mxu0 0.0
        %732 = vmatpush2.msra.mxu0 0.0
        %733 = vmatprep.subr.mxu0 0.0
        %734 = vmatpush2.msra.mxu0 0.0
        %735 = vmatprep.subr.mxu0 0.0
        %736 = vmatpush2.msra.mxu0 0.0
        %737 = vmatprep.subr.mxu0 0.0
        %738 = vmatpush2.msra.mxu0 0.0
        %739 = vmatprep.subr.mxu0 0.0
        %740 = vmatpush2.msra.mxu0 0.0
        %741 = vmatprep.subr.mxu0 0.0
        %742 = vmatpush2.msra.mxu0 0.0
        %743 = vmatprep.subr.mxu0 0.0
        %744 = vmatpush2.msra.mxu0 0.0
        %745 = vmatprep.subr.mxu0 0.0
        %746 = vmatpush2.msra.mxu0 0.0
        %747 = vmatprep.subr.mxu0 0.0
        %748 = vmatpush2.msra.mxu0 0.0
        %749 = vmatprep.subr.mxu0 0.0
        %750 = vmatpush2.msra.mxu0 0.0
        %751 = vmatprep.subr.mxu0 0.0
        %752 = vmatpush2.msra.mxu0 0.0
        %753 = vmatprep.subr.mxu0 0.0
        %754 = vmatpush2.msra.mxu0 0.0
        %755 = vmatprep.subr.mxu0 0.0
        %756 = vmatpush2.msra.mxu0 0.0
        %757 = vmatprep.subr.mxu0 0.0
        %758 = vmatpush2.msra.mxu0 0.0
        %759 = vmatprep.mubr.f32.mxu0 0.0
        %760 = vmatmul.mubr.f32.gmra.mxu0 %v671
        %v761 = vpop.f32.mrf.mxu0
        %v762 = vadd.f32 %v693, %v761
        %v763 = vpop.f32.mrf.mxu0
        %764 = vdwg.mxu0
        %v765 = vlaneseq
        %v766 = vand.u32 %v765, 127
        %vm767 = vcmp.lt.s32.totalorder %v766, 4
        %v768 = vsel %vm767, %v762, -inf
        %769 = vmax.xlane.f32.xlu0 %v768
        %v770 = vpop.xlane.xlu0 %769
        %v771 = vsub.f32 %v762, %v770
        %v772 = vmul.f32 %v771, 1.442695
        %v773 = vpow.pop %v772
        %v774 = vsel %vm767, %v773, 0.0
        %775 = vadd.xlane.f32.xlu0 %v774
        %v776 = vpop.xlane.xlu0 %775
        %v777 = vrcp.pop %v776
        %v778 = vmul.f32 %v776, %v777
        %v779 = vsub.f32 2.0, %v778
        %v780 = vmul.f32 %v777, %v779
        %v781 = vmul.f32 %v774, %v780
        %v782 = vld [vmem:[#allocation10] sm:$0xff]
        %v783 = vld [vmem:[#allocation10 + $0x8] sm:$0xff]
        %v784 = vld [vmem:[#allocation10 + $0x10] sm:$0xff]
        %v785 = vld [vmem:[#allocation10 + $0x18] sm:$0xff]
        %v786 = vld [vmem:[#allocation10 + $0x20] sm:$0xff]
        %v787 = vld [vmem:[#allocation10 + $0x28] sm:$0xff]
        %v788 = vld [vmem:[#allocation10 + $0x30] sm:$0xff]
        %v789 = vld [vmem:[#allocation10 + $0x38] sm:$0xff]
        %v790 = vld [vmem:[#allocation10 + $0x40] sm:$0xff]
        %v791 = vld [vmem:[#allocation10 + $0x48] sm:$0xff]
        %v792 = vld [vmem:[#allocation10 + $0x50] sm:$0xff]
        %v793 = vld [vmem:[#allocation10 + $0x58] sm:$0xff]
        %v794 = vld [vmem:[#allocation10 + $0x60] sm:$0xff]
        %v795 = vld [vmem:[#allocation10 + $0x68] sm:$0xff]
        %v796 = vld [vmem:[#allocation10 + $0x70] sm:$0xff]
        %v797 = vld [vmem:[#allocation10 + $0x78] sm:$0xff]
        %v798 = vld [vmem:[#allocation10 + $0x80] sm:$0xff]
        %v799 = vld [vmem:[#allocation10 + $0x88] sm:$0xff]
        %v800 = vld [vmem:[#allocation10 + $0x90] sm:$0xff]
        %v801 = vld [vmem:[#allocation10 + $0x98] sm:$0xff]
        %v802 = vld [vmem:[#allocation10 + $0xa0] sm:$0xff]
        %v803 = vld [vmem:[#allocation10 + $0xa8] sm:$0xff]
        %v804 = vld [vmem:[#allocation10 + $0xb0] sm:$0xff]
        %v805 = vld [vmem:[#allocation10 + $0xb8] sm:$0xff]
        %v806 = vld [vmem:[#allocation10 + $0xc0] sm:$0xff]
        %v807 = vld [vmem:[#allocation10 + $0xc8] sm:$0xff]
        %v808 = vld [vmem:[#allocation10 + $0xd0] sm:$0xff]
        %v809 = vld [vmem:[#allocation10 + $0xd8] sm:$0xff]
        %v810 = vld [vmem:[#allocation10 + $0xe0] sm:$0xff]
        %v811 = vld [vmem:[#allocation10 + $0xe8] sm:$0xff]
        %v812 = vld [vmem:[#allocation10 + $0xf0] sm:$0xff]
        %v813 = vld [vmem:[#allocation10 + $0xf8] sm:$0xff]
        %v814 = vld [vmem:[#allocation10 + $0x100] sm:$0xff]
        %v815 = vld [vmem:[#allocation10 + $0x108] sm:$0xff]
        %v816 = vld [vmem:[#allocation10 + $0x110] sm:$0xff]
        %v817 = vld [vmem:[#allocation10 + $0x118] sm:$0xff]
        %v818 = vld [vmem:[#allocation10 + $0x120] sm:$0xff]
        %v819 = vld [vmem:[#allocation10 + $0x128] sm:$0xff]
        %v820 = vld [vmem:[#allocation10 + $0x130] sm:$0xff]
        %v821 = vld [vmem:[#allocation10 + $0x138] sm:$0xff]
        %v822 = vld [vmem:[#allocation10 + $0x140] sm:$0xff]
        %v823 = vld [vmem:[#allocation10 + $0x148] sm:$0xff]
        %v824 = vld [vmem:[#allocation10 + $0x150] sm:$0xff]
        %v825 = vld [vmem:[#allocation10 + $0x158] sm:$0xff]
        %v826 = vld [vmem:[#allocation10 + $0x160] sm:$0xff]
        %v827 = vld [vmem:[#allocation10 + $0x168] sm:$0xff]
        %v828 = vld [vmem:[#allocation10 + $0x170] sm:$0xff]
        %v829 = vld [vmem:[#allocation10 + $0x178] sm:$0xff]
        %v830 = vld [vmem:[#allocation10 + $0x180] sm:$0xff]
        %v831 = vld [vmem:[#allocation10 + $0x188] sm:$0xff]
        %v832 = vld [vmem:[#allocation10 + $0x190] sm:$0xff]
        %v833 = vld [vmem:[#allocation10 + $0x198] sm:$0xff]
        %v834 = vld [vmem:[#allocation10 + $0x1a0] sm:$0xff]
        %v835 = vld [vmem:[#allocation10 + $0x1a8] sm:$0xff]
        %v836 = vld [vmem:[#allocation10 + $0x1b0] sm:$0xff]
        %v837 = vld [vmem:[#allocation10 + $0x1b8] sm:$0xff]
        %v838 = vld [vmem:[#allocation10 + $0x1c0] sm:$0xff]
        %v839 = vld [vmem:[#allocation10 + $0x1c8] sm:$0xff]
        %v840 = vld [vmem:[#allocation10 + $0x1d0] sm:$0xff]
        %v841 = vld [vmem:[#allocation10 + $0x1d8] sm:$0xff]
        %v842 = vld [vmem:[#allocation10 + $0x1e0] sm:$0xff]
        %v843 = vld [vmem:[#allocation10 + $0x1e8] sm:$0xff]
        %v844 = vld [vmem:[#allocation10 + $0x1f0] sm:$0xff]
        %v845 = vld [vmem:[#allocation10 + $0x1f8] sm:$0xff]
        %846 = vmatprep.subr.mxu0 %v843
        %847 = vmatpush1.msra.mxu0 %v842
        %848 = vmatprep.subr.mxu0 %v839
        %849 = vmatpush1.msra.mxu0 %v838
        %850 = vmatprep.subr.mxu0 %v835
        %851 = vmatpush1.msra.mxu0 %v834
        %852 = vmatprep.subr.mxu0 %v831
        %853 = vmatpush1.msra.mxu0 %v830
        %854 = vmatprep.subr.mxu0 %v827
        %855 = vmatpush1.msra.mxu0 %v826
        %856 = vmatprep.subr.mxu0 %v823
        %857 = vmatpush1.msra.mxu0 %v822
        %858 = vmatprep.subr.mxu0 %v819
        %859 = vmatpush1.msra.mxu0 %v818
        %860 = vmatprep.subr.mxu0 %v815
        %861 = vmatpush1.msra.mxu0 %v814
        %862 = vmatprep.subr.mxu0 %v811
        %863 = vmatpush1.msra.mxu0 %v810
        %864 = vmatprep.subr.mxu0 %v807
        %865 = vmatpush1.msra.mxu0 %v806
        %866 = vmatprep.subr.mxu0 %v803
        %867 = vmatpush1.msra.mxu0 %v802
        %868 = vmatprep.subr.mxu0 %v799
        %869 = vmatpush1.msra.mxu0 %v798
        %870 = vmatprep.subr.mxu0 %v795
        %871 = vmatpush1.msra.mxu0 %v794
        %872 = vmatprep.subr.mxu0 %v791
        %873 = vmatpush1.msra.mxu0 %v790
        %874 = vmatprep.subr.mxu0 %v787
        %875 = vmatpush1.msra.mxu0 %v786
        %876 = vmatprep.subr.mxu0 %v783
        %877 = vmatpush1.msra.mxu0 %v782
        %878 = vmatprep.subr.mxu0 0.0
        %879 = vmatpush2.msra.mxu0 0.0
        %880 = vmatprep.subr.mxu0 0.0
        %881 = vmatpush2.msra.mxu0 0.0
        %882 = vmatprep.subr.mxu0 0.0
        %883 = vmatpush2.msra.mxu0 0.0
        %884 = vmatprep.subr.mxu0 0.0
        %885 = vmatpush2.msra.mxu0 0.0
        %886 = vmatprep.subr.mxu0 0.0
        %887 = vmatpush2.msra.mxu0 0.0
        %888 = vmatprep.subr.mxu0 0.0
        %889 = vmatpush2.msra.mxu0 0.0
        %890 = vmatprep.subr.mxu0 0.0
        %891 = vmatpush2.msra.mxu0 0.0
        %892 = vmatprep.subr.mxu0 0.0
        %893 = vmatpush2.msra.mxu0 0.0
        %894 = vmatprep.subr.mxu0 0.0
        %895 = vmatpush2.msra.mxu0 0.0
        %896 = vmatprep.subr.mxu0 0.0
        %897 = vmatpush2.msra.mxu0 0.0
        %898 = vmatprep.subr.mxu0 0.0
        %899 = vmatpush2.msra.mxu0 0.0
        %900 = vmatprep.subr.mxu0 0.0
        %901 = vmatpush2.msra.mxu0 0.0
        %902 = vmatprep.subr.mxu0 0.0
        %903 = vmatpush2.msra.mxu0 0.0
        %904 = vmatprep.subr.mxu0 0.0
        %905 = vmatpush2.msra.mxu0 0.0
        %906 = vmatprep.subr.mxu0 0.0
        %907 = vmatpush2.msra.mxu0 0.0
        %908 = vmatprep.subr.mxu0 0.0
        %909 = vmatpush2.msra.mxu0 0.0
        %910 = vmatprep.mubr.f32.mxu0 0.0
        %911 = vmatmul.mubr.f32.gmra.mxu0 %v781
        %v912 = vpop.f32.mrf.mxu0
        %v913 = vadd.f32 0.0, %v912
        %v914 = vpop.f32.mrf.mxu0
        %v915 = vadd.f32 0.0, %v914
        %916 = vdwg.mxu0
        %917 = vmatprep.subr.mxu0 %v845
        %918 = vmatpush1.msra.mxu0 %v844
        %919 = vmatprep.subr.mxu0 %v841
        %920 = vmatpush1.msra.mxu0 %v840
        %921 = vmatprep.subr.mxu0 %v837
        %922 = vmatpush1.msra.mxu0 %v836
        %923 = vmatprep.subr.mxu0 %v833
        %924 = vmatpush1.msra.mxu0 %v832
        %925 = vmatprep.subr.mxu0 %v829
        %926 = vmatpush1.msra.mxu0 %v828
        %927 = vmatprep.subr.mxu0 %v825
        %928 = vmatpush1.msra.mxu0 %v824
        %929 = vmatprep.subr.mxu0 %v821
        %930 = vmatpush1.msra.mxu0 %v820
        %931 = vmatprep.subr.mxu0 %v817
        %932 = vmatpush1.msra.mxu0 %v816
        %933 = vmatprep.subr.mxu0 %v813
        %934 = vmatpush1.msra.mxu0 %v812
        %935 = vmatprep.subr.mxu0 %v809
        %936 = vmatpush1.msra.mxu0 %v808
        %937 = vmatprep.subr.mxu0 %v805
        %938 = vmatpush1.msra.mxu0 %v804
        %939 = vmatprep.subr.mxu0 %v801
        %940 = vmatpush1.msra.mxu0 %v800
        %941 = vmatprep.subr.mxu0 %v797
        %942 = vmatpush1.msra.mxu0 %v796
        %943 = vmatprep.subr.mxu0 %v793
        %944 = vmatpush1.msra.mxu0 %v792
        %945 = vmatprep.subr.mxu0 %v789
        %946 = vmatpush1.msra.mxu0 %v788
        %947 = vmatprep.subr.mxu0 %v785
        %948 = vmatpush1.msra.mxu0 %v784
        %949 = vmatprep.subr.mxu0 0.0
        %950 = vmatpush2.msra.mxu0 0.0
        %951 = vmatprep.subr.mxu0 0.0
        %952 = vmatpush2.msra.mxu0 0.0
        %953 = vmatprep.subr.mxu0 0.0
        %954 = vmatpush2.msra.mxu0 0.0
        %955 = vmatprep.subr.mxu0 0.0
        %956 = vmatpush2.msra.mxu0 0.0
        %957 = vmatprep.subr.mxu0 0.0
        %958 = vmatpush2.msra.mxu0 0.0
        %959 = vmatprep.subr.mxu0 0.0
        %960 = vmatpush2.msra.mxu0 0.0
        %961 = vmatprep.subr.mxu0 0.0
        %962 = vmatpush2.msra.mxu0 0.0
        %963 = vmatprep.subr.mxu0 0.0
        %964 = vmatpush2.msra.mxu0 0.0
        %965 = vmatprep.subr.mxu0 0.0
        %966 = vmatpush2.msra.mxu0 0.0
        %967 = vmatprep.subr.mxu0 0.0
        %968 = vmatpush2.msra.mxu0 0.0
        %969 = vmatprep.subr.mxu0 0.0
        %970 = vmatpush2.msra.mxu0 0.0
        %971 = vmatprep.subr.mxu0 0.0
        %972 = vmatpush2.msra.mxu0 0.0
        %973 = vmatprep.subr.mxu0 0.0
        %974 = vmatpush2.msra.mxu0 0.0
        %975 = vmatprep.subr.mxu0 0.0
        %976 = vmatpush2.msra.mxu0 0.0
        %977 = vmatprep.subr.mxu0 0.0
        %978 = vmatpush2.msra.mxu0 0.0
        %979 = vmatprep.subr.mxu0 0.0
        %980 = vmatpush2.msra.mxu0 0.0
        %981 = vmatprep.mubr.f32.mxu0 0.0
        %982 = vmatmul.mubr.f32.gmra.mxu0 %v781
        %v983 = vpop.f32.mrf.mxu0
        %v984 = vadd.f32 0.0, %v983
        %v985 = vpop.f32.mrf.mxu0
        %v986 = vadd.f32 0.0, %v985
        %987 = vdwg.mxu0
        %v988 = vmul.f32 %v667, %v913
        %v989 = vmul.f32 %v668, %v915
        %v990 = vmul.f32 %v669, %v984
        %v991 = vmul.f32 %v670, %v986
        %v992 = vld [vmem:[#allocation11] sm:$0xff]
        %v993 = vld [vmem:[#allocation11 + $0x8] sm:$0xff]
        %v994 = vld [vmem:[#allocation11 + $0x10] sm:$0xff]
        %v995 = vld [vmem:[#allocation11 + $0x18] sm:$0xff]
        %v996 = vld [vmem:[#allocation11 + $0x20] sm:$0xff]
        %v997 = vld [vmem:[#allocation11 + $0x28] sm:$0xff]
        %v998 = vld [vmem:[#allocation11 + $0x30] sm:$0xff]
        %v999 = vld [vmem:[#allocation11 + $0x38] sm:$0xff]
        %v1000 = vld [vmem:[#allocation11 + $0x40] sm:$0xff]
        %v1001 = vld [vmem:[#allocation11 + $0x48] sm:$0xff]
        %v1002 = vld [vmem:[#allocation11 + $0x50] sm:$0xff]
        %v1003 = vld [vmem:[#allocation11 + $0x58] sm:$0xff]
        %v1004 = vld [vmem:[#allocation11 + $0x60] sm:$0xff]
        %v1005 = vld [vmem:[#allocation11 + $0x68] sm:$0xff]
        %v1006 = vld [vmem:[#allocation11 + $0x70] sm:$0xff]
        %v1007 = vld [vmem:[#allocation11 + $0x78] sm:$0xff]
        %v1008 = vld [vmem:[#allocation11 + $0x80] sm:$0xff]
        %v1009 = vld [vmem:[#allocation11 + $0x88] sm:$0xff]
        %v1010 = vld [vmem:[#allocation11 + $0x90] sm:$0xff]
        %v1011 = vld [vmem:[#allocation11 + $0x98] sm:$0xff]
        %v1012 = vld [vmem:[#allocation11 + $0xa0] sm:$0xff]
        %v1013 = vld [vmem:[#allocation11 + $0xa8] sm:$0xff]
        %v1014 = vld [vmem:[#allocation11 + $0xb0] sm:$0xff]
        %v1015 = vld [vmem:[#allocation11 + $0xb8] sm:$0xff]
        %v1016 = vld [vmem:[#allocation11 + $0xc0] sm:$0xff]
        %v1017 = vld [vmem:[#allocation11 + $0xc8] sm:$0xff]
        %v1018 = vld [vmem:[#allocation11 + $0xd0] sm:$0xff]
        %v1019 = vld [vmem:[#allocation11 + $0xd8] sm:$0xff]
        %v1020 = vld [vmem:[#allocation11 + $0xe0] sm:$0xff]
        %v1021 = vld [vmem:[#allocation11 + $0xe8] sm:$0xff]
        %v1022 = vld [vmem:[#allocation11 + $0xf0] sm:$0xff]
        %v1023 = vld [vmem:[#allocation11 + $0xf8] sm:$0xff]
        %v1024 = vld [vmem:[#allocation11 + $0x100] sm:$0xff]
        %v1025 = vld [vmem:[#allocation11 + $0x108] sm:$0xff]
        %v1026 = vld [vmem:[#allocation11 + $0x110] sm:$0xff]
        %v1027 = vld [vmem:[#allocation11 + $0x118] sm:$0xff]
        %v1028 = vld [vmem:[#allocation11 + $0x120] sm:$0xff]
        %v1029 = vld [vmem:[#allocation11 + $0x128] sm:$0xff]
        %v1030 = vld [vmem:[#allocation11 + $0x130] sm:$0xff]
        %v1031 = vld [vmem:[#allocation11 + $0x138] sm:$0xff]
        %v1032 = vld [vmem:[#allocation11 + $0x140] sm:$0xff]
        %v1033 = vld [vmem:[#allocation11 + $0x148] sm:$0xff]
        %v1034 = vld [vmem:[#allocation11 + $0x150] sm:$0xff]
        %v1035 = vld [vmem:[#allocation11 + $0x158] sm:$0xff]
        %v1036 = vld [vmem:[#allocation11 + $0x160] sm:$0xff]
        %v1037 = vld [vmem:[#allocation11 + $0x168] sm:$0xff]
        %v1038 = vld [vmem:[#allocation11 + $0x170] sm:$0xff]
        %v1039 = vld [vmem:[#allocation11 + $0x178] sm:$0xff]
        %v1040 = vld [vmem:[#allocation11 + $0x180] sm:$0xff]
        %v1041 = vld [vmem:[#allocation11 + $0x188] sm:$0xff]
        %v1042 = vld [vmem:[#allocation11 + $0x190] sm:$0xff]
        %v1043 = vld [vmem:[#allocation11 + $0x198] sm:$0xff]
        %v1044 = vld [vmem:[#allocation11 + $0x1a0] sm:$0xff]
        %v1045 = vld [vmem:[#allocation11 + $0x1a8] sm:$0xff]
        %v1046 = vld [vmem:[#allocation11 + $0x1b0] sm:$0xff]
        %v1047 = vld [vmem:[#allocation11 + $0x1b8] sm:$0xff]
        %v1048 = vld [vmem:[#allocation11 + $0x1c0] sm:$0xff]
        %v1049 = vld [vmem:[#allocation11 + $0x1c8] sm:$0xff]
        %v1050 = vld [vmem:[#allocation11 + $0x1d0] sm:$0xff]
        %v1051 = vld [vmem:[#allocation11 + $0x1d8] sm:$0xff]
        %v1052 = vld [vmem:[#allocation11 + $0x1e0] sm:$0xff]
        %v1053 = vld [vmem:[#allocation11 + $0x1e8] sm:$0xff]
        %v1054 = vld [vmem:[#allocation11 + $0x1f0] sm:$0xff]
        %v1055 = vld [vmem:[#allocation11 + $0x1f8] sm:$0xff]
        %v1056 = vld [vmem:[#allocation11 + $0x200] sm:$0xff]
        %v1057 = vld [vmem:[#allocation11 + $0x208] sm:$0xff]
        %v1058 = vld [vmem:[#allocation11 + $0x210] sm:$0xff]
        %v1059 = vld [vmem:[#allocation11 + $0x218] sm:$0xff]
        %v1060 = vld [vmem:[#allocation11 + $0x220] sm:$0xff]
        %v1061 = vld [vmem:[#allocation11 + $0x228] sm:$0xff]
        %v1062 = vld [vmem:[#allocation11 + $0x230] sm:$0xff]
        %v1063 = vld [vmem:[#allocation11 + $0x238] sm:$0xff]
        %v1064 = vld [vmem:[#allocation11 + $0x240] sm:$0xff]
        %v1065 = vld [vmem:[#allocation11 + $0x248] sm:$0xff]
        %v1066 = vld [vmem:[#allocation11 + $0x250] sm:$0xff]
        %v1067 = vld [vmem:[#allocation11 + $0x258] sm:$0xff]
        %v1068 = vld [vmem:[#allocation11 + $0x260] sm:$0xff]
        %v1069 = vld [vmem:[#allocation11 + $0x268] sm:$0xff]
        %v1070 = vld [vmem:[#allocation11 + $0x270] sm:$0xff]
        %v1071 = vld [vmem:[#allocation11 + $0x278] sm:$0xff]
        %1072 = vmatprep.subr.mxu0 0.0
        %1073 = vmatpush1.msra.mxu0 %v1007
        %1074 = vmatprep.subr.mxu0 0.0
        %1075 = vmatpush1.msra.mxu0 %v1006
        %1076 = vmatprep.subr.mxu0 0.0
        %1077 = vmatpush1.msra.mxu0 %v1005
        %1078 = vmatprep.subr.mxu0 0.0
        %1079 = vmatpush1.msra.mxu0 %v1004
        %1080 = vmatprep.subr.mxu0 0.0
        %1081 = vmatpush1.msra.mxu0 %v1003
        %1082 = vmatprep.subr.mxu0 0.0
        %1083 = vmatpush1.msra.mxu0 %v1002
        %1084 = vmatprep.subr.mxu0 0.0
        %1085 = vmatpush1.msra.mxu0 %v1001
        %1086 = vmatprep.subr.mxu0 0.0
        %1087 = vmatpush1.msra.mxu0 %v1000
        %1088 = vmatprep.subr.mxu0 0.0
        %1089 = vmatpush1.msra.mxu0 %v999
        %1090 = vmatprep.subr.mxu0 0.0
        %1091 = vmatpush1.msra.mxu0 %v998
        %1092 = vmatprep.subr.mxu0 0.0
        %1093 = vmatpush1.msra.mxu0 %v997
        %1094 = vmatprep.subr.mxu0 0.0
        %1095 = vmatpush1.msra.mxu0 %v996
        %1096 = vmatprep.subr.mxu0 0.0
        %1097 = vmatpush1.msra.mxu0 %v995
        %1098 = vmatprep.subr.mxu0 0.0
        %1099 = vmatpush1.msra.mxu0 %v994
        %1100 = vmatprep.subr.mxu0 0.0
        %1101 = vmatpush1.msra.mxu0 %v993
        %1102 = vmatprep.subr.mxu0 0.0
        %1103 = vmatpush1.msra.mxu0 %v992
        %1104 = vmatprep.subr.mxu0 0.0
        %1105 = vmatpush2.msra.mxu0 %v1023
        %1106 = vmatprep.subr.mxu0 0.0
        %1107 = vmatpush2.msra.mxu0 %v1022
        %1108 = vmatprep.subr.mxu0 0.0
        %1109 = vmatpush2.msra.mxu0 %v1021
        %1110 = vmatprep.subr.mxu0 0.0
        %1111 = vmatpush2.msra.mxu0 %v1020
        %1112 = vmatprep.subr.mxu0 0.0
        %1113 = vmatpush2.msra.mxu0 %v1019
        %1114 = vmatprep.subr.mxu0 0.0
        %1115 = vmatpush2.msra.mxu0 %v1018
        %1116 = vmatprep.subr.mxu0 0.0
        %1117 = vmatpush2.msra.mxu0 %v1017
        %1118 = vmatprep.subr.mxu0 0.0
        %1119 = vmatpush2.msra.mxu0 %v1016
        %1120 = vmatprep.subr.mxu0 0.0
        %1121 = vmatpush2.msra.mxu0 %v1015
        %1122 = vmatprep.subr.mxu0 0.0
        %1123 = vmatpush2.msra.mxu0 %v1014
        %1124 = vmatprep.subr.mxu0 0.0
        %1125 = vmatpush2.msra.mxu0 %v1013
        %1126 = vmatprep.subr.mxu0 0.0
        %1127 = vmatpush2.msra.mxu0 %v1012
        %1128 = vmatprep.subr.mxu0 0.0
        %1129 = vmatpush2.msra.mxu0 %v1011
        %1130 = vmatprep.subr.mxu0 0.0
        %1131 = vmatpush2.msra.mxu0 %v1010
        %1132 = vmatprep.subr.mxu0 0.0
        %1133 = vmatpush2.msra.mxu0 %v1009
        %1134 = vmatprep.subr.mxu0 0.0
        %1135 = vmatpush2.msra.mxu0 %v1008
        %1136 = vmatprep.mubr.f32.mxu0 %v989
        %1137 = vmatmul.mubr.f32.gmra.mxu0 %v988
        %v1138 = vpop.f32.mrf.mxu0
        %v1139 = vadd.f32 0.0, %v1138
        %v1140 = vpop.f32.mrf.mxu0
        %1141 = vdwg.mxu0
        %1142 = vmatprep.subr.mxu0 0.0
        %1143 = vmatpush1.msra.mxu0 %v1039
        %1144 = vmatprep.subr.mxu0 0.0
        %1145 = vmatpush1.msra.mxu0 %v1038
        %1146 = vmatprep.subr.mxu0 0.0
        %1147 = vmatpush1.msra.mxu0 %v1037
        %1148 = vmatprep.subr.mxu0 0.0
        %1149 = vmatpush1.msra.mxu0 %v1036
        %1150 = vmatprep.subr.mxu0 0.0
        %1151 = vmatpush1.msra.mxu0 %v1035
        %1152 = vmatprep.subr.mxu0 0.0
        %1153 = vmatpush1.msra.mxu0 %v1034
        %1154 = vmatprep.subr.mxu0 0.0
        %1155 = vmatpush1.msra.mxu0 %v1033
        %1156 = vmatprep.subr.mxu0 0.0
        %1157 = vmatpush1.msra.mxu0 %v1032
        %1158 = vmatprep.subr.mxu0 0.0
        %1159 = vmatpush1.msra.mxu0 %v1031
        %1160 = vmatprep.subr.mxu0 0.0
        %1161 = vmatpush1.msra.mxu0 %v1030
        %1162 = vmatprep.subr.mxu0 0.0
        %1163 = vmatpush1.msra.mxu0 %v1029
        %1164 = vmatprep.subr.mxu0 0.0
        %1165 = vmatpush1.msra.mxu0 %v1028
        %1166 = vmatprep.subr.mxu0 0.0
        %1167 = vmatpush1.msra.mxu0 %v1027
        %1168 = vmatprep.subr.mxu0 0.0
        %1169 = vmatpush1.msra.mxu0 %v1026
        %1170 = vmatprep.subr.mxu0 0.0
        %1171 = vmatpush1.msra.mxu0 %v1025
        %1172 = vmatprep.subr.mxu0 0.0
        %1173 = vmatpush1.msra.mxu0 %v1024
        %1174 = vmatprep.subr.mxu0 0.0
        %1175 = vmatpush2.msra.mxu0 %v1055
        %1176 = vmatprep.subr.mxu0 0.0
        %1177 = vmatpush2.msra.mxu0 %v1054
        %1178 = vmatprep.subr.mxu0 0.0
        %1179 = vmatpush2.msra.mxu0 %v1053
        %1180 = vmatprep.subr.mxu0 0.0
        %1181 = vmatpush2.msra.mxu0 %v1052
        %1182 = vmatprep.subr.mxu0 0.0
        %1183 = vmatpush2.msra.mxu0 %v1051
        %1184 = vmatprep.subr.mxu0 0.0
        %1185 = vmatpush2.msra.mxu0 %v1050
        %1186 = vmatprep.subr.mxu0 0.0
        %1187 = vmatpush2.msra.mxu0 %v1049
        %1188 = vmatprep.subr.mxu0 0.0
        %1189 = vmatpush2.msra.mxu0 %v1048
        %1190 = vmatprep.subr.mxu0 0.0
        %1191 = vmatpush2.msra.mxu0 %v1047
        %1192 = vmatprep.subr.mxu0 0.0
        %1193 = vmatpush2.msra.mxu0 %v1046
        %1194 = vmatprep.subr.mxu0 0.0
        %1195 = vmatpush2.msra.mxu0 %v1045
        %1196 = vmatprep.subr.mxu0 0.0
        %1197 = vmatpush2.msra.mxu0 %v1044
        %1198 = vmatprep.subr.mxu0 0.0
        %1199 = vmatpush2.msra.mxu0 %v1043
        %1200 = vmatprep.subr.mxu0 0.0
        %1201 = vmatpush2.msra.mxu0 %v1042
        %1202 = vmatprep.subr.mxu0 0.0
        %1203 = vmatpush2.msra.mxu0 %v1041
        %1204 = vmatprep.subr.mxu0 0.0
        %1205 = vmatpush2.msra.mxu0 %v1040
        %1206 = vmatprep.mubr.f32.mxu0 %v991
        %1207 = vmatmul.mubr.f32.gmra.mxu0 %v990
        %v1208 = vpop.f32.mrf.mxu0
        %v1209 = vadd.f32 %v1139, %v1208
        %v1210 = vpop.f32.mrf.mxu0
        %1211 = vdwg.mxu0
        %1212 = vmatprep.subr.mxu0 0.0
        %1213 = vmatpush1.msra.mxu0 %v1071
        %1214 = vmatprep.subr.mxu0 0.0
        %1215 = vmatpush1.msra.mxu0 %v1070
        %1216 = vmatprep.subr.mxu0 0.0
        %1217 = vmatpush1.msra.mxu0 %v1069
        %1218 = vmatprep.subr.mxu0 0.0
        %1219 = vmatpush1.msra.mxu0 %v1068
        %1220 = vmatprep.subr.mxu0 0.0
        %1221 = vmatpush1.msra.mxu0 %v1067
        %1222 = vmatprep.subr.mxu0 0.0
        %1223 = vmatpush1.msra.mxu0 %v1066
        %1224 = vmatprep.subr.mxu0 0.0
        %1225 = vmatpush1.msra.mxu0 %v1065
        %1226 = vmatprep.subr.mxu0 0.0
        %1227 = vmatpush1.msra.mxu0 %v1064
        %1228 = vmatprep.subr.mxu0 0.0
        %1229 = vmatpush1.msra.mxu0 %v1063
        %1230 = vmatprep.subr.mxu0 0.0
        %1231 = vmatpush1.msra.mxu0 %v1062
        %1232 = vmatprep.subr.mxu0 0.0
        %1233 = vmatpush1.msra.mxu0 %v1061
        %1234 = vmatprep.subr.mxu0 0.0
        %1235 = vmatpush1.msra.mxu0 %v1060
        %1236 = vmatprep.subr.mxu0 0.0
        %1237 = vmatpush1.msra.mxu0 %v1059
        %1238 = vmatprep.subr.mxu0 0.0
        %1239 = vmatpush1.msra.mxu0 %v1058
        %1240 = vmatprep.subr.mxu0 0.0
        %1241 = vmatpush1.msra.mxu0 %v1057
        %1242 = vmatprep.subr.mxu0 0.0
        %1243 = vmatpush1.msra.mxu0 %v1056
        %1244 = vmatprep.subr.mxu0 0.0
        %1245 = vmatpush2.msra.mxu0 0.0
        %1246 = vmatprep.subr.mxu0 0.0
        %1247 = vmatpush2.msra.mxu0 0.0
        %1248 = vmatprep.subr.mxu0 0.0
        %1249 = vmatpush2.msra.mxu0 0.0
        %1250 = vmatprep.subr.mxu0 0.0
        %1251 = vmatpush2.msra.mxu0 0.0
        %1252 = vmatprep.subr.mxu0 0.0
        %1253 = vmatpush2.msra.mxu0 0.0
        %1254 = vmatprep.subr.mxu0 0.0
        %1255 = vmatpush2.msra.mxu0 0.0
        %1256 = vmatprep.subr.mxu0 0.0
        %1257 = vmatpush2.msra.mxu0 0.0
        %1258 = vmatprep.subr.mxu0 0.0
        %1259 = vmatpush2.msra.mxu0 0.0
        %1260 = vmatprep.subr.mxu0 0.0
        %1261 = vmatpush2.msra.mxu0 0.0
        %1262 = vmatprep.subr.mxu0 0.0
        %1263 = vmatpush2.msra.mxu0 0.0
        %1264 = vmatprep.subr.mxu0 0.0
        %1265 = vmatpush2.msra.mxu0 0.0
        %1266 = vmatprep.subr.mxu0 0.0
        %1267 = vmatpush2.msra.mxu0 0.0
        %1268 = vmatprep.subr.mxu0 0.0
        %1269 = vmatpush2.msra.mxu0 0.0
        %1270 = vmatprep.subr.mxu0 0.0
        %1271 = vmatpush2.msra.mxu0 0.0
        %1272 = vmatprep.subr.mxu0 0.0
        %1273 = vmatpush2.msra.mxu0 0.0
        %1274 = vmatprep.subr.mxu0 0.0
        %1275 = vmatpush2.msra.mxu0 0.0
        %1276 = vmatprep.mubr.f32.mxu0 0.0
        %1277 = vmatmul.mubr.f32.gmra.mxu0 %v781
        %v1278 = vpop.f32.mrf.mxu0
        %v1279 = vadd.f32 %v1209, %v1278
        %v1280 = vpop.f32.mrf.mxu0
        %1281 = vdwg.mxu0
        %1282 = vst [vmem:[%s395] sm:$0xff] %v1279
        %1283 = vst [vmem:[%s402] sm:$0xff] %v781
        %s1284 = sand.u32 %s192, 1
        %s1285 = scalar_lea.sflag [#allocation4], %s1284
        %s1286 = sand.u32 %s192, 1
        %s1287 = smul.addr %s1286, 8
        %s1288 = scalar_lea.vmem [#allocation13], %s1287
        %s1289 = sand.u32 %s218, 1
        %s1290 = scalar_lea.sflag [#allocation15], %s1289
        %s1291 = sand.u32 %s218, 1
        %s1292 = smul.addr %s1291, 8
        %s1293 = scalar_lea.vmem [#allocation14], %s1292
        // Predicated region
        $region73: #{tpu_custom_call.1} parent=47 // pred_check
          %p1294 = pneg %p202
        $region74: #{tpu_custom_call.1} parent=47 // pred_check_branch
          %1296 = sbr.rel (%p1294) target = $region76
        $region75: #{tpu_custom_call.1} parent=47 // pred_region
          %s1298 = ssub.s32 128, 128
          %1299 = vsyncadd %s1285, %s1298
          %s1300 = smul.addr %s32, 128
          %s1301 = scalar_lea.hbm %s7, %s1300
          %s1303 = sshll.u32 %s1288, 4
          %s1304 = int_to_ptr.vmem [resolvable:$true] %s1303
          %1306 = dma.vmem_to_hbm [thread:$0]  %s1304, 128, %s1301, %s1285
        $region76: #{tpu_custom_call.1} parent=47 // pred_fallthru
          _
        // Predicated region
        $region77: #{tpu_custom_call.1} parent=47 // pred_check
          %p1307 = pneg %p228
        $region78: #{tpu_custom_call.1} parent=47 // pred_check_branch
          %1309 = sbr.rel (%p1307) target = $region80
        $region79: #{tpu_custom_call.1} parent=47 // pred_region
          %s1311 = ssub.s32 128, 128
          %1312 = vsyncadd %s1290, %s1311
          %s1313 = smul.addr %s32, 128
          %s1314 = scalar_lea.hbm %s8, %s1313
          %s1316 = sshll.u32 %s1293, 4
          %s1317 = int_to_ptr.vmem [resolvable:$true] %s1316
          %1319 = dma.vmem_to_hbm [thread:$0]  %s1317, 128, %s1314, %s1290
        $region80: #{tpu_custom_call.1} parent=47 // pred_fallthru
          _
      $region48: #{tpu_custom_call.1} parent=5 // pred_fallthru
        _
      %p1320 = scmp.le.s32.totalorder 2, %s27
      // Predicated region
      $region81: #{tpu_custom_call.1} parent=5 // pred_check
        %p1321 = pneg %p1320
      $region82: #{tpu_custom_call.1} parent=5 // pred_check_branch
        %1323 = sbr.rel (%p1321) target = $region84
      $region83: #{tpu_custom_call.1} parent=5 // pred_region
        %s1324 = ssub.s32 %s27, 2
        // Predicated region
        $region85: #{tpu_custom_call.1} parent=83 // pred_check
          %p1325 = pneg %p208
        $region86: #{tpu_custom_call.1} parent=83 // pred_check_branch
          %1327 = sbr.rel (%p1325) target = $region88
        $region87: #{tpu_custom_call.1} parent=83 // pred_region
          %s1328 = sand.u32 %s193, 1
          %s1329 = scalar_lea.sflag [#allocation4], %s1328
          %s1330 = sand.u32 %s193, 1
          %s1331 = smul.addr %s1330, 8
          %s1332 = scalar_lea.vmem [#allocation13], %s1331
          %1333 = dma.done %s1329, 128
        $region88: #{tpu_custom_call.1} parent=83 // pred_fallthru
          _
        // Predicated region
        $region89: #{tpu_custom_call.1} parent=83 // pred_check
          %p1334 = pneg %p234
        $region90: #{tpu_custom_call.1} parent=83 // pred_check_branch
          %1336 = sbr.rel (%p1334) target = $region92
        $region91: #{tpu_custom_call.1} parent=83 // pred_region
          %s1337 = sand.u32 %s219, 1
          %s1338 = scalar_lea.sflag [#allocation15], %s1337
          %s1339 = sand.u32 %s219, 1
          %s1340 = smul.addr %s1339, 8
          %s1341 = scalar_lea.vmem [#allocation14], %s1340
          %1342 = dma.done %s1338, 128
        $region92: #{tpu_custom_call.1} parent=83 // pred_fallthru
          _
      $region84: #{tpu_custom_call.1} parent=5 // pred_fallthru
        _
    $region6: #{tpu_custom_call.1} parent=1 // loop_footer
      %s31 = sadd.s32 1, %s27
    $region7: #{tpu_custom_call.1} parent=1 // loop_footer_branch
      %26 = sbr.rel target = $region3
    $region8: #{tpu_custom_call.1} parent=1 // loop_exit
      _
    %1343 = vsyncpa [#allocation3], 1
    %s1344 = scalar_lea.sflag [#allocation3], 1
    %1345 = vsyncpa %s1344, 1
    %1346 = vsyncpa [#allocation6], 1
    %1347 = vsyncpa [#allocation9], 1
    %1348 = vsyncpa [#allocation12], 1
    %1349 = vsyncpa [#allocation4], 1
    %s1350 = scalar_lea.sflag [#allocation4], 1
    %1351 = vsyncpa %s1350, 1
    %1352 = vsyncpa [#allocation15], 1
    %s1353 = scalar_lea.sflag [#allocation15], 1
    %1354 = vsyncpa %s1353, 1

// kernel: tpu_custom_call.1
$region0: #{tpu_custom_call.1}
  #allocation0 [shape = 'u32[]', space=smem, size = 0x4, offset = 0x4, fixed_abs, tag = 'smem constant byte address 0x4 - core index']
  #allocation1 [shape = 'u32[144,128]{1,0:T(1,128)}', space=vmem, size = 0x12000, scoped, tag = 'internal scratch']
  %s0 = inlined_call_operand.hbm [shape: f32[16,32], index: 0, kind: input, shape index: {}]
  %s1 = inlined_call_operand.hbm [shape: f32[32,640], index: 1, kind: input, shape index: {}]
  %s2 = inlined_call_operand.hbm [shape: f32[1,640], index: 2, kind: input, shape index: {}]
  %s3 = inlined_call_operand.hbm [shape: f32[128,128], index: 3, kind: input, shape index: {}]
  %s4 = inlined_call_operand.vmem [shape: f32[1,128], index: 4, kind: input, shape index: {}]
  %s5 = inlined_call_operand.hbm [shape: f32[128,512], index: 5, kind: input, shape index: {}]
  %s6 = inlined_call_operand.hbm [shape: f32[640,128], index: 6, kind: input, shape index: {}]
  %s7 = inlined_call_operand.hbm [shape: f32[16,128], index: 7, kind: output, shape index: {0}]
  %s8 = inlined_call_operand.hbm [shape: f32[16,128], index: 8, kind: output, shape index: {1}]
  %9 = xla_tuple %s7, %s8
  %s10 = sld [smem:[#allocation0]]
  $region93: #{tpu_custom_call.1} parent=0
    _
  %s12 = ssub.s32 1, %s10
  %s13 = scalar_select 0, %s12, %s10
  $region1: #{tpu_custom_call.1} parent=0
    #allocation2 [shape = 'u8[8192]{0}', space=vmem, size = 0x2000, scoped, tag = 'input window, operand 0']
    #allocation3 [shape = 's32[2]{0}', space=sflag, size = 0x8, scoped, tag = 'scoped memory for tpu_custom_call.1']
    #allocation4 [shape = 's32[2]{0}', space=sflag, size = 0x8, scoped, tag = 'scoped memory for tpu_custom_call.1']
    #allocation5 [shape = 'u8[81920]{0}', space=vmem, size = 0x14000, scoped, tag = 'input window, operand 1, single buffered']
    #allocation6 [shape = 's32[1]{0}', space=sflag, size = 0x4, scoped, tag = 'scoped memory for tpu_custom_call.1']
    #allocation7 [shape = 'u8[2560]{0}', space=vmem, size = 0xc00, scoped, tag = 'input window, operand 2, single buffered']
    #allocation8 [shape = 'u8[65536]{0}', space=vmem, size = 0x10000, scoped, tag = 'input window, operand 3, single buffered']
    #allocation9 [shape = 's32[1]{0}', space=sflag, size = 0x4, scoped, tag = 'scoped memory for tpu_custom_call.1']
    #allocation10 [shape = 'u8[262144]{0}', space=vmem, size = 0x40000, scoped, tag = 'input window, operand 5, single buffered']
    #allocation11 [shape = 'u8[327680]{0}', space=vmem, size = 0x50000, scoped, tag = 'input window, operand 6, single buffered']
    #allocation12 [shape = 's32[1]{0}', space=sflag, size = 0x4, scoped, tag = 'scoped memory for tpu_custom_call.1']
    #allocation13 [shape = 'u8[8192]{0}', space=vmem, size = 0x2000, scoped, tag = 'output window, operand 0']
    #allocation14 [shape = 'u8[8192]{0}', space=vmem, size = 0x2000, scoped, tag = 'output window, operand 1']
    #allocation15 [shape = 's32[2]{0}', space=sflag, size = 0x8, scoped, tag = 'scoped memory for tpu_custom_call.1']
    %14 = vsyncpa [#allocation3], 0
    %s15 = scalar_lea.sflag [#allocation3], 1
    %16 = vsyncpa %s15, 0
    %17 = vsyncpa [#allocation6], 0
    %18 = vsyncpa [#allocation9], 0
    %19 = vsyncpa [#allocation12], 0
    %20 = vsyncpa [#allocation4], 0
    %s21 = scalar_lea.sflag [#allocation4], 1
    %22 = vsyncpa %s21, 0
    %23 = vsyncpa [#allocation15], 0
    %s24 = scalar_lea.sflag [#allocation15], 1
    %25 = vsyncpa %s24, 0
    loop: start=0, step=1, limit=4
    $region2: #{tpu_custom_call.1} parent=1 // loop_pre_header
      _
    $region3: #{tpu_custom_call.1} parent=1 // loop_header
      %s27 = sphi 0, %s31
      %p28 = scmp.ge.s32.totalorder %s27, 4
      %s37 = sphi 0, %s39
      %s40 = sphi 0, %s37
      %s41 = sphi 0, %s40
      %s57 = sphi 0, %s41
      %s61 = sphi 0, %s61
      %s63 = sphi 0, %s61
      %s64 = sphi 0, %s63
      %s78 = sphi 0, %s64
      %s82 = sphi 0, %s82
      %s84 = sphi 0, %s82
      %s85 = sphi 0, %s84
      %s99 = sphi 0, %s85
      %s103 = sphi 0, %s103
      %s105 = sphi 0, %s103
      %s106 = sphi 0, %s105
      %s120 = sphi 0, %s106
      %s124 = sphi 0, %s124
      %s126 = sphi 0, %s124
      %s127 = sphi 0, %s126
      %s141 = sphi 0, %s127
      %s145 = sphi 0, %s145
      %s147 = sphi 0, %s145
      %s148 = sphi 0, %s147
      %s162 = sphi 0, %s148
      %s166 = sphi 0, %s166
      %s168 = sphi 0, %s166
      %s169 = sphi 0, %s168
      %s183 = sphi 0, %s169
      %s189 = sphi 0, %s191
      %s192 = sphi 0, %s189
      %s193 = sphi 0, %s192
      %s209 = sphi 0, %s193
      %s215 = sphi 0, %s217
      %s218 = sphi 0, %s215
      %s219 = sphi 0, %s218
      %s235 = sphi 0, %s219
    $region4: #{tpu_custom_call.1} parent=1 // loop_header_branch
      %30 = sbr.rel (%p28) target = $region8
    $region5: #{tpu_custom_call.1} parent=1 // loop_body
      %s32 = ssub.s32 %s27, 1
      %s33 = ssub.s32 %s27, 2
      %s34 = sadd.s32 %s27, 1
      %s35 = ssub.s32 %s27, %s34
      %p36 = scmp.eq.s32.totalorder %s35, 0
      %s38 = sadd.s32 %s37, 1
      %s39 = scalar_select %p36, %s37, %s38
      %p42 = pneg %p36
      %p43 = scmp.eq.s32.totalorder %s27, 1
      %p44 = por %p42, %p43
      %p45 = scmp.ne.s32.totalorder %s37, %s40
      %p46 = scmp.eq.s32.totalorder %s27, 0
      %p47 = por %p45, %p46
      %p48 = scmp.ne.s32.totalorder %s37, %s40
      %p49 = scmp.eq.s32.totalorder %s32, 1
      %p50 = por %p48, %p49
      %p51 = scmp.ne.s32.totalorder %s40, %s41
      %p52 = scmp.eq.s32.totalorder %s32, 0
      %p53 = por %p51, %p52
      %p54 = scmp.ne.s32.totalorder %s40, %s41
      %p55 = scmp.eq.s32.totalorder %s33, 1
      %p56 = por %p54, %p55
      %p58 = scmp.ne.s32.totalorder %s41, %s57
      %p59 = scmp.eq.s32.totalorder %s33, 0
      %p60 = por %p58, %p59
      %s62 = sadd.s32 %s61, 1
      %p65 = scmp.eq.s32.totalorder %s27, 1
      %p66 = scmp.ne.s32.totalorder %s61, %s63
      %p67 = scmp.eq.s32.totalorder %s27, 0
      %p68 = por %p66, %p67
      %p69 = scmp.ne.s32.totalorder %s61, %s63
      %p70 = scmp.eq.s32.totalorder %s32, 1
      %p71 = por %p69, %p70
      %p72 = scmp.ne.s32.totalorder %s63, %s64
      %p73 = scmp.eq.s32.totalorder %s32, 0
      %p74 = por %p72, %p73
      %p75 = scmp.ne.s32.totalorder %s63, %s64
      %p76 = scmp.eq.s32.totalorder %s33, 1
      %p77 = por %p75, %p76
      %p79 = scmp.ne.s32.totalorder %s64, %s78
      %p80 = scmp.eq.s32.totalorder %s33, 0
      %p81 = por %p79, %p80
      %s83 = sadd.s32 %s82, 1
      %p86 = scmp.eq.s32.totalorder %s27, 1
      %p87 = scmp.ne.s32.totalorder %s82, %s84
      %p88 = scmp.eq.s32.totalorder %s27, 0
      %p89 = por %p87, %p88
      %p90 = scmp.ne.s32.totalorder %s82, %s84
      %p91 = scmp.eq.s32.totalorder %s32, 1
      %p92 = por %p90, %p91
      %p93 = scmp.ne.s32.totalorder %s84, %s85
      %p94 = scmp.eq.s32.totalorder %s32, 0
      %p95 = por %p93, %p94
      %p96 = scmp.ne.s32.totalorder %s84, %s85
      %p97 = scmp.eq.s32.totalorder %s33, 1
      %p98 = por %p96, %p97
      %p100 = scmp.ne.s32.totalorder %s85, %s99
      %p101 = scmp.eq.s32.totalorder %s33, 0
      %p102 = por %p100, %p101
      %s104 = sadd.s32 %s103, 1
      %p107 = scmp.eq.s32.totalorder %s27, 1
      %p108 = scmp.ne.s32.totalorder %s103, %s105
      %p109 = scmp.eq.s32.totalorder %s27, 0
      %p110 = por %p108, %p109
      %p111 = scmp.ne.s32.totalorder %s103, %s105
      %p112 = scmp.eq.s32.totalorder %s32, 1
      %p113 = por %p111, %p112
      %p114 = scmp.ne.s32.totalorder %s105, %s106
      %p115 = scmp.eq.s32.totalorder %s32, 0
      %p116 = por %p114, %p115
      %p117 = scmp.ne.s32.totalorder %s105, %s106
      %p118 = scmp.eq.s32.totalorder %s33, 1
      %p119 = por %p117, %p118
      %p121 = scmp.ne.s32.totalorder %s106, %s120
      %p122 = scmp.eq.s32.totalorder %s33, 0
      %p123 = por %p121, %p122
      %s125 = sadd.s32 %s124, 1
      %p128 = scmp.eq.s32.totalorder %s27, 1
      %p129 = scmp.ne.s32.totalorder %s124, %s126
      %p130 = scmp.eq.s32.totalorder %s27, 0
      %p131 = por %p129, %p130
      %p132 = scmp.ne.s32.totalorder %s124, %s126
      %p133 = scmp.eq.s32.totalorder %s32, 1
      %p134 = por %p132, %p133
      %p135 = scmp.ne.s32.totalorder %s126, %s127
      %p136 = scmp.eq.s32.totalorder %s32, 0
      %p137 = por %p135, %p136
      %p138 = scmp.ne.s32.totalorder %s126, %s127
      %p139 = scmp.eq.s32.totalorder %s33, 1
      %p140 = por %p138, %p139
      %p142 = scmp.ne.s32.totalorder %s127, %s141
      %p143 = scmp.eq.s32.totalorder %s33, 0
      %p144 = por %p142, %p143
      %s146 = sadd.s32 %s145, 1
      %p149 = scmp.eq.s32.totalorder %s27, 1
      %p150 = scmp.ne.s32.totalorder %s145, %s147
      %p151 = scmp.eq.s32.totalorder %s27, 0
      %p152 = por %p150, %p151
      %p153 = scmp.ne.s32.totalorder %s145, %s147
      %p154 = scmp.eq.s32.totalorder %s32, 1
      %p155 = por %p153, %p154
      %p156 = scmp.ne.s32.totalorder %s147, %s148
      %p157 = scmp.eq.s32.totalorder %s32, 0
      %p158 = por %p156, %p157
      %p159 = scmp.ne.s32.totalorder %s147, %s148
      %p160 = scmp.eq.s32.totalorder %s33, 1
      %p161 = por %p159, %p160
      %p163 = scmp.ne.s32.totalorder %s148, %s162
      %p164 = scmp.eq.s32.totalorder %s33, 0
      %p165 = por %p163, %p164
      %s167 = sadd.s32 %s166, 1
      %p170 = scmp.eq.s32.totalorder %s27, 1
      %p171 = scmp.ne.s32.totalorder %s166, %s168
      %p172 = scmp.eq.s32.totalorder %s27, 0
      %p173 = por %p171, %p172
      %p174 = scmp.ne.s32.totalorder %s166, %s168
      %p175 = scmp.eq.s32.totalorder %s32, 1
      %p176 = por %p174, %p175
      %p177 = scmp.ne.s32.totalorder %s168, %s169
      %p178 = scmp.eq.s32.totalorder %s32, 0
      %p179 = por %p177, %p178
      %p180 = scmp.ne.s32.totalorder %s168, %s169
      %p181 = scmp.eq.s32.totalorder %s33, 1
      %p182 = por %p180, %p181
      %p184 = scmp.ne.s32.totalorder %s169, %s183
      %p185 = scmp.eq.s32.totalorder %s33, 0
      %p186 = por %p184, %p185
      %s187 = ssub.s32 %s27, %s34
      %p188 = scmp.eq.s32.totalorder %s187, 0
      %s190 = sadd.s32 %s189, 1
      %s191 = scalar_select %p188, %s189, %s190
      %p194 = pneg %p188
      %p195 = scmp.eq.s32.totalorder %s27, 1
      %p196 = por %p194, %p195
      %p197 = scmp.ne.s32.totalorder %s189, %s192
      %p198 = scmp.eq.s32.totalorder %s27, 0
      %p199 = por %p197, %p198
      %p200 = scmp.ne.s32.totalorder %s189, %s192
      %p201 = scmp.eq.s32.totalorder %s32, 1
      %p202 = por %p200, %p201
      %p203 = scmp.ne.s32.totalorder %s192, %s193
      %p204 = scmp.eq.s32.totalorder %s32, 0
      %p205 = por %p203, %p204
      %p206 = scmp.ne.s32.totalorder %s192, %s193
      %p207 = scmp.eq.s32.totalorder %s33, 1
      %p208 = por %p206, %p207
      %p210 = scmp.ne.s32.totalorder %s193, %s209
      %p211 = scmp.eq.s32.totalorder %s33, 0
      %p212 = por %p210, %p211
      %s213 = ssub.s32 %s27, %s34
      %p214 = scmp.eq.s32.totalorder %s213, 0
      %s216 = sadd.s32 %s215, 1
      %s217 = scalar_select %p214, %s215, %s216
      %p220 = pneg %p214
      %p221 = scmp.eq.s32.totalorder %s27, 1
      %p222 = por %p220, %p221
      %p223 = scmp.ne.s32.totalorder %s215, %s218
      %p224 = scmp.eq.s32.totalorder %s27, 0
      %p225 = por %p223, %p224
      %p226 = scmp.ne.s32.totalorder %s215, %s218
      %p227 = scmp.eq.s32.totalorder %s32, 1
      %p228 = por %p226, %p227
      %p229 = scmp.ne.s32.totalorder %s218, %s219
      %p230 = scmp.eq.s32.totalorder %s32, 0
      %p231 = por %p229, %p230
      %p232 = scmp.ne.s32.totalorder %s218, %s219
      %p233 = scmp.eq.s32.totalorder %s33, 1
      %p234 = por %p232, %p233
      %p236 = scmp.ne.s32.totalorder %s219, %s235
      %p237 = scmp.eq.s32.totalorder %s33, 0
      %p238 = por %p236, %p237
      %p239 = scmp.le.s32.totalorder 1, %s27
      %p240 = scmp.lt.s32.totalorder %s27, 3
      %p241 = pnand %p239, %p240
      %p242 = pneg %p241
      // Predicated region
      $region9: #{tpu_custom_call.1} parent=5 // pred_check
        _
      $region10: #{tpu_custom_call.1} parent=5 // pred_check_branch
        %244 = sbr.rel (%p241) target = $region12
      $region11: #{tpu_custom_call.1} parent=5 // pred_region
        %s245 = ssub.s32 %s27, 1
        // Predicated region
        $region13: #{tpu_custom_call.1} parent=11 // pred_check
          %p246 = pneg %p74
        $region14: #{tpu_custom_call.1} parent=11 // pred_check_branch
          %248 = sbr.rel (%p246) target = $region16
        $region15: #{tpu_custom_call.1} parent=11 // pred_region
          %s250 = ssub.s32 2560, 2560
          %251 = vsyncadd [#allocation6], %s250
          %s252 = sshll.u32 [#allocation5], 4
          %s253 = int_to_ptr.vmem [resolvable:$true] %s252
          %258 = dma.hbm_to_vmem [thread:$0]  %s1, 2560, %s253, [#allocation6], 640, 640, 40
        $region16: #{tpu_custom_call.1} parent=11 // pred_fallthru
          _
        // Predicated region
        $region17: #{tpu_custom_call.1} parent=11 // pred_check
          %p259 = pneg %p95
        $region18: #{tpu_custom_call.1} parent=11 // pred_check_branch
          %261 = sbr.rel (%p259) target = $region20
        $region19: #{tpu_custom_call.1} parent=11 // pred_region
          %s263 = ssub.s32 80, 80
          %264 = vsyncadd [#allocation6], %s263
          %s266 = sshll.u32 [#allocation7], 4
          %s267 = int_to_ptr.vmem [resolvable:$true] %s266
          %269 = dma.hbm_to_vmem [thread:$0]  %s2, 80, %s267, [#allocation6]
        $region20: #{tpu_custom_call.1} parent=11 // pred_fallthru
          _
        // Predicated region
        $region21: #{tpu_custom_call.1} parent=11 // pred_check
          %p270 = pneg %p116
        $region22: #{tpu_custom_call.1} parent=11 // pred_check_branch
          %272 = sbr.rel (%p270) target = $region24
        $region23: #{tpu_custom_call.1} parent=11 // pred_region
          %s274 = ssub.s32 2048, 2048
          %275 = vsyncadd [#allocation9], %s274
          %s276 = sshll.u32 [#allocation8], 4
          %s277 = int_to_ptr.vmem [resolvable:$true] %s276
          %282 = dma.hbm_to_vmem [thread:$0]  %s3, 2048, %s277, [#allocation9], 128, 128, 8
        $region24: #{tpu_custom_call.1} parent=11 // pred_fallthru
          _
        // Predicated region
        $region25: #{tpu_custom_call.1} parent=11 // pred_check
          %p283 = pneg %p137
        $region26: #{tpu_custom_call.1} parent=11 // pred_check_branch
          %285 = sbr.rel (%p283) target = $region28
        $region27: #{tpu_custom_call.1} parent=11 // pred_region
          _
        $region28: #{tpu_custom_call.1} parent=11 // pred_fallthru
          _
        // Predicated region
        $region29: #{tpu_custom_call.1} parent=11 // pred_check
          %p286 = pneg %p158
        $region30: #{tpu_custom_call.1} parent=11 // pred_check_branch
          %288 = sbr.rel (%p286) target = $region32
        $region31: #{tpu_custom_call.1} parent=11 // pred_region
          %s290 = ssub.s32 8192, 8192
          %291 = vsyncadd [#allocation9], %s290
          %s292 = sshll.u32 [#allocation10], 4
          %s293 = int_to_ptr.vmem [resolvable:$true] %s292
          %298 = dma.hbm_to_vmem [thread:$0]  %s5, 8192, %s293, [#allocation9], 512, 512, 32
        $region32: #{tpu_custom_call.1} parent=11 // pred_fallthru
          _
        // Predicated region
        $region33: #{tpu_custom_call.1} parent=11 // pred_check
          %p299 = pneg %p179
        $region34: #{tpu_custom_call.1} parent=11 // pred_check_branch
          %301 = sbr.rel (%p299) target = $region36
        $region35: #{tpu_custom_call.1} parent=11 // pred_region
          %s303 = ssub.s32 10240, 10240
          %304 = vsyncadd [#allocation12], %s303
          %s305 = sshll.u32 [#allocation11], 4
          %s306 = int_to_ptr.vmem [resolvable:$true] %s305
          %311 = dma.hbm_to_vmem [thread:$0]  %s6, 10240, %s306, [#allocation12], 128, 128, 8
        $region36: #{tpu_custom_call.1} parent=11 // pred_fallthru
          _
      $region12: #{tpu_custom_call.1} parent=5 // pred_fallthru
        _
      %p312 = scmp.lt.s32.totalorder %s27, 2
      // Predicated region
      $region37: #{tpu_custom_call.1} parent=5 // pred_check
        %p313 = pneg %p312
      $region38: #{tpu_custom_call.1} parent=5 // pred_check_branch
        %315 = sbr.rel (%p313) target = $region40
      $region39: #{tpu_custom_call.1} parent=5 // pred_region
        // Predicated region
        $region41: #{tpu_custom_call.1} parent=39 // pred_check
          %p316 = pneg %p47
        $region42: #{tpu_custom_call.1} parent=39 // pred_check_branch
          %318 = sbr.rel (%p316) target = $region44
        $region43: #{tpu_custom_call.1} parent=39 // pred_region
          %s319 = sand.u32 %s37, 1
          %s320 = scalar_lea.sflag [#allocation3], %s319
          %s321 = sand.u32 %s37, 1
          %s322 = smul.addr %s321, 8
          %s323 = scalar_lea.vmem [#allocation2], %s322
          %s325 = ssub.s32 128, 128
          %326 = vsyncadd %s320, %s325
          %s327 = smul.addr %s27, 128
          %s328 = scalar_lea.hbm %s0, %s327
          %s330 = sshll.u32 %s323, 4
          %s331 = int_to_ptr.vmem [resolvable:$true] %s330
          %333 = dma.hbm_to_vmem [thread:$0]  %s328, 128, %s331, %s320
        $region44: #{tpu_custom_call.1} parent=39 // pred_fallthru
          _
      $region40: #{tpu_custom_call.1} parent=5 // pred_fallthru
        _
      %p334 = scmp.le.s32.totalorder 1, %s27
      %p335 = scmp.lt.s32.totalorder %s27, 3
      %p336 = pnand %p334, %p335
      %p337 = pneg %p336
      // Predicated region
      $region45: #{tpu_custom_call.1} parent=5 // pred_check
        _
      $region46: #{tpu_custom_call.1} parent=5 // pred_check_branch
        %339 = sbr.rel (%p336) target = $region48
      $region47: #{tpu_custom_call.1} parent=5 // pred_region
        %s340 = ssub.s32 %s27, 1
        %s341 = sand.u32 %s40, 1
        %s342 = scalar_lea.sflag [#allocation3], %s341
        %s343 = sand.u32 %s40, 1
        %s344 = smul.addr %s343, 8
        %s345 = scalar_lea.vmem [#allocation2], %s344
        // Predicated region
        $region49: #{tpu_custom_call.1} parent=47 // pred_check
          %p346 = pneg %p53
        $region50: #{tpu_custom_call.1} parent=47 // pred_check_branch
          %348 = sbr.rel (%p346) target = $region52
        $region51: #{tpu_custom_call.1} parent=47 // pred_region
          %349 = dma.done %s342, 128
        $region52: #{tpu_custom_call.1} parent=47 // pred_fallthru
          _
        // Predicated region
        $region53: #{tpu_custom_call.1} parent=47 // pred_check
          %p350 = pneg %p74
        $region54: #{tpu_custom_call.1} parent=47 // pred_check_branch
          %352 = sbr.rel (%p350) target = $region56
        $region55: #{tpu_custom_call.1} parent=47 // pred_region
          %353 = dma.done [#allocation6], 2560
        $region56: #{tpu_custom_call.1} parent=47 // pred_fallthru
          _
        // Predicated region
        $region57: #{tpu_custom_call.1} parent=47 // pred_check
          %p354 = pneg %p95
        $region58: #{tpu_custom_call.1} parent=47 // pred_check_branch
          %356 = sbr.rel (%p354) target = $region60
        $region59: #{tpu_custom_call.1} parent=47 // pred_region
          %357 = dma.done [#allocation6], 80
        $region60: #{tpu_custom_call.1} parent=47 // pred_fallthru
          _
        // Predicated region
        $region61: #{tpu_custom_call.1} parent=47 // pred_check
          %p358 = pneg %p116
        $region62: #{tpu_custom_call.1} parent=47 // pred_check_branch
          %360 = sbr.rel (%p358) target = $region64
        $region63: #{tpu_custom_call.1} parent=47 // pred_region
          %361 = dma.done [#allocation9], 2048
        $region64: #{tpu_custom_call.1} parent=47 // pred_fallthru
          _
        // Predicated region
        $region65: #{tpu_custom_call.1} parent=47 // pred_check
          %p362 = pneg %p158
        $region66: #{tpu_custom_call.1} parent=47 // pred_check_branch
          %364 = sbr.rel (%p362) target = $region68
        $region67: #{tpu_custom_call.1} parent=47 // pred_region
          %365 = dma.done [#allocation9], 8192
        $region68: #{tpu_custom_call.1} parent=47 // pred_fallthru
          _
        // Predicated region
        $region69: #{tpu_custom_call.1} parent=47 // pred_check
          %p366 = pneg %p179
        $region70: #{tpu_custom_call.1} parent=47 // pred_check_branch
          %368 = sbr.rel (%p366) target = $region72
        $region71: #{tpu_custom_call.1} parent=47 // pred_region
          %369 = dma.done [#allocation12], 10240
        $region72: #{tpu_custom_call.1} parent=47 // pred_fallthru
          _
        %s370 = sand.u32 %s40, 1
        %s371 = scalar_lea.sflag [#allocation3], %s370
        %s372 = sand.u32 %s40, 1
        %s373 = smul.addr %s372, 8
        %s374 = scalar_lea.vmem [#allocation2], %s373
        %p375 = pneg %p53
        %p376 = pneg %p50
        %p377 = pneg %p74
        %p378 = pneg %p71
        %p379 = pneg %p95
        %p380 = pneg %p92
        %p381 = pneg %p116
        %p382 = pneg %p113
        %p383 = pneg %p137
        %p384 = pneg %p134
        %p385 = pneg %p158
        %p386 = pneg %p155
        %p387 = pneg %p179
        %p388 = pneg %p176
        %p389 = pneg %p205
        %p390 = pneg %p202
        %s391 = sand.u32 %s192, 1
        %s392 = scalar_lea.sflag [#allocation4], %s391
        %s393 = sand.u32 %s192, 1
        %s394 = smul.addr %s393, 8
        %s395 = scalar_lea.vmem [#allocation13], %s394
        %p396 = pneg %p231
        %p397 = pneg %p228
        %s398 = sand.u32 %s218, 1
        %s399 = scalar_lea.sflag [#allocation15], %s398
        %s400 = sand.u32 %s218, 1
        %s401 = smul.addr %s400, 8
        %s402 = scalar_lea.vmem [#allocation14], %s401
        %v403 = vld [vmem:[%s345] sm:$0xff]
        %v404 = vld [vmem:[#allocation5] sm:$0xff]
        %v405 = vld [vmem:[#allocation5 + $0x8] sm:$0xff]
        %v406 = vld [vmem:[#allocation5 + $0x10] sm:$0xff]
        %v407 = vld [vmem:[#allocation5 + $0x18] sm:$0xff]
        %v408 = vld [vmem:[#allocation5 + $0x20] sm:$0xff]
        %v409 = vld [vmem:[#allocation5 + $0x28] sm:$0xff]
        %v410 = vld [vmem:[#allocation5 + $0x30] sm:$0xff]
        %v411 = vld [vmem:[#allocation5 + $0x38] sm:$0xff]
        %v412 = vld [vmem:[#allocation5 + $0x40] sm:$0xff]
        %v413 = vld [vmem:[#allocation5 + $0x48] sm:$0xff]
        %v414 = vld [vmem:[#allocation5 + $0x50] sm:$0xff]
        %v415 = vld [vmem:[#allocation5 + $0x58] sm:$0xff]
        %v416 = vld [vmem:[#allocation5 + $0x60] sm:$0xff]
        %v417 = vld [vmem:[#allocation5 + $0x68] sm:$0xff]
        %v418 = vld [vmem:[#allocation5 + $0x70] sm:$0xff]
        %v419 = vld [vmem:[#allocation5 + $0x78] sm:$0xff]
        %v420 = vld [vmem:[#allocation5 + $0x80] sm:$0xff]
        %v421 = vld [vmem:[#allocation5 + $0x88] sm:$0xff]
        %v422 = vld [vmem:[#allocation5 + $0x90] sm:$0xff]
        %v423 = vld [vmem:[#allocation5 + $0x98] sm:$0xff]
        %v424 = vld [vmem:[#allocation7] sm:$0x1f]
        %v426 = vlaneseq
        %v427 = vshrl.u32 %v426, 7
        %v428 = vsub.s32 0, %v427
        %v429 = vrot.slane %v424, %v428
        %v430 = vlaneseq
        %v431 = vshrl.u32 %v430, 7
        %v432 = vsub.s32 1, %v431
        %v433 = vrot.slane %v424, %v432
        %v434 = vlaneseq
        %v435 = vshrl.u32 %v434, 7
        %v436 = vsub.s32 2, %v435
        %v437 = vrot.slane %v424, %v436
        %v438 = vlaneseq
        %v439 = vshrl.u32 %v438, 7
        %v440 = vsub.s32 3, %v439
        %v441 = vrot.slane %v424, %v440
        %v442 = vlaneseq
        %v443 = vshrl.u32 %v442, 7
        %v444 = vsub.s32 4, %v443
        %v445 = vrot.slane %v424, %v444
        %vm451 = vcmask 261120
        %v453 = vsel %vm451, %v403, 0
        %455 = vmatprep.subr.mxu0 0.0
        %456 = vmatpush1.msra.mxu0 0.0
        %457 = vmatprep.subr.mxu0 0.0
        %458 = vmatpush1.msra.mxu0 0.0
        %459 = vmatprep.subr.mxu0 0.0
        %460 = vmatpush1.msra.mxu0 0.0
        %461 = vmatprep.subr.mxu0 0.0
        %462 = vmatpush1.msra.mxu0 0.0
        %463 = vmatprep.subr.mxu0 0.0
        %464 = vmatpush1.msra.mxu0 0.0
        %465 = vmatprep.subr.mxu0 0.0
        %466 = vmatpush1.msra.mxu0 0.0
        %467 = vmatprep.subr.mxu0 0.0
        %468 = vmatpush1.msra.mxu0 0.0
        %469 = vmatprep.subr.mxu0 0.0
        %470 = vmatpush1.msra.mxu0 0.0
        %471 = vmatprep.subr.mxu0 0.0
        %472 = vmatpush1.msra.mxu0 0.0
        %473 = vmatprep.subr.mxu0 0.0
        %474 = vmatpush1.msra.mxu0 0.0
        %475 = vmatprep.subr.mxu0 0.0
        %476 = vmatpush1.msra.mxu0 0.0
        %477 = vmatprep.subr.mxu0 0.0
        %478 = vmatpush1.msra.mxu0 0.0
        %479 = vmatprep.subr.mxu0 %v420
        %480 = vmatpush1.msra.mxu0 %v419
        %481 = vmatprep.subr.mxu0 %v415
        %482 = vmatpush1.msra.mxu0 %v414
        %483 = vmatprep.subr.mxu0 %v410
        %484 = vmatpush1.msra.mxu0 %v409
        %485 = vmatprep.subr.mxu0 %v405
        %486 = vmatpush1.msra.mxu0 %v404
        %487 = vmatprep.subr.mxu0 0.0
        %488 = vmatpush2.msra.mxu0 0.0
        %489 = vmatprep.subr.mxu0 0.0
        %490 = vmatpush2.msra.mxu0 0.0
        %491 = vmatprep.subr.mxu0 0.0
        %492 = vmatpush2.msra.mxu0 0.0
        %493 = vmatprep.subr.mxu0 0.0
        %494 = vmatpush2.msra.mxu0 0.0
        %495 = vmatprep.subr.mxu0 0.0
        %496 = vmatpush2.msra.mxu0 0.0
        %497 = vmatprep.subr.mxu0 0.0
        %498 = vmatpush2.msra.mxu0 0.0
        %499 = vmatprep.subr.mxu0 0.0
        %500 = vmatpush2.msra.mxu0 0.0
        %501 = vmatprep.subr.mxu0 0.0
        %502 = vmatpush2.msra.mxu0 0.0
        %503 = vmatprep.subr.mxu0 0.0
        %504 = vmatpush2.msra.mxu0 0.0
        %505 = vmatprep.subr.mxu0 0.0
        %506 = vmatpush2.msra.mxu0 0.0
        %507 = vmatprep.subr.mxu0 0.0
        %508 = vmatpush2.msra.mxu0 0.0
        %509 = vmatprep.subr.mxu0 0.0
        %510 = vmatpush2.msra.mxu0 0.0
        %511 = vmatprep.subr.mxu0 0.0
        %512 = vmatpush2.msra.mxu0 0.0
        %513 = vmatprep.subr.mxu0 0.0
        %514 = vmatpush2.msra.mxu0 0.0
        %515 = vmatprep.subr.mxu0 0.0
        %516 = vmatpush2.msra.mxu0 0.0
        %517 = vmatprep.subr.mxu0 0.0
        %518 = vmatpush2.msra.mxu0 0.0
        %519 = vmatprep.mubr.f32.mxu0 0.0
        %520 = vmatmul.mubr.f32.gmra.mxu0 %v453
        %v521 = vpop.f32.mrf.mxu0
        %v522 = vadd.f32 %v429, %v521
        %v523 = vpop.f32.mrf.mxu0
        %v524 = vadd.f32 %v433, %v523
        %525 = vdwg.mxu0
        %526 = vmatprep.subr.mxu0 0.0
        %527 = vmatpush1.msra.mxu0 0.0
        %528 = vmatprep.subr.mxu0 0.0
        %529 = vmatpush1.msra.mxu0 0.0
        %530 = vmatprep.subr.mxu0 0.0
        %531 = vmatpush1.msra.mxu0 0.0
        %532 = vmatprep.subr.mxu0 0.0
        %533 = vmatpush1.msra.mxu0 0.0
        %534 = vmatprep.subr.mxu0 0.0
        %535 = vmatpush1.msra.mxu0 0.0
        %536 = vmatprep.subr.mxu0 0.0
        %537 = vmatpush1.msra.mxu0 0.0
        %538 = vmatprep.subr.mxu0 0.0
        %539 = vmatpush1.msra.mxu0 0.0
        %540 = vmatprep.subr.mxu0 0.0
        %541 = vmatpush1.msra.mxu0 0.0
        %542 = vmatprep.subr.mxu0 0.0
        %543 = vmatpush1.msra.mxu0 0.0
        %544 = vmatprep.subr.mxu0 0.0
        %545 = vmatpush1.msra.mxu0 0.0
        %546 = vmatprep.subr.mxu0 0.0
        %547 = vmatpush1.msra.mxu0 0.0
        %548 = vmatprep.subr.mxu0 0.0
        %549 = vmatpush1.msra.mxu0 0.0
        %550 = vmatprep.subr.mxu0 %v422
        %551 = vmatpush1.msra.mxu0 %v421
        %552 = vmatprep.subr.mxu0 %v417
        %553 = vmatpush1.msra.mxu0 %v416
        %554 = vmatprep.subr.mxu0 %v412
        %555 = vmatpush1.msra.mxu0 %v411
        %556 = vmatprep.subr.mxu0 %v407
        %557 = vmatpush1.msra.mxu0 %v406
        %558 = vmatprep.subr.mxu0 0.0
        %559 = vmatpush2.msra.mxu0 0.0
        %560 = vmatprep.subr.mxu0 0.0
        %561 = vmatpush2.msra.mxu0 0.0
        %562 = vmatprep.subr.mxu0 0.0
        %563 = vmatpush2.msra.mxu0 0.0
        %564 = vmatprep.subr.mxu0 0.0
        %565 = vmatpush2.msra.mxu0 0.0
        %566 = vmatprep.subr.mxu0 0.0
        %567 = vmatpush2.msra.mxu0 0.0
        %568 = vmatprep.subr.mxu0 0.0
        %569 = vmatpush2.msra.mxu0 0.0
        %570 = vmatprep.subr.mxu0 0.0
        %571 = vmatpush2.msra.mxu0 0.0
        %572 = vmatprep.subr.mxu0 0.0
        %573 = vmatpush2.msra.mxu0 0.0
        %574 = vmatprep.subr.mxu0 0.0
        %575 = vmatpush2.msra.mxu0 0.0
        %576 = vmatprep.subr.mxu0 0.0
        %577 = vmatpush2.msra.mxu0 0.0
        %578 = vmatprep.subr.mxu0 0.0
        %579 = vmatpush2.msra.mxu0 0.0
        %580 = vmatprep.subr.mxu0 0.0
        %581 = vmatpush2.msra.mxu0 0.0
        %582 = vmatprep.subr.mxu0 0.0
        %583 = vmatpush2.msra.mxu0 0.0
        %584 = vmatprep.subr.mxu0 0.0
        %585 = vmatpush2.msra.mxu0 0.0
        %586 = vmatprep.subr.mxu0 0.0
        %587 = vmatpush2.msra.mxu0 0.0
        %588 = vmatprep.subr.mxu0 0.0
        %589 = vmatpush2.msra.mxu0 0.0
        %590 = vmatprep.mubr.f32.mxu0 0.0
        %591 = vmatmul.mubr.f32.gmra.mxu0 %v453
        %v592 = vpop.f32.mrf.mxu0
        %v593 = vadd.f32 %v437, %v592
        %v594 = vpop.f32.mrf.mxu0
        %v595 = vadd.f32 %v441, %v594
        %596 = vdwg.mxu0
        %597 = vmatprep.subr.mxu0 0.0
        %598 = vmatpush1.msra.mxu0 0.0
        %599 = vmatprep.subr.mxu0 0.0
        %600 = vmatpush1.msra.mxu0 0.0
        %601 = vmatprep.subr.mxu0 0.0
        %602 = vmatpush1.msra.mxu0 0.0
        %603 = vmatprep.subr.mxu0 0.0
        %604 = vmatpush1.msra.mxu0 0.0
        %605 = vmatprep.subr.mxu0 0.0
        %606 = vmatpush1.msra.mxu0 0.0
        %607 = vmatprep.subr.mxu0 0.0
        %608 = vmatpush1.msra.mxu0 0.0
        %609 = vmatprep.subr.mxu0 0.0
        %610 = vmatpush1.msra.mxu0 0.0
        %611 = vmatprep.subr.mxu0 0.0
        %612 = vmatpush1.msra.mxu0 0.0
        %613 = vmatprep.subr.mxu0 0.0
        %614 = vmatpush1.msra.mxu0 0.0
        %615 = vmatprep.subr.mxu0 0.0
        %616 = vmatpush1.msra.mxu0 0.0
        %617 = vmatprep.subr.mxu0 0.0
        %618 = vmatpush1.msra.mxu0 0.0
        %619 = vmatprep.subr.mxu0 0.0
        %620 = vmatpush1.msra.mxu0 0.0
        %621 = vmatprep.subr.mxu0 0.0
        %622 = vmatpush1.msra.mxu0 %v423
        %623 = vmatprep.subr.mxu0 0.0
        %624 = vmatpush1.msra.mxu0 %v418
        %625 = vmatprep.subr.mxu0 0.0
        %626 = vmatpush1.msra.mxu0 %v413
        %627 = vmatprep.subr.mxu0 0.0
        %628 = vmatpush1.msra.mxu0 %v408
        %629 = vmatprep.subr.mxu0 0.0
        %630 = vmatpush2.msra.mxu0 0.0
        %631 = vmatprep.subr.mxu0 0.0
        %632 = vmatpush2.msra.mxu0 0.0
        %633 = vmatprep.subr.mxu0 0.0
        %634 = vmatpush2.msra.mxu0 0.0
        %635 = vmatprep.subr.mxu0 0.0
        %636 = vmatpush2.msra.mxu0 0.0
        %637 = vmatprep.subr.mxu0 0.0
        %638 = vmatpush2.msra.mxu0 0.0
        %639 = vmatprep.subr.mxu0 0.0
        %640 = vmatpush2.msra.mxu0 0.0
        %641 = vmatprep.subr.mxu0 0.0
        %642 = vmatpush2.msra.mxu0 0.0
        %643 = vmatprep.subr.mxu0 0.0
        %644 = vmatpush2.msra.mxu0 0.0
        %645 = vmatprep.subr.mxu0 0.0
        %646 = vmatpush2.msra.mxu0 0.0
        %647 = vmatprep.subr.mxu0 0.0
        %648 = vmatpush2.msra.mxu0 0.0
        %649 = vmatprep.subr.mxu0 0.0
        %650 = vmatpush2.msra.mxu0 0.0
        %651 = vmatprep.subr.mxu0 0.0
        %652 = vmatpush2.msra.mxu0 0.0
        %653 = vmatprep.subr.mxu0 0.0
        %654 = vmatpush2.msra.mxu0 0.0
        %655 = vmatprep.subr.mxu0 0.0
        %656 = vmatpush2.msra.mxu0 0.0
        %657 = vmatprep.subr.mxu0 0.0
        %658 = vmatpush2.msra.mxu0 0.0
        %659 = vmatprep.subr.mxu0 0.0
        %660 = vmatpush2.msra.mxu0 0.0
        %661 = vmatprep.mubr.f32.mxu0 0.0
        %662 = vmatmul.mubr.f32.gmra.mxu0 %v453
        %v663 = vpop.f32.mrf.mxu0
        %v664 = vadd.f32 %v445, %v663
        %v665 = vpop.f32.mrf.mxu0
        %666 = vdwg.mxu0
        %v667 = vmax.f32 %v522, 0.0
        %v668 = vmax.f32 %v524, 0.0
        %v669 = vmax.f32 %v593, 0.0
        %v670 = vmax.f32 %v595, 0.0
        %v671 = vmax.f32 %v664, 0.0
        %v672 = vld [vmem:[#allocation8] sm:$0xff]
        %v673 = vld [vmem:[#allocation8 + $0x8] sm:$0xff]
        %v674 = vld [vmem:[#allocation8 + $0x10] sm:$0xff]
        %v675 = vld [vmem:[#allocation8 + $0x18] sm:$0xff]
        %v676 = vld [vmem:[#allocation8 + $0x20] sm:$0xff]
        %v677 = vld [vmem:[#allocation8 + $0x28] sm:$0xff]
        %v678 = vld [vmem:[#allocation8 + $0x30] sm:$0xff]
        %v679 = vld [vmem:[#allocation8 + $0x38] sm:$0xff]
        %v680 = vld [vmem:[#allocation8 + $0x40] sm:$0xff]
        %v681 = vld [vmem:[#allocation8 + $0x48] sm:$0xff]
        %v682 = vld [vmem:[#allocation8 + $0x50] sm:$0xff]
        %v683 = vld [vmem:[#allocation8 + $0x58] sm:$0xff]
        %v684 = vld [vmem:[#allocation8 + $0x60] sm:$0xff]
        %v685 = vld [vmem:[#allocation8 + $0x68] sm:$0xff]
        %v686 = vld [vmem:[#allocation8 + $0x70] sm:$0xff]
        %v687 = vld [vmem:[#allocation8 + $0x78] sm:$0xff]
        %v688 = vld [vmem:[%s4] sm:$0x1]
        %v690 = vlaneseq
        %v691 = vshrl.u32 %v690, 7
        %v692 = vsub.s32 0, %v691
        %v693 = vrot.slane %v688, %v692
        %695 = vmatprep.subr.mxu0 0.0
        %696 = vmatpush1.msra.mxu0 %v687
        %697 = vmatprep.subr.mxu0 0.0
        %698 = vmatpush1.msra.mxu0 %v686
        %699 = vmatprep.subr.mxu0 0.0
        %700 = vmatpush1.msra.mxu0 %v685
        %701 = vmatprep.subr.mxu0 0.0
        %702 = vmatpush1.msra.mxu0 %v684
        %703 = vmatprep.subr.mxu0 0.0
        %704 = vmatpush1.msra.mxu0 %v683
        %705 = vmatprep.subr.mxu0 0.0
        %706 = vmatpush1.msra.mxu0 %v682
        %707 = vmatprep.subr.mxu0 0.0
        %708 = vmatpush1.msra.mxu0 %v681
        %709 = vmatprep.subr.mxu0 0.0
        %710 = vmatpush1.msra.mxu0 %v680
        %711 = vmatprep.subr.mxu0 0.0
        %712 = vmatpush1.msra.mxu0 %v679
        %713 = vmatprep.subr.mxu0 0.0
        %714 = vmatpush1.msra.mxu0 %v678
        %715 = vmatprep.subr.mxu0 0.0
        %716 = vmatpush1.msra.mxu0 %v677
        %717 = vmatprep.subr.mxu0 0.0
        %718 = vmatpush1.msra.mxu0 %v676
        %719 = vmatprep.subr.mxu0 0.0
        %720 = vmatpush1.msra.mxu0 %v675
        %721 = vmatprep.subr.mxu0 0.0
        %722 = vmatpush1.msra.mxu0 %v674
        %723 = vmatprep.subr.mxu0 0.0
        %724 = vmatpush1.msra.mxu0 %v673
        %725 = vmatprep.subr.mxu0 0.0
        %726 = vmatpush1.msra.mxu0 %v672
        %727 = vmatprep.subr.mxu0 0.0
        %728 = vmatpush2.msra.mxu0 0.0
        %729 = vmatprep.subr.mxu0 0.0
        %730 = vmatpush2.msra.mxu0 0.0
        %731 = vmatprep.subr.mxu0 0.0
        %732 = vmatpush2.msra.mxu0 0.0
        %733 = vmatprep.subr.mxu0 0.0
        %734 = vmatpush2.msra.mxu0 0.0
        %735 = vmatprep.subr.mxu0 0.0
        %736 = vmatpush2.msra.mxu0 0.0
        %737 = vmatprep.subr.mxu0 0.0
        %738 = vmatpush2.msra.mxu0 0.0
        %739 = vmatprep.subr.mxu0 0.0
        %740 = vmatpush2.msra.mxu0 0.0
        %741 = vmatprep.subr.mxu0 0.0
        %742 = vmatpush2.msra.mxu0 0.0
        %743 = vmatprep.subr.mxu0 0.0
        %744 = vmatpush2.msra.mxu0 0.0
        %745 = vmatprep.subr.mxu0 0.0
        %746 = vmatpush2.msra.mxu0 0.0
        %747 = vmatprep.subr.mxu0 0.0
        %748 = vmatpush2.msra.mxu0 0.0
        %749 = vmatprep.subr.mxu0 0.0
        %750 = vmatpush2.msra.mxu0 0.0
        %751 = vmatprep.subr.mxu0 0.0
        %752 = vmatpush2.msra.mxu0 0.0
        %753 = vmatprep.subr.mxu0 0.0
        %754 = vmatpush2.msra.mxu0 0.0
        %755 = vmatprep.subr.mxu0 0.0
        %756 = vmatpush2.msra.mxu0 0.0
        %757 = vmatprep.subr.mxu0 0.0
        %758 = vmatpush2.msra.mxu0 0.0
        %759 = vmatprep.mubr.f32.mxu0 0.0
        %760 = vmatmul.mubr.f32.gmra.mxu0 %v671
        %v761 = vpop.f32.mrf.mxu0
        %v762 = vadd.f32 %v693, %v761
        %v763 = vpop.f32.mrf.mxu0
        %764 = vdwg.mxu0
        %v765 = vlaneseq
        %v766 = vand.u32 %v765, 127
        %vm767 = vcmp.lt.s32.totalorder %v766, 4
        %v768 = vsel %vm767, %v762, -inf
        %769 = vmax.xlane.f32.xlu0 %v768
        %v770 = vpop.xlane.xlu0 %769
        %v771 = vsub.f32 %v762, %v770
        %v772 = vmul.f32 %v771, 1.442695
        %v773 = vpow.pop %v772
        %v774 = vsel %vm767, %v773, 0.0
        %775 = vadd.xlane.f32.xlu0 %v774
        %v776 = vpop.xlane.xlu0 %775
        %v777 = vrcp.pop %v776
        %v778 = vmul.f32 %v776, %v777
        %v779 = vsub.f32 2.0, %v778
        %v780 = vmul.f32 %v777, %v779
        %v781 = vmul.f32 %v774, %v780
        %v782 = vld [vmem:[#allocation10] sm:$0xff]
        %v783 = vld [vmem:[#allocation10 + $0x8] sm:$0xff]
        %v784 = vld [vmem:[#allocation10 + $0x10] sm:$0xff]
        %v785 = vld [vmem:[#allocation10 + $0x18] sm:$0xff]
        %v786 = vld [vmem:[#allocation10 + $0x20] sm:$0xff]
        %v787 = vld [vmem:[#allocation10 + $0x28] sm:$0xff]
        %v788 = vld [vmem:[#allocation10 + $0x30] sm:$0xff]
        %v789 = vld [vmem:[#allocation10 + $0x38] sm:$0xff]
        %v790 = vld [vmem:[#allocation10 + $0x40] sm:$0xff]
        %v791 = vld [vmem:[#allocation10 + $0x48] sm:$0xff]
        %v792 = vld [vmem:[#allocation10 + $0x50] sm:$0xff]
        %v793 = vld [vmem:[#allocation10 + $0x58] sm:$0xff]
        %v794 = vld [vmem:[#allocation10 + $0x60] sm:$0xff]
        %v795 = vld [vmem:[#allocation10 + $0x68] sm:$0xff]
        %v796 = vld [vmem:[#allocation10 + $0x70] sm:$0xff]
        %v797 = vld [vmem:[#allocation10 + $0x78] sm:$0xff]
        %v798 = vld [vmem:[#allocation10 + $0x80] sm:$0xff]
        %v799 = vld [vmem:[#allocation10 + $0x88] sm:$0xff]
        %v800 = vld [vmem:[#allocation10 + $0x90] sm:$0xff]
        %v801 = vld [vmem:[#allocation10 + $0x98] sm:$0xff]
        %v802 = vld [vmem:[#allocation10 + $0xa0] sm:$0xff]
        %v803 = vld [vmem:[#allocation10 + $0xa8] sm:$0xff]
        %v804 = vld [vmem:[#allocation10 + $0xb0] sm:$0xff]
        %v805 = vld [vmem:[#allocation10 + $0xb8] sm:$0xff]
        %v806 = vld [vmem:[#allocation10 + $0xc0] sm:$0xff]
        %v807 = vld [vmem:[#allocation10 + $0xc8] sm:$0xff]
        %v808 = vld [vmem:[#allocation10 + $0xd0] sm:$0xff]
        %v809 = vld [vmem:[#allocation10 + $0xd8] sm:$0xff]
        %v810 = vld [vmem:[#allocation10 + $0xe0] sm:$0xff]
        %v811 = vld [vmem:[#allocation10 + $0xe8] sm:$0xff]
        %v812 = vld [vmem:[#allocation10 + $0xf0] sm:$0xff]
        %v813 = vld [vmem:[#allocation10 + $0xf8] sm:$0xff]
        %v814 = vld [vmem:[#allocation10 + $0x100] sm:$0xff]
        %v815 = vld [vmem:[#allocation10 + $0x108] sm:$0xff]
        %v816 = vld [vmem:[#allocation10 + $0x110] sm:$0xff]
        %v817 = vld [vmem:[#allocation10 + $0x118] sm:$0xff]
        %v818 = vld [vmem:[#allocation10 + $0x120] sm:$0xff]
        %v819 = vld [vmem:[#allocation10 + $0x128] sm:$0xff]
        %v820 = vld [vmem:[#allocation10 + $0x130] sm:$0xff]
        %v821 = vld [vmem:[#allocation10 + $0x138] sm:$0xff]
        %v822 = vld [vmem:[#allocation10 + $0x140] sm:$0xff]
        %v823 = vld [vmem:[#allocation10 + $0x148] sm:$0xff]
        %v824 = vld [vmem:[#allocation10 + $0x150] sm:$0xff]
        %v825 = vld [vmem:[#allocation10 + $0x158] sm:$0xff]
        %v826 = vld [vmem:[#allocation10 + $0x160] sm:$0xff]
        %v827 = vld [vmem:[#allocation10 + $0x168] sm:$0xff]
        %v828 = vld [vmem:[#allocation10 + $0x170] sm:$0xff]
        %v829 = vld [vmem:[#allocation10 + $0x178] sm:$0xff]
        %v830 = vld [vmem:[#allocation10 + $0x180] sm:$0xff]
        %v831 = vld [vmem:[#allocation10 + $0x188] sm:$0xff]
        %v832 = vld [vmem:[#allocation10 + $0x190] sm:$0xff]
        %v833 = vld [vmem:[#allocation10 + $0x198] sm:$0xff]
        %v834 = vld [vmem:[#allocation10 + $0x1a0] sm:$0xff]
        %v835 = vld [vmem:[#allocation10 + $0x1a8] sm:$0xff]
        %v836 = vld [vmem:[#allocation10 + $0x1b0] sm:$0xff]
        %v837 = vld [vmem:[#allocation10 + $0x1b8] sm:$0xff]
        %v838 = vld [vmem:[#allocation10 + $0x1c0] sm:$0xff]
        %v839 = vld [vmem:[#allocation10 + $0x1c8] sm:$0xff]
        %v840 = vld [vmem:[#allocation10 + $0x1d0] sm:$0xff]
        %v841 = vld [vmem:[#allocation10 + $0x1d8] sm:$0xff]
        %v842 = vld [vmem:[#allocation10 + $0x1e0] sm:$0xff]
        %v843 = vld [vmem:[#allocation10 + $0x1e8] sm:$0xff]
        %v844 = vld [vmem:[#allocation10 + $0x1f0] sm:$0xff]
        %v845 = vld [vmem:[#allocation10 + $0x1f8] sm:$0xff]
        %846 = vmatprep.subr.mxu0 %v843
        %847 = vmatpush1.msra.mxu0 %v842
        %848 = vmatprep.subr.mxu0 %v839
        %849 = vmatpush1.msra.mxu0 %v838
        %850 = vmatprep.subr.mxu0 %v835
        %851 = vmatpush1.msra.mxu0 %v834
        %852 = vmatprep.subr.mxu0 %v831
        %853 = vmatpush1.msra.mxu0 %v830
        %854 = vmatprep.subr.mxu0 %v827
        %855 = vmatpush1.msra.mxu0 %v826
        %856 = vmatprep.subr.mxu0 %v823
        %857 = vmatpush1.msra.mxu0 %v822
        %858 = vmatprep.subr.mxu0 %v819
        %859 = vmatpush1.msra.mxu0 %v818
        %860 = vmatprep.subr.mxu0 %v815
        %861 = vmatpush1.msra.mxu0 %v814
        %862 = vmatprep.subr.mxu0 %v811
        %863 = vmatpush1.msra.mxu0 %v810
        %864 = vmatprep.subr.mxu0 %v807
        %865 = vmatpush1.msra.mxu0 %v806
        %866 = vmatprep.subr.mxu0 %v803
        %867 = vmatpush1.msra.mxu0 %v802
        %868 = vmatprep.subr.mxu0 %v799
        %869 = vmatpush1.msra.mxu0 %v798
        %870 = vmatprep.subr.mxu0 %v795
        %871 = vmatpush1.msra.mxu0 %v794
        %872 = vmatprep.subr.mxu0 %v791
        %873 = vmatpush1.msra.mxu0 %v790
        %874 = vmatprep.subr.mxu0 %v787
        %875 = vmatpush1.msra.mxu0 %v786
        %876 = vmatprep.subr.mxu0 %v783
        %877 = vmatpush1.msra.mxu0 %v782
        %878 = vmatprep.subr.mxu0 0.0
        %879 = vmatpush2.msra.mxu0 0.0
        %880 = vmatprep.subr.mxu0 0.0
        %881 = vmatpush2.msra.mxu0 0.0
        %882 = vmatprep.subr.mxu0 0.0
        %883 = vmatpush2.msra.mxu0 0.0
        %884 = vmatprep.subr.mxu0 0.0
        %885 = vmatpush2.msra.mxu0 0.0
        %886 = vmatprep.subr.mxu0 0.0
        %887 = vmatpush2.msra.mxu0 0.0
        %888 = vmatprep.subr.mxu0 0.0
        %889 = vmatpush2.msra.mxu0 0.0
        %890 = vmatprep.subr.mxu0 0.0
        %891 = vmatpush2.msra.mxu0 0.0
        %892 = vmatprep.subr.mxu0 0.0
        %893 = vmatpush2.msra.mxu0 0.0
        %894 = vmatprep.subr.mxu0 0.0
        %895 = vmatpush2.msra.mxu0 0.0
        %896 = vmatprep.subr.mxu0 0.0
        %897 = vmatpush2.msra.mxu0 0.0
        %898 = vmatprep.subr.mxu0 0.0
        %899 = vmatpush2.msra.mxu0 0.0
        %900 = vmatprep.subr.mxu0 0.0
        %901 = vmatpush2.msra.mxu0 0.0
        %902 = vmatprep.subr.mxu0 0.0
        %903 = vmatpush2.msra.mxu0 0.0
        %904 = vmatprep.subr.mxu0 0.0
        %905 = vmatpush2.msra.mxu0 0.0
        %906 = vmatprep.subr.mxu0 0.0
        %907 = vmatpush2.msra.mxu0 0.0
        %908 = vmatprep.subr.mxu0 0.0
        %909 = vmatpush2.msra.mxu0 0.0
        %910 = vmatprep.mubr.f32.mxu0 0.0
        %911 = vmatmul.mubr.f32.gmra.mxu0 %v781
        %v912 = vpop.f32.mrf.mxu0
        %v913 = vadd.f32 0.0, %v912
        %v914 = vpop.f32.mrf.mxu0
        %v915 = vadd.f32 0.0, %v914
        %916 = vdwg.mxu0
        %917 = vmatprep.subr.mxu0 %v845
        %918 = vmatpush1.msra.mxu0 %v844
        %919 = vmatprep.subr.mxu0 %v841
        %920 = vmatpush1.msra.mxu0 %v840
        %921 = vmatprep.subr.mxu0 %v837
        %922 = vmatpush1.msra.mxu0 %v836
        %923 = vmatprep.subr.mxu0 %v833
        %924 = vmatpush1.msra.mxu0 %v832
        %925 = vmatprep.subr.mxu0 %v829
        %926 = vmatpush1.msra.mxu0 %v828
        %927 = vmatprep.subr.mxu0 %v825
        %928 = vmatpush1.msra.mxu0 %v824
        %929 = vmatprep.subr.mxu0 %v821
        %930 = vmatpush1.msra.mxu0 %v820
        %931 = vmatprep.subr.mxu0 %v817
        %932 = vmatpush1.msra.mxu0 %v816
        %933 = vmatprep.subr.mxu0 %v813
        %934 = vmatpush1.msra.mxu0 %v812
        %935 = vmatprep.subr.mxu0 %v809
        %936 = vmatpush1.msra.mxu0 %v808
        %937 = vmatprep.subr.mxu0 %v805
        %938 = vmatpush1.msra.mxu0 %v804
        %939 = vmatprep.subr.mxu0 %v801
        %940 = vmatpush1.msra.mxu0 %v800
        %941 = vmatprep.subr.mxu0 %v797
        %942 = vmatpush1.msra.mxu0 %v796
        %943 = vmatprep.subr.mxu0 %v793
        %944 = vmatpush1.msra.mxu0 %v792
        %945 = vmatprep.subr.mxu0 %v789
        %946 = vmatpush1.msra.mxu0 %v788
        %947 = vmatprep.subr.mxu0 %v785
        %948 = vmatpush1.msra.mxu0 %v784
        %949 = vmatprep.subr.mxu0 0.0
        %950 = vmatpush2.msra.mxu0 0.0
        %951 = vmatprep.subr.mxu0 0.0
        %952 = vmatpush2.msra.mxu0 0.0
        %953 = vmatprep.subr.mxu0 0.0
        %954 = vmatpush2.msra.mxu0 0.0
        %955 = vmatprep.subr.mxu0 0.0
        %956 = vmatpush2.msra.mxu0 0.0
        %957 = vmatprep.subr.mxu0 0.0
        %958 = vmatpush2.msra.mxu0 0.0
        %959 = vmatprep.subr.mxu0 0.0
        %960 = vmatpush2.msra.mxu0 0.0
        %961 = vmatprep.subr.mxu0 0.0
        %962 = vmatpush2.msra.mxu0 0.0
        %963 = vmatprep.subr.mxu0 0.0
        %964 = vmatpush2.msra.mxu0 0.0
        %965 = vmatprep.subr.mxu0 0.0
        %966 = vmatpush2.msra.mxu0 0.0
        %967 = vmatprep.subr.mxu0 0.0
        %968 = vmatpush2.msra.mxu0 0.0
        %969 = vmatprep.subr.mxu0 0.0
        %970 = vmatpush2.msra.mxu0 0.0
        %971 = vmatprep.subr.mxu0 0.0
        %972 = vmatpush2.msra.mxu0 0.0
        %973 = vmatprep.subr.mxu0 0.0
        %974 = vmatpush2.msra.mxu0 0.0
        %975 = vmatprep.subr.mxu0 0.0
        %976 = vmatpush2.msra.mxu0 0.0
        %977 = vmatprep.subr.mxu0 0.0
        %978 = vmatpush2.msra.mxu0 0.0
        %979 = vmatprep.subr.mxu0 0.0
        %980 = vmatpush2.msra.mxu0 0.0
        %981 = vmatprep.mubr.f32.mxu0 0.0
        %982 = vmatmul.mubr.f32.gmra.mxu0 %v781
        %v983 = vpop.f32.mrf.mxu0
        %v984 = vadd.f32 0.0, %v983
        %v985 = vpop.f32.mrf.mxu0
        %v986 = vadd.f32 0.0, %v985
        %987 = vdwg.mxu0
        %v988 = vmul.f32 %v667, %v913
        %v989 = vmul.f32 %v668, %v915
        %v990 = vmul.f32 %v669, %v984
        %v991 = vmul.f32 %v670, %v986
        %v992 = vld [vmem:[#allocation11] sm:$0xff]
        %v993 = vld [vmem:[#allocation11 + $0x8] sm:$0xff]
        %v994 = vld [vmem:[#allocation11 + $0x10] sm:$0xff]
        %v995 = vld [vmem:[#allocation11 + $0x18] sm:$0xff]
        %v996 = vld [vmem:[#allocation11 + $0x20] sm:$0xff]
        %v997 = vld [vmem:[#allocation11 + $0x28] sm:$0xff]
        %v998 = vld [vmem:[#allocation11 + $0x30] sm:$0xff]
        %v999 = vld [vmem:[#allocation11 + $0x38] sm:$0xff]
        %v1000 = vld [vmem:[#allocation11 + $0x40] sm:$0xff]
        %v1001 = vld [vmem:[#allocation11 + $0x48] sm:$0xff]
        %v1002 = vld [vmem:[#allocation11 + $0x50] sm:$0xff]
        %v1003 = vld [vmem:[#allocation11 + $0x58] sm:$0xff]
        %v1004 = vld [vmem:[#allocation11 + $0x60] sm:$0xff]
        %v1005 = vld [vmem:[#allocation11 + $0x68] sm:$0xff]
        %v1006 = vld [vmem:[#allocation11 + $0x70] sm:$0xff]
        %v1007 = vld [vmem:[#allocation11 + $0x78] sm:$0xff]
        %v1008 = vld [vmem:[#allocation11 + $0x80] sm:$0xff]
        %v1009 = vld [vmem:[#allocation11 + $0x88] sm:$0xff]
        %v1010 = vld [vmem:[#allocation11 + $0x90] sm:$0xff]
        %v1011 = vld [vmem:[#allocation11 + $0x98] sm:$0xff]
        %v1012 = vld [vmem:[#allocation11 + $0xa0] sm:$0xff]
        %v1013 = vld [vmem:[#allocation11 + $0xa8] sm:$0xff]
        %v1014 = vld [vmem:[#allocation11 + $0xb0] sm:$0xff]
        %v1015 = vld [vmem:[#allocation11 + $0xb8] sm:$0xff]
        %v1016 = vld [vmem:[#allocation11 + $0xc0] sm:$0xff]
        %v1017 = vld [vmem:[#allocation11 + $0xc8] sm:$0xff]
        %v1018 = vld [vmem:[#allocation11 + $0xd0] sm:$0xff]
        %v1019 = vld [vmem:[#allocation11 + $0xd8] sm:$0xff]
        %v1020 = vld [vmem:[#allocation11 + $0xe0] sm:$0xff]
        %v1021 = vld [vmem:[#allocation11 + $0xe8] sm:$0xff]
        %v1022 = vld [vmem:[#allocation11 + $0xf0] sm:$0xff]
        %v1023 = vld [vmem:[#allocation11 + $0xf8] sm:$0xff]
        %v1024 = vld [vmem:[#allocation11 + $0x100] sm:$0xff]
        %v1025 = vld [vmem:[#allocation11 + $0x108] sm:$0xff]
        %v1026 = vld [vmem:[#allocation11 + $0x110] sm:$0xff]
        %v1027 = vld [vmem:[#allocation11 + $0x118] sm:$0xff]
        %v1028 = vld [vmem:[#allocation11 + $0x120] sm:$0xff]
        %v1029 = vld [vmem:[#allocation11 + $0x128] sm:$0xff]
        %v1030 = vld [vmem:[#allocation11 + $0x130] sm:$0xff]
        %v1031 = vld [vmem:[#allocation11 + $0x138] sm:$0xff]
        %v1032 = vld [vmem:[#allocation11 + $0x140] sm:$0xff]
        %v1033 = vld [vmem:[#allocation11 + $0x148] sm:$0xff]
        %v1034 = vld [vmem:[#allocation11 + $0x150] sm:$0xff]
        %v1035 = vld [vmem:[#allocation11 + $0x158] sm:$0xff]
        %v1036 = vld [vmem:[#allocation11 + $0x160] sm:$0xff]
        %v1037 = vld [vmem:[#allocation11 + $0x168] sm:$0xff]
        %v1038 = vld [vmem:[#allocation11 + $0x170] sm:$0xff]
        %v1039 = vld [vmem:[#allocation11 + $0x178] sm:$0xff]
        %v1040 = vld [vmem:[#allocation11 + $0x180] sm:$0xff]
        %v1041 = vld [vmem:[#allocation11 + $0x188] sm:$0xff]
        %v1042 = vld [vmem:[#allocation11 + $0x190] sm:$0xff]
        %v1043 = vld [vmem:[#allocation11 + $0x198] sm:$0xff]
        %v1044 = vld [vmem:[#allocation11 + $0x1a0] sm:$0xff]
        %v1045 = vld [vmem:[#allocation11 + $0x1a8] sm:$0xff]
        %v1046 = vld [vmem:[#allocation11 + $0x1b0] sm:$0xff]
        %v1047 = vld [vmem:[#allocation11 + $0x1b8] sm:$0xff]
        %v1048 = vld [vmem:[#allocation11 + $0x1c0] sm:$0xff]
        %v1049 = vld [vmem:[#allocation11 + $0x1c8] sm:$0xff]
        %v1050 = vld [vmem:[#allocation11 + $0x1d0] sm:$0xff]
        %v1051 = vld [vmem:[#allocation11 + $0x1d8] sm:$0xff]
        %v1052 = vld [vmem:[#allocation11 + $0x1e0] sm:$0xff]
        %v1053 = vld [vmem:[#allocation11 + $0x1e8] sm:$0xff]
        %v1054 = vld [vmem:[#allocation11 + $0x1f0] sm:$0xff]
        %v1055 = vld [vmem:[#allocation11 + $0x1f8] sm:$0xff]
        %v1056 = vld [vmem:[#allocation11 + $0x200] sm:$0xff]
        %v1057 = vld [vmem:[#allocation11 + $0x208] sm:$0xff]
        %v1058 = vld [vmem:[#allocation11 + $0x210] sm:$0xff]
        %v1059 = vld [vmem:[#allocation11 + $0x218] sm:$0xff]
        %v1060 = vld [vmem:[#allocation11 + $0x220] sm:$0xff]
        %v1061 = vld [vmem:[#allocation11 + $0x228] sm:$0xff]
        %v1062 = vld [vmem:[#allocation11 + $0x230] sm:$0xff]
        %v1063 = vld [vmem:[#allocation11 + $0x238] sm:$0xff]
        %v1064 = vld [vmem:[#allocation11 + $0x240] sm:$0xff]
        %v1065 = vld [vmem:[#allocation11 + $0x248] sm:$0xff]
        %v1066 = vld [vmem:[#allocation11 + $0x250] sm:$0xff]
        %v1067 = vld [vmem:[#allocation11 + $0x258] sm:$0xff]
        %v1068 = vld [vmem:[#allocation11 + $0x260] sm:$0xff]
        %v1069 = vld [vmem:[#allocation11 + $0x268] sm:$0xff]
        %v1070 = vld [vmem:[#allocation11 + $0x270] sm:$0xff]
        %v1071 = vld [vmem:[#allocation11 + $0x278] sm:$0xff]
        %1072 = vmatprep.subr.mxu0 0.0
        %1073 = vmatpush1.msra.mxu0 %v1007
        %1074 = vmatprep.subr.mxu0 0.0
        %1075 = vmatpush1.msra.mxu0 %v1006
        %1076 = vmatprep.subr.mxu0 0.0
        %1077 = vmatpush1.msra.mxu0 %v1005
        %1078 = vmatprep.subr.mxu0 0.0
        %1079 = vmatpush1.msra.mxu0 %v1004
        %1080 = vmatprep.subr.mxu0 0.0
        %1081 = vmatpush1.msra.mxu0 %v1003
        %1082 = vmatprep.subr.mxu0 0.0
        %1083 = vmatpush1.msra.mxu0 %v1002
        %1084 = vmatprep.subr.mxu0 0.0
        %1085 = vmatpush1.msra.mxu0 %v1001
        %1086 = vmatprep.subr.mxu0 0.0
        %1087 = vmatpush1.msra.mxu0 %v1000
        %1088 = vmatprep.subr.mxu0 0.0
        %1089 = vmatpush1.msra.mxu0 %v999
        %1090 = vmatprep.subr.mxu0 0.0
        %1091 = vmatpush1.msra.mxu0 %v998
        %1092 = vmatprep.subr.mxu0 0.0
        %1093 = vmatpush1.msra.mxu0 %v997
        %1094 = vmatprep.subr.mxu0 0.0
        %1095 = vmatpush1.msra.mxu0 %v996
        %1096 = vmatprep.subr.mxu0 0.0
        %1097 = vmatpush1.msra.mxu0 %v995
        %1098 = vmatprep.subr.mxu0 0.0
        %1099 = vmatpush1.msra.mxu0 %v994
        %1100 = vmatprep.subr.mxu0 0.0
        %1101 = vmatpush1.msra.mxu0 %v993
        %1102 = vmatprep.subr.mxu0 0.0
        %1103 = vmatpush1.msra.mxu0 %v992
        %1104 = vmatprep.subr.mxu0 0.0
        %1105 = vmatpush2.msra.mxu0 %v1023
        %1106 = vmatprep.subr.mxu0 0.0
        %1107 = vmatpush2.msra.mxu0 %v1022
        %1108 = vmatprep.subr.mxu0 0.0
        %1109 = vmatpush2.msra.mxu0 %v1021
        %1110 = vmatprep.subr.mxu0 0.0
        %1111 = vmatpush2.msra.mxu0 %v1020
        %1112 = vmatprep.subr.mxu0 0.0
        %1113 = vmatpush2.msra.mxu0 %v1019
        %1114 = vmatprep.subr.mxu0 0.0
        %1115 = vmatpush2.msra.mxu0 %v1018
        %1116 = vmatprep.subr.mxu0 0.0
        %1117 = vmatpush2.msra.mxu0 %v1017
        %1118 = vmatprep.subr.mxu0 0.0
        %1119 = vmatpush2.msra.mxu0 %v1016
        %1120 = vmatprep.subr.mxu0 0.0
        %1121 = vmatpush2.msra.mxu0 %v1015
        %1122 = vmatprep.subr.mxu0 0.0
        %1123 = vmatpush2.msra.mxu0 %v1014
        %1124 = vmatprep.subr.mxu0 0.0
        %1125 = vmatpush2.msra.mxu0 %v1013
        %1126 = vmatprep.subr.mxu0 0.0
        %1127 = vmatpush2.msra.mxu0 %v1012
        %1128 = vmatprep.subr.mxu0 0.0
        %1129 = vmatpush2.msra.mxu0 %v1011
        %1130 = vmatprep.subr.mxu0 0.0
        %1131 = vmatpush2.msra.mxu0 %v1010
        %1132 = vmatprep.subr.mxu0 0.0
        %1133 = vmatpush2.msra.mxu0 %v1009
        %1134 = vmatprep.subr.mxu0 0.0
        %1135 = vmatpush2.msra.mxu0 %v1008
        %1136 = vmatprep.mubr.f32.mxu0 %v989
        %1137 = vmatmul.mubr.f32.gmra.mxu0 %v988
        %v1138 = vpop.f32.mrf.mxu0
        %v1139 = vadd.f32 0.0, %v1138
        %v1140 = vpop.f32.mrf.mxu0
        %1141 = vdwg.mxu0
        %1142 = vmatprep.subr.mxu0 0.0
        %1143 = vmatpush1.msra.mxu0 %v1039
        %1144 = vmatprep.subr.mxu0 0.0
        %1145 = vmatpush1.msra.mxu0 %v1038
        %1146 = vmatprep.subr.mxu0 0.0
        %1147 = vmatpush1.msra.mxu0 %v1037
        %1148 = vmatprep.subr.mxu0 0.0
        %1149 = vmatpush1.msra.mxu0 %v1036
        %1150 = vmatprep.subr.mxu0 0.0
        %1151 = vmatpush1.msra.mxu0 %v1035
        %1152 = vmatprep.subr.mxu0 0.0
        %1153 = vmatpush1.msra.mxu0 %v1034
        %1154 = vmatprep.subr.mxu0 0.0
        %1155 = vmatpush1.msra.mxu0 %v1033
        %1156 = vmatprep.subr.mxu0 0.0
        %1157 = vmatpush1.msra.mxu0 %v1032
        %1158 = vmatprep.subr.mxu0 0.0
        %1159 = vmatpush1.msra.mxu0 %v1031
        %1160 = vmatprep.subr.mxu0 0.0
        %1161 = vmatpush1.msra.mxu0 %v1030
        %1162 = vmatprep.subr.mxu0 0.0
        %1163 = vmatpush1.msra.mxu0 %v1029
        %1164 = vmatprep.subr.mxu0 0.0
        %1165 = vmatpush1.msra.mxu0 %v1028
        %1166 = vmatprep.subr.mxu0 0.0
        %1167 = vmatpush1.msra.mxu0 %v1027
        %1168 = vmatprep.subr.mxu0 0.0
        %1169 = vmatpush1.msra.mxu0 %v1026
        %1170 = vmatprep.subr.mxu0 0.0
        %1171 = vmatpush1.msra.mxu0 %v1025
        %1172 = vmatprep.subr.mxu0 0.0
        %1173 = vmatpush1.msra.mxu0 %v1024
        %1174 = vmatprep.subr.mxu0 0.0
        %1175 = vmatpush2.msra.mxu0 %v1055
        %1176 = vmatprep.subr.mxu0 0.0
        %1177 = vmatpush2.msra.mxu0 %v1054
        %1178 = vmatprep.subr.mxu0 0.0
        %1179 = vmatpush2.msra.mxu0 %v1053
        %1180 = vmatprep.subr.mxu0 0.0
        %1181 = vmatpush2.msra.mxu0 %v1052
        %1182 = vmatprep.subr.mxu0 0.0
        %1183 = vmatpush2.msra.mxu0 %v1051
        %1184 = vmatprep.subr.mxu0 0.0
        %1185 = vmatpush2.msra.mxu0 %v1050
        %1186 = vmatprep.subr.mxu0 0.0
        %1187 = vmatpush2.msra.mxu0 %v1049
        %1188 = vmatprep.subr.mxu0 0.0
        %1189 = vmatpush2.msra.mxu0 %v1048
        %1190 = vmatprep.subr.mxu0 0.0
        %1191 = vmatpush2.msra.mxu0 %v1047
        %1192 = vmatprep.subr.mxu0 0.0
        %1193 = vmatpush2.msra.mxu0 %v1046
        %1194 = vmatprep.subr.mxu0 0.0
        %1195 = vmatpush2.msra.mxu0 %v1045
        %1196 = vmatprep.subr.mxu0 0.0
        %1197 = vmatpush2.msra.mxu0 %v1044
        %1198 = vmatprep.subr.mxu0 0.0
        %1199 = vmatpush2.msra.mxu0 %v1043
        %1200 = vmatprep.subr.mxu0 0.0
        %1201 = vmatpush2.msra.mxu0 %v1042
        %1202 = vmatprep.subr.mxu0 0.0
        %1203 = vmatpush2.msra.mxu0 %v1041
        %1204 = vmatprep.subr.mxu0 0.0
        %1205 = vmatpush2.msra.mxu0 %v1040
        %1206 = vmatprep.mubr.f32.mxu0 %v991
        %1207 = vmatmul.mubr.f32.gmra.mxu0 %v990
        %v1208 = vpop.f32.mrf.mxu0
        %v1209 = vadd.f32 %v1139, %v1208
        %v1210 = vpop.f32.mrf.mxu0
        %1211 = vdwg.mxu0
        %1212 = vmatprep.subr.mxu0 0.0
        %1213 = vmatpush1.msra.mxu0 %v1071
        %1214 = vmatprep.subr.mxu0 0.0
        %1215 = vmatpush1.msra.mxu0 %v1070
        %1216 = vmatprep.subr.mxu0 0.0
        %1217 = vmatpush1.msra.mxu0 %v1069
        %1218 = vmatprep.subr.mxu0 0.0
        %1219 = vmatpush1.msra.mxu0 %v1068
        %1220 = vmatprep.subr.mxu0 0.0
        %1221 = vmatpush1.msra.mxu0 %v1067
        %1222 = vmatprep.subr.mxu0 0.0
        %1223 = vmatpush1.msra.mxu0 %v1066
        %1224 = vmatprep.subr.mxu0 0.0
        %1225 = vmatpush1.msra.mxu0 %v1065
        %1226 = vmatprep.subr.mxu0 0.0
        %1227 = vmatpush1.msra.mxu0 %v1064
        %1228 = vmatprep.subr.mxu0 0.0
        %1229 = vmatpush1.msra.mxu0 %v1063
        %1230 = vmatprep.subr.mxu0 0.0
        %1231 = vmatpush1.msra.mxu0 %v1062
        %1232 = vmatprep.subr.mxu0 0.0
        %1233 = vmatpush1.msra.mxu0 %v1061
        %1234 = vmatprep.subr.mxu0 0.0
        %1235 = vmatpush1.msra.mxu0 %v1060
        %1236 = vmatprep.subr.mxu0 0.0
        %1237 = vmatpush1.msra.mxu0 %v1059
        %1238 = vmatprep.subr.mxu0 0.0
        %1239 = vmatpush1.msra.mxu0 %v1058
        %1240 = vmatprep.subr.mxu0 0.0
        %1241 = vmatpush1.msra.mxu0 %v1057
        %1242 = vmatprep.subr.mxu0 0.0
        %1243 = vmatpush1.msra.mxu0 %v1056
        %1244 = vmatprep.subr.mxu0 0.0
        %1245 = vmatpush2.msra.mxu0 0.0
        %1246 = vmatprep.subr.mxu0 0.0
        %1247 = vmatpush2.msra.mxu0 0.0
        %1248 = vmatprep.subr.mxu0 0.0
        %1249 = vmatpush2.msra.mxu0 0.0
        %1250 = vmatprep.subr.mxu0 0.0
        %1251 = vmatpush2.msra.mxu0 0.0
        %1252 = vmatprep.subr.mxu0 0.0
        %1253 = vmatpush2.msra.mxu0 0.0
        %1254 = vmatprep.subr.mxu0 0.0
        %1255 = vmatpush2.msra.mxu0 0.0
        %1256 = vmatprep.subr.mxu0 0.0
        %1257 = vmatpush2.msra.mxu0 0.0
        %1258 = vmatprep.subr.mxu0 0.0
        %1259 = vmatpush2.msra.mxu0 0.0
        %1260 = vmatprep.subr.mxu0 0.0
        %1261 = vmatpush2.msra.mxu0 0.0
        %1262 = vmatprep.subr.mxu0 0.0
        %1263 = vmatpush2.msra.mxu0 0.0
        %1264 = vmatprep.subr.mxu0 0.0
        %1265 = vmatpush2.msra.mxu0 0.0
        %1266 = vmatprep.subr.mxu0 0.0
        %1267 = vmatpush2.msra.mxu0 0.0
        %1268 = vmatprep.subr.mxu0 0.0
        %1269 = vmatpush2.msra.mxu0 0.0
        %1270 = vmatprep.subr.mxu0 0.0
        %1271 = vmatpush2.msra.mxu0 0.0
        %1272 = vmatprep.subr.mxu0 0.0
        %1273 = vmatpush2.msra.mxu0 0.0
        %1274 = vmatprep.subr.mxu0 0.0
        %1275 = vmatpush2.msra.mxu0 0.0
        %1276 = vmatprep.mubr.f32.mxu0 0.0
        %1277 = vmatmul.mubr.f32.gmra.mxu0 %v781
        %v1278 = vpop.f32.mrf.mxu0
        %v1279 = vadd.f32 %v1209, %v1278
        %v1280 = vpop.f32.mrf.mxu0
        %1281 = vdwg.mxu0
        %1282 = vst [vmem:[%s395] sm:$0xff] %v1279
        %1283 = vst [vmem:[%s402] sm:$0xff] %v781
        %s1284 = sand.u32 %s192, 1
        %s1285 = scalar_lea.sflag [#allocation4], %s1284
        %s1286 = sand.u32 %s192, 1
        %s1287 = smul.addr %s1286, 8
        %s1288 = scalar_lea.vmem [#allocation13], %s1287
        %s1289 = sand.u32 %s218, 1
        %s1290 = scalar_lea.sflag [#allocation15], %s1289
        %s1291 = sand.u32 %s218, 1
        %s1292 = smul.addr %s1291, 8
        %s1293 = scalar_lea.vmem [#allocation14], %s1292
        // Predicated region
        $region73: #{tpu_custom_call.1} parent=47 // pred_check
          %p1294 = pneg %p202
        $region74: #{tpu_custom_call.1} parent=47 // pred_check_branch
          %1296 = sbr.rel (%p1294) target = $region76
        $region75: #{tpu_custom_call.1} parent=47 // pred_region
          %s1298 = ssub.s32 128, 128
          %1299 = vsyncadd %s1285, %s1298
          %s1300 = smul.addr %s32, 128
          %s1301 = scalar_lea.hbm %s7, %s1300
          %s1303 = sshll.u32 %s1288, 4
          %s1304 = int_to_ptr.vmem [resolvable:$true] %s1303
          %1306 = dma.vmem_to_hbm [thread:$0]  %s1304, 128, %s1301, %s1285
        $region76: #{tpu_custom_call.1} parent=47 // pred_fallthru
          _
        // Predicated region
        $region77: #{tpu_custom_call.1} parent=47 // pred_check
          %p1307 = pneg %p228
        $region78: #{tpu_custom_call.1} parent=47 // pred_check_branch
          %1309 = sbr.rel (%p1307) target = $region80
        $region79: #{tpu_custom_call.1} parent=47 // pred_region
          %s1311 = ssub.s32 128, 128
          %1312 = vsyncadd %s1290, %s1311
          %s1313 = smul.addr %s32, 128
          %s1314 = scalar_lea.hbm %s8, %s1313
          %s1316 = sshll.u32 %s1293, 4
          %s1317 = int_to_ptr.vmem [resolvable:$true] %s1316
          %1319 = dma.vmem_to_hbm [thread:$0]  %s1317, 128, %s1314, %s1290
        $region80: #{tpu_custom_call.1} parent=47 // pred_fallthru
          _
      $region48: #{tpu_custom_call.1} parent=5 // pred_fallthru
        _
      %p1320 = scmp.le.s32.totalorder 2, %s27
      // Predicated region
      $region81: #{tpu_custom_call.1} parent=5 // pred_check
        %p1321 = pneg %p1320
      $region82: #{tpu_custom_call.1} parent=5 // pred_check_branch
        %1323 = sbr.rel (%p1321) target = $region84
      $region83: #{tpu_custom_call.1} parent=5 // pred_region
        %s1324 = ssub.s32 %s27, 2
        // Predicated region
        $region85: #{tpu_custom_call.1} parent=83 // pred_check
          %p1325 = pneg %p208
        $region86: #{tpu_custom_call.1} parent=83 // pred_check_branch
          %1327 = sbr.rel (%p1325) target = $region88
        $region87: #{tpu_custom_call.1} parent=83 // pred_region
          %s1328 = sand.u32 %s193, 1
          %s1329 = scalar_lea.sflag [#allocation4], %s1328
          %s1330 = sand.u32 %s193, 1
          %s1331 = smul.addr %s1330, 8
          %s1332 = scalar_lea.vmem [#allocation13], %s1331
          %1333 = dma.done %s1329, 128
        $region88: #{tpu_custom_call.1} parent=83 // pred_fallthru
          _
        // Predicated region
        $region89: #{tpu_custom_call.1} parent=83 // pred_check
          %p1334 = pneg %p234
        $region90: #{tpu_custom_call.1} parent=83 // pred_check_branch
          %1336 = sbr.rel (%p1334) target = $region92
        $region91: #{tpu_custom_call.1} parent=83 // pred_region
          %s1337 = sand.u32 %s219, 1
          %s1338 = scalar_lea.sflag [#allocation15], %s1337
          %s1339 = sand.u32 %s219, 1
          %s1340 = smul.addr %s1339, 8
          %s1341 = scalar_lea.vmem [#allocation14], %s1340
          %1342 = dma.done %s1338, 128
        $region92: #{tpu_custom_call.1} parent=83 // pred_fallthru
          _
      $region84: #{tpu_custom_call.1} parent=5 // pred_fallthru
        _
    $region6: #{tpu_custom_call.1} parent=1 // loop_footer
      %s31 = sadd.s32 1, %s27
    $region7: #{tpu_custom_call.1} parent=1 // loop_footer_branch
      %26 = sbr.rel target = $region3
    $region8: #{tpu_custom_call.1} parent=1 // loop_exit
      _
    %1343 = vsyncpa [#allocation3], 1
    %s1344 = scalar_lea.sflag [#allocation3], 1
    %1345 = vsyncpa %s1344, 1
    %1346 = vsyncpa [#allocation6], 1
    %1347 = vsyncpa [#allocation9], 1
    %1348 = vsyncpa [#allocation12], 1
    %1349 = vsyncpa [#allocation4], 1
    %s1350 = scalar_lea.sflag [#allocation4], 1
    %1351 = vsyncpa %s1350, 1
    %1352 = vsyncpa [#allocation15], 1
    %s1353 = scalar_lea.sflag [#allocation15], 1
    %1354 = vsyncpa %s1353, 1

</llo_original>
